<compile_context>
chip_gen: v6e
topology: v6e:2x2x1
jax: 0.10.0
libtpu: 0.0.40
codegen_flags: <defaults>
</compile_context>

<pallas_src>
import functools

import jax
import jax.numpy as jnp
from jax.experimental import pallas as pl
from jax.experimental.pallas import tpu as pltpu


def _ceil_to(x, m):
    return (x + m - 1) // m * m


def _vmem_limit_bytes():
    """Generation-aware scoped-VMEM limit (~60% of physical per-core VMEM)."""
    cap = 64 * 1024 * 1024  # conservative fallback (v7x per-TC VMEM)
    try:
        cap = int(getattr(pltpu.get_tpu_info(), "vmem_capacity_bytes", cap))
    except Exception:
        pass
    return min(int(cap * 0.6), 96 * 1024 * 1024)


_VMEM_LIMIT = _vmem_limit_bytes()


# ---------------------------------------------------------------------------
# Pallas kernels
# ---------------------------------------------------------------------------
def _conv_act_kernel(p_ref, w_ref, o_ref, *, activation, slope):
    """(tm, K) @ (K, Cout) on the MXU (bf16 in, f32 acc) with fused epilogue."""
    acc = jnp.dot(p_ref[...], w_ref[...], preferred_element_type=jnp.float32)
    if activation == "lrelu":
        acc = jnp.where(acc >= 0, acc, slope * acc)
    elif activation == "sigmoid":
        # Exact sigmoid via a single EUP tanh; result stays in [0, 1].
        acc = 0.5 * (jnp.tanh(0.5 * acc) + 1.0)
    o_ref[...] = acc.astype(o_ref.dtype)


def _conv_bn_lrelu_fused_kernel(p_ref, w_ref, g_ref, b_ref, o_ref,
                                *, m_true, slope, eps):
    """Single-block conv + training-mode BatchNorm + LeakyReLU (tiny layers)."""
    y = jnp.dot(p_ref[...], w_ref[...], preferred_element_type=jnp.float32)
    inv_m = jnp.float32(1.0 / m_true)
    s1 = jnp.sum(y, axis=0, keepdims=True)
    s2 = jnp.sum(y * y, axis=0, keepdims=True)
    mean = s1 * inv_m
    # E[x^2] - E[x]^2 on f32 accumulators of an O(1)-scale activation; see
    # review note on cancellation (acceptable here, avoids a third pass).
    var = jnp.maximum(s2 * inv_m - mean * mean, 0.0)
    scale = g_ref[...] * jax.lax.rsqrt(var + eps)
    shift = b_ref[...] - mean * scale
    z = y * scale + shift
    o_ref[...] = jnp.where(z >= 0, z, slope * z).astype(o_ref.dtype)


def _conv_stats_kernel(p_ref, w_ref, y_ref, stat_ref):
    """Pass A of the tiled BN path: matmul + per-channel s1/s2 accumulation.

    stat_ref is a (2, Cout) resident accumulator (same block for every grid
    step, M axis marked "arbitrary").  Zero-padded patch rows produce exactly
    zero matmul rows, so they do not perturb the sums.
    """
    @pl.when(pl.program_id(0) == 0)
    def _():
        stat_ref[...] = jnp.zeros_like(stat_ref)

    y = jnp.dot(p_ref[...], w_ref[...], preferred_element_type=jnp.float32)
    stat_ref[0:1, :] = stat_ref[0:1, :] + jnp.sum(y, axis=0, keepdims=True)
    stat_ref[1:2, :] = stat_ref[1:2, :] + jnp.sum(y * y, axis=0, keepdims=True)
    y_ref[...] = y.astype(y_ref.dtype)


def _bn_lrelu_apply_kernel(y_ref, stat_ref, g_ref, b_ref, o_ref,
                           *, m_true, slope, eps):
    """Pass B of the tiled BN path: scale/shift + LeakyReLU, tiled over M."""
    inv_m = jnp.float32(1.0 / m_true)
    mean = stat_ref[0:1, :] * inv_m
    var = jnp.maximum(stat_ref[1:2, :] * inv_m - mean * mean, 0.0)
    scale = g_ref[...] * jax.lax.rsqrt(var + eps)
    shift = b_ref[...] - mean * scale
    z = y_ref[...].astype(jnp.float32) * scale + shift
    o_ref[...] = jnp.where(z >= 0, z, slope * z).astype(o_ref.dtype)


# ---------------------------------------------------------------------------
# Pallas wrappers
# ---------------------------------------------------------------------------
def _pad_rows(a, rows):
    if a.shape[0] == rows:
        return a
    return jnp.pad(a, ((0, rows - a.shape[0]), (0, 0)))


def conv_act(patches, w2d, activation, slope=0.2, out_dtype=jnp.bfloat16):
    """patches (M, K) @ w2d (K, Cout) with a fused activation, tiled over M."""
    M, K = patches.shape
    _, Cout = w2d.shape
    if M >= 4096:
        tm = 2048
    elif M >= 2048:
        tm = 1024          # >= 2 grid steps -> both v7x TensorCores
    else:
        tm = M             # single full-extent block (always a legal block)
    Mp = _ceil_to(M, tm)
    patches = _pad_rows(patches, Mp)
    kernel = functools.partial(_conv_act_kernel, activation=activation, slope=slope)
    out = pl.pallas_call(
        kernel,
        out_shape=jax.ShapeDtypeStruct((Mp, Cout), out_dtype),
        grid=(Mp // tm,),
        in_specs=[
            pl.BlockSpec((tm, K), lambda i: (i, 0)),
            pl.BlockSpec((K, Cout), lambda i: (0, 0)),
        ],
        out_specs=pl.BlockSpec((tm, Cout), lambda i: (i, 0)),
        compiler_params=pltpu.CompilerParams(
            dimension_semantics=("parallel",),
            vmem_limit_bytes=_VMEM_LIMIT,
        ),
    )(patches, w2d)
    return out[:M] if Mp != M else out


def conv_bn_lrelu(patches, w2d, gamma, beta, slope=0.2, eps=1e-5):
    """Conv + BatchNorm (batch statistics) + LeakyReLU.

    Tiny layers -> single fused VMEM-resident block.  Larger layers -> tiled
    two-pass scheme (matmul+stats, then normalize+activation), which pipelines
    DMA, shards over TensorCores, and fits any VMEM budget.
    """
    M, K = patches.shape
    _, Cout = w2d.shape

    fused_bytes = M * K * 2 + M * Cout * (4 + 2) + K * Cout * 2
    if M < 512 and fused_bytes < _VMEM_LIMIT // 4:
        kernel = functools.partial(_conv_bn_lrelu_fused_kernel,
                                   m_true=float(M), slope=slope, eps=eps)
        return pl.pallas_call(
            kernel,
            out_shape=jax.ShapeDtypeStruct((M, Cout), jnp.bfloat16),
            grid=(1,),
            in_specs=[
                pl.BlockSpec((M, K), lambda i: (0, 0)),
                pl.BlockSpec((K, Cout), lambda i: (0, 0)),
                pl.BlockSpec((1, Cout), lambda i: (0, 0)),
                pl.BlockSpec((1, Cout), lambda i: (0, 0)),
            ],
            out_specs=pl.BlockSpec((M, Cout), lambda i: (0, 0)),
            compiler_params=pltpu.CompilerParams(
                dimension_semantics=("arbitrary",),
                vmem_limit_bytes=_VMEM_LIMIT,
            ),
        )(patches, w2d, gamma, beta)

    # ---- tiled two-pass path -------------------------------------------
    tm = 1024 if M >= 4096 else 256
    Mp = _ceil_to(M, tm)
    patches = _pad_rows(patches, Mp)   # zero rows keep the batch stats exact
    m_true = float(M)

    y, stats = pl.pallas_call(
        _conv_stats_kernel,
        out_shape=(jax.ShapeDtypeStruct((Mp, Cout), jnp.bfloat16),
                   jax.ShapeDtypeStruct((2, Cout), jnp.float32)),
        grid=(Mp // tm,),
        in_specs=[
            pl.BlockSpec((tm, K), lambda i: (i, 0)),
            pl.BlockSpec((K, Cout), lambda i: (0, 0)),
        ],
        out_specs=(pl.BlockSpec((tm, Cout), lambda i: (i, 0)),
                   pl.BlockSpec((2, Cout), lambda i: (0, 0))),
        compiler_params=pltpu.CompilerParams(
            dimension_semantics=("arbitrary",),   # stats block is revisited
            vmem_limit_bytes=_VMEM_LIMIT,
        ),
    )(patches, w2d)

    out = pl.pallas_call(
        functools.partial(_bn_lrelu_apply_kernel,
                          m_true=m_true, slope=slope, eps=eps),
        out_shape=jax.ShapeDtypeStruct((Mp, Cout), jnp.bfloat16),
        grid=(Mp // tm,),
        in_specs=[
            pl.BlockSpec((tm, Cout), lambda i: (i, 0)),
            pl.BlockSpec((2, Cout), lambda i: (0, 0)),
            pl.BlockSpec((1, Cout), lambda i: (0, 0)),
            pl.BlockSpec((1, Cout), lambda i: (0, 0)),
        ],
        out_specs=pl.BlockSpec((tm, Cout), lambda i: (i, 0)),
        compiler_params=pltpu.CompilerParams(
            dimension_semantics=("parallel",),
            vmem_limit_bytes=_VMEM_LIMIT,
        ),
    )(y, stats, gamma, beta)
    return out[:M] if Mp != M else out


# ---------------------------------------------------------------------------
# Plain-JAX glue: NHWC im2col and parameter preparation
# ---------------------------------------------------------------------------
def im2col_nhwc(x, k, stride, pad):
    """NHWC im2col: (N, H, W, C) -> (N*Ho*Wo, k*k*C), feature order (kh, kw, c)."""
    N, H, W, C = x.shape
    if pad:
        x = jnp.pad(x, ((0, 0), (pad, pad), (pad, pad), (0, 0)))
    Ho = (H + 2 * pad - k) // stride + 1
    Wo = (W + 2 * pad - k) // stride + 1
    cols = [
        x[:, di:di + stride * (Ho - 1) + 1:stride,
             dj:dj + stride * (Wo - 1) + 1:stride, :]
        for di in range(k) for dj in range(k)
    ]
    p = jnp.concatenate(cols, axis=-1)            # (N, Ho, Wo, k*k*C)
    return p.reshape(N * Ho * Wo, k * k * C), N, Ho, Wo


def _w2mat(w):
    """PyTorch conv weight (Cout, Cin, KH, KW) -> bf16 (KH*KW*Cin, Cout) matrix.

    Row order (kh, kw, cin) matches im2col_nhwc; no padding anywhere.
    """
    cout, cin, kh, kw = w.shape
    return (jnp.transpose(w, (2, 3, 1, 0))
            .reshape(kh * kw * cin, cout)
            .astype(jnp.bfloat16))


def _bn_vec(v):
    return v.reshape(1, -1).astype(jnp.float32)


def init_params(key, nc, ndf):
    ks = jax.random.split(key, 12)

    def conv_w(k, cout, cin):
        return 0.02 * jax.random.normal(k, (cout, cin, 4, 4), jnp.float32)

    return {
        "w1": conv_w(ks[0], ndf, nc),
        "w2": conv_w(ks[1], ndf * 2, ndf),
        "w3": conv_w(ks[2], ndf * 4, ndf * 2),
        "w4": conv_w(ks[3], ndf * 8, ndf * 4),
        "w5": conv_w(ks[4], 1, ndf * 8),
        "g2": 1.0 + 0.02 * jax.random.normal(ks[5], (ndf * 2,), jnp.float32),
        "b2": 0.02 * jax.random.normal(ks[6], (ndf * 2,), jnp.float32),
        "g3": 1.0 + 0.02 * jax.random.normal(ks[7], (ndf * 4,), jnp.float32),
        "b3": 0.02 * jax.random.normal(ks[8], (ndf * 4,), jnp.float32),
        "g4": 1.0 + 0.02 * jax.random.normal(ks[9], (ndf * 8,), jnp.float32),
        "b4": 0.02 * jax.random.normal(ks[10], (ndf * 8,), jnp.float32),
    }


# ---------------------------------------------------------------------------
# Forward pass (matches nn.Sequential in Discriminator.forward)
# ---------------------------------------------------------------------------
def discriminator_forward(x_nchw, params, slope=0.2, eps=1e-5):
    # Single layout change at the boundary; channels-last everywhere after.
    x = jnp.transpose(x_nchw, (0, 2, 3, 1)).astype(jnp.bfloat16)

    # Conv(nc -> ndf, 4, 2, 1) + LeakyReLU(0.2)
    cout = params["w1"].shape[0]
    p, N, Ho, Wo = im2col_nhwc(x, 4, 2, 1)
    y = conv_act(p, _w2mat(params["w1"]), "lrelu", slope)
    x = y.reshape(N, Ho, Wo, cout)

    # Three (Conv + BatchNorm(train-mode batch stats) + LeakyReLU) blocks
    for wk, gk, bk in (("w2", "g2", "b2"), ("w3", "g3", "b3"), ("w4", "g4", "b4")):
        w = params[wk]
        cout = w.shape[0]
        p, N, Ho, Wo = im2col_nhwc(x, 4, 2, 1)
        y = conv_bn_lrelu(p, _w2mat(w), _bn_vec(params[gk]), _bn_vec(params[bk]),
                          slope=slope, eps=eps)
        x = y.reshape(N, Ho, Wo, cout)

    # Conv(ndf*8 -> 1, 4, 1, 0) + Sigmoid
    p, N, Ho, Wo = im2col_nhwc(x, 4, 1, 0)
    y = conv_act(p, _w2mat(params["w5"]), "sigmoid", slope, out_dtype=jnp.float32)
    return y.reshape(N, Ho, Wo, 1).transpose(0, 3, 1, 2)   # (N, 1, 1, 1)


if __name__ == "__main__":
    # DCGAN discriminator expects 64x64 inputs so the final 4x4/stride-1 conv
    # yields a 1x1 map.  Keep channels small: nc=3, ndf=8, batch=2.
    nc, ndf, N, H = 3, 8, 2, 64
    key = jax.random.PRNGKey(0)
    k_param, k_x = jax.random.split(key)
    params = init_params(k_param, nc, ndf)
    x = jax.random.normal(k_x, (N, nc, H, H), jnp.float32)

    fwd = jax.jit(discriminator_forward)
    out = jax.block_until_ready(fwd(x, params))

    assert out.shape == (N, 1, 1, 1), out.shape
    assert bool(jnp.all(jnp.isfinite(out)))
    # exact tanh-based sigmoid -> output in [0, 1]
    assert bool(jnp.all((out >= -1e-6) & (out <= 1.0 + 1e-6)))
    print("KERNEL_OK")
</pallas_src>

<mosaic_0001>
module attributes {stable_mosaic.version = 11 : i64} {
  func.func @_conv_act_kernel(%arg0: i32, %arg1: memref<1024x48xbf16, #tpu.memory_space<vmem>>, %arg2: memref<48x8xbf16, #tpu.memory_space<vmem>>, %arg3: memref<1024x8xbf16, #tpu.memory_space<vmem>>) attributes {dimension_semantics = [#tpu.dimension_semantics<parallel>], iteration_bounds = array<i64: 2>, scalar_prefetch = 0 : i64, scratch_operands = 0 : i64, tpu.core_type = #tpu.core_type<tc>, window_params = [{transform_indices = @transform_0, window_bounds = array<i64: 1024, 48>}, {pipeline_mode = #tpu.pipeline_mode<synchronous>, transform_indices = @transform_1, window_bounds = array<i64: 48, 8>}, {transform_indices = @transform_2, window_bounds = array<i64: 1024, 8>}]} {
    %c0 = arith.constant 0 : index
    %c0_0 = arith.constant 0 : index
    %0 = vector.load %arg1[%c0, %c0_0] : memref<1024x48xbf16, #tpu.memory_space<vmem>>, vector<1024x48xbf16>
    %c0_1 = arith.constant 0 : index
    %c0_2 = arith.constant 0 : index
    %1 = vector.load %arg2[%c0_1, %c0_2] : memref<48x8xbf16, #tpu.memory_space<vmem>>, vector<48x8xbf16>
    %cst = arith.constant dense<0.000000e+00> : vector<1024x8xf32>
    %2 = tpu.matmul %0, %1, %cst {dimension_numbers = #tpu.dot_dimension_numbers<[1], [0], [0], [1], [0, 0, 1, 1], [], []>} : vector<1024x48xbf16>, vector<48x8xbf16>, vector<1024x8xf32> -> vector<1024x8xf32>
    %cst_3 = arith.constant 0.000000e+00 : f32
    %3 = vector.broadcast %cst_3 : f32 to vector<1024x8xf32>
    %4 = arith.cmpf oge, %2, %3 : vector<1024x8xf32>
    %cst_4 = arith.constant 2.000000e-01 : f32
    %5 = vector.broadcast %cst_4 : f32 to vector<1024x8xf32>
    %6 = arith.mulf %5, %2 : vector<1024x8xf32>
    %7 = arith.select %4, %2, %6 : vector<1024x8xi1>, vector<1024x8xf32>
    %8 = arith.truncf %7 : vector<1024x8xf32> to vector<1024x8xbf16>
    %c0_5 = arith.constant 0 : index
    %c0_6 = arith.constant 0 : index
    %9 = vector.load %arg3[%c0_5, %c0_6] : memref<1024x8xbf16, #tpu.memory_space<vmem>>, vector<1024x8xbf16>
    tpu.vector_store %arg3[%c0_5, %c0_6], %8 {strides = array<i32>} : memref<1024x8xbf16, #tpu.memory_space<vmem>>, vector<1024x8xbf16>,
    return
  }
  func.func @transform_0(%arg0: i32) -> (i32, i32) {
    %c0_i32 = arith.constant 0 : i32
    %c0_i32_0 = arith.constant 0 : i32
    return %arg0, %c0_i32 : i32, i32
  }
  func.func @transform_1(%arg0: i32) -> (i32, i32) {
    %c0_i32 = arith.constant 0 : i32
    %c0_i32_0 = arith.constant 0 : i32
    %c0_i32_1 = arith.constant 0 : i32
    return %c0_i32, %c0_i32_0 : i32, i32
  }
  func.func @transform_2(%arg0: i32) -> (i32, i32) {
    %c0_i32 = arith.constant 0 : i32
    %c0_i32_0 = arith.constant 0 : i32
    return %arg0, %c0_i32 : i32, i32
  }
}

module attributes {stable_mosaic.version = 11 : i64} {
  func.func @_conv_stats_kernel(%arg0: i32, %arg1: memref<256x128xbf16, #tpu.memory_space<vmem>>, %arg2: memref<128x16xbf16, #tpu.memory_space<vmem>>, %arg3: memref<256x16xbf16, #tpu.memory_space<vmem>>, %arg4: memref<2x16xf32, #tpu.memory_space<vmem>>) attributes {dimension_semantics = [#tpu.dimension_semantics<arbitrary>], iteration_bounds = array<i64: 2>, scalar_prefetch = 0 : i64, scratch_operands = 0 : i64, tpu.core_type = #tpu.core_type<tc>, window_params = [{transform_indices = @transform_0, window_bounds = array<i64: 256, 128>}, {pipeline_mode = #tpu.pipeline_mode<synchronous>, transform_indices = @transform_1, window_bounds = array<i64: 128, 16>}, {transform_indices = @transform_2, window_bounds = array<i64: 256, 16>}, {pipeline_mode = #tpu.pipeline_mode<synchronous>, transform_indices = @transform_3, window_bounds = array<i64: 2, 16>}]} {
    %c0_i32 = arith.constant 0 : i32
    %0 = arith.cmpi eq, %arg0, %c0_i32 : i32
    %1 = arith.extui %0 : i1 to i32
    %c0_i32_0 = arith.constant 0 : i32
    %2 = arith.cmpi ne, %1, %c0_i32_0 : i32
    scf.if %2 {
      %cst_15 = arith.constant 0.000000e+00 : f32
      %19 = vector.broadcast %cst_15 : f32 to vector<2x16xf32>
      %c0_16 = arith.constant 0 : index
      %c0_17 = arith.constant 0 : index
      %20 = vector.load %arg4[%c0_16, %c0_17] : memref<2x16xf32, #tpu.memory_space<vmem>>, vector<2x16xf32>
      tpu.vector_store %arg4[%c0_16, %c0_17], %19 {strides = array<i32>} : memref<2x16xf32, #tpu.memory_space<vmem>>, vector<2x16xf32>,
    } else {
    }
    %c0 = arith.constant 0 : index
    %c0_1 = arith.constant 0 : index
    %3 = vector.load %arg1[%c0, %c0_1] : memref<256x128xbf16, #tpu.memory_space<vmem>>, vector<256x128xbf16>
    %c0_2 = arith.constant 0 : index
    %c0_3 = arith.constant 0 : index
    %4 = vector.load %arg2[%c0_2, %c0_3] : memref<128x16xbf16, #tpu.memory_space<vmem>>, vector<128x16xbf16>
    %cst = arith.constant dense<0.000000e+00> : vector<256x16xf32>
    %5 = tpu.matmul %3, %4, %cst {dimension_numbers = #tpu.dot_dimension_numbers<[1], [0], [0], [1], [0, 0, 1, 1], [], []>} : vector<256x128xbf16>, vector<128x16xbf16>, vector<256x16xf32> -> vector<256x16xf32>
    %c0_4 = arith.constant 0 : index
    %c0_5 = arith.constant 0 : index
    %6 = vector.load %arg4[%c0_4, %c0_5] : memref<2x16xf32, #tpu.memory_space<vmem>>, vector<1x16xf32>
    %cst_6 = arith.constant dense<0.000000e+00> : vector<16xf32>
    %7 = vector.multi_reduction <add>, %5, %cst_6 [0] : vector<256x16xf32> to vector<16xf32>
    %8 = vector.shape_cast %7 : vector<16xf32> to vector<1x16xf32>
    %9 = arith.addf %6, %8 : vector<1x16xf32>
    %c0_7 = arith.constant 0 : index
    %c0_8 = arith.constant 0 : index
    %10 = vector.load %arg4[%c0_7, %c0_8] : memref<2x16xf32, #tpu.memory_space<vmem>>, vector<1x16xf32>
    tpu.vector_store %arg4[%c0_7, %c0_8], %9 {strides = array<i32>} : memref<2x16xf32, #tpu.memory_space<vmem>>, vector<1x16xf32>,
    %c1 = arith.constant 1 : index
    %c0_9 = arith.constant 0 : index
    %11 = vector.load %arg4[%c1, %c0_9] : memref<2x16xf32, #tpu.memory_space<vmem>>, vector<1x16xf32>
    %12 = arith.mulf %5, %5 : vector<256x16xf32>
    %cst_10 = arith.constant dense<0.000000e+00> : vector<16xf32>
    %13 = vector.multi_reduction <add>, %12, %cst_10 [0] : vector<256x16xf32> to vector<16xf32>
    %14 = vector.shape_cast %13 : vector<16xf32> to vector<1x16xf32>
    %15 = arith.addf %11, %14 : vector<1x16xf32>
    %c1_11 = arith.constant 1 : index
    %c0_12 = arith.constant 0 : index
    %16 = vector.load %arg4[%c1_11, %c0_12] : memref<2x16xf32, #tpu.memory_space<vmem>>, vector<1x16xf32>
    tpu.vector_store %arg4[%c1_11, %c0_12], %15 {strides = array<i32>} : memref<2x16xf32, #tpu.memory_space<vmem>>, vector<1x16xf32>,
    %17 = arith.truncf %5 : vector<256x16xf32> to vector<256x16xbf16>
    %c0_13 = arith.constant 0 : index
    %c0_14 = arith.constant 0 : index
    %18 = vector.load %arg3[%c0_13, %c0_14] : memref<256x16xbf16, #tpu.memory_space<vmem>>, vector<256x16xbf16>
    tpu.vector_store %arg3[%c0_13, %c0_14], %17 {strides = array<i32>} : memref<256x16xbf16, #tpu.memory_space<vmem>>, vector<256x16xbf16>,
    return
  }
  func.func @transform_0(%arg0: i32) -> (i32, i32) {
    %c0_i32 = arith.constant 0 : i32
    %c0_i32_0 = arith.constant 0 : i32
    return %arg0, %c0_i32 : i32, i32
  }
  func.func @transform_1(%arg0: i32) -> (i32, i32) {
    %c0_i32 = arith.constant 0 : i32
    %c0_i32_0 = arith.constant 0 : i32
    %c0_i32_1 = arith.constant 0 : i32
    return %c0_i32, %c0_i32_0 : i32, i32
  }
  func.func @transform_2(%arg0: i32) -> (i32, i32) {
    %c0_i32 = arith.constant 0 : i32
    %c0_i32_0 = arith.constant 0 : i32
    return %arg0, %c0_i32 : i32, i32
  }
  func.func @transform_3(%arg0: i32) -> (i32, i32) {
    %c0_i32 = arith.constant 0 : i32
    %c0_i32_0 = arith.constant 0 : i32
    %c0_i32_1 = arith.constant 0 : i32
    return %c0_i32, %c0_i32_0 : i32, i32
  }
}

module attributes {stable_mosaic.version = 11 : i64} {
  func.func @_bn_lrelu_apply_kernel(%arg0: i32, %arg1: memref<256x16xbf16, #tpu.memory_space<vmem>>, %arg2: memref<2x16xf32, #tpu.memory_space<vmem>>, %arg3: memref<1x16xf32, #tpu.memory_space<vmem>>, %arg4: memref<1x16xf32, #tpu.memory_space<vmem>>, %arg5: memref<256x16xbf16, #tpu.memory_space<vmem>>) attributes {dimension_semantics = [#tpu.dimension_semantics<parallel>], iteration_bounds = array<i64: 2>, scalar_prefetch = 0 : i64, scratch_operands = 0 : i64, tpu.core_type = #tpu.core_type<tc>, window_params = [{transform_indices = @transform_0, window_bounds = array<i64: 256, 16>}, {pipeline_mode = #tpu.pipeline_mode<synchronous>, transform_indices = @transform_1, window_bounds = array<i64: 2, 16>}, {pipeline_mode = #tpu.pipeline_mode<synchronous>, transform_indices = @transform_2, window_bounds = array<i64: 1, 16>}, {pipeline_mode = #tpu.pipeline_mode<synchronous>, transform_indices = @transform_3, window_bounds = array<i64: 1, 16>}, {transform_indices = @transform_4, window_bounds = array<i64: 256, 16>}]} {
    %c0 = arith.constant 0 : index
    %c0_0 = arith.constant 0 : index
    %0 = vector.load %arg2[%c0, %c0_0] : memref<2x16xf32, #tpu.memory_space<vmem>>, vector<1x16xf32>
    %cst = arith.constant 0.001953125 : f32
    %1 = vector.broadcast %cst : f32 to vector<1x16xf32>
    %2 = arith.mulf %0, %1 : vector<1x16xf32>
    %c1 = arith.constant 1 : index
    %c0_1 = arith.constant 0 : index
    %3 = vector.load %arg2[%c1, %c0_1] : memref<2x16xf32, #tpu.memory_space<vmem>>, vector<1x16xf32>
    %cst_2 = arith.constant 0.001953125 : f32
    %4 = vector.broadcast %cst_2 : f32 to vector<1x16xf32>
    %5 = arith.mulf %3, %4 : vector<1x16xf32>
    %6 = arith.mulf %2, %2 : vector<1x16xf32>
    %7 = arith.subf %5, %6 : vector<1x16xf32>
    %cst_3 = arith.constant 0.000000e+00 : f32
    %8 = vector.broadcast %cst_3 : f32 to vector<1x16xf32>
    %9 = arith.maximumf %7, %8 : vector<1x16xf32>
    %c0_4 = arith.constant 0 : index
    %c0_5 = arith.constant 0 : index
    %10 = vector.load %arg3[%c0_4, %c0_5] : memref<1x16xf32, #tpu.memory_space<vmem>>, vector<1x16xf32>
    %cst_6 = arith.constant 9.99999974E-6 : f32
    %11 = vector.broadcast %cst_6 : f32 to vector<1x16xf32>
    %12 = arith.addf %9, %11 : vector<1x16xf32>
    %13 = math.rsqrt %12 : vector<1x16xf32>
    %14 = arith.mulf %10, %13 : vector<1x16xf32>
    %c0_7 = arith.constant 0 : index
    %c0_8 = arith.constant 0 : index
    %15 = vector.load %arg4[%c0_7, %c0_8] : memref<1x16xf32, #tpu.memory_space<vmem>>, vector<1x16xf32>
    %16 = arith.mulf %2, %14 : vector<1x16xf32>
    %17 = arith.subf %15, %16 : vector<1x16xf32>
    %c0_9 = arith.constant 0 : index
    %c0_10 = arith.constant 0 : index
    %18 = vector.load %arg1[%c0_9, %c0_10] : memref<256x16xbf16, #tpu.memory_space<vmem>>, vector<256x16xbf16>
    %19 = arith.extf %18 : vector<256x16xbf16> to vector<256x16xf32>
    %20 = vector.broadcast %14 : vector<1x16xf32> to vector<256x16xf32>
    %21 = arith.mulf %19, %20 : vector<256x16xf32>
    %22 = vector.broadcast %17 : vector<1x16xf32> to vector<256x16xf32>
    %23 = arith.addf %21, %22 : vector<256x16xf32>
    %cst_11 = arith.constant 0.000000e+00 : f32
    %24 = vector.broadcast %cst_11 : f32 to vector<256x16xf32>
    %25 = arith.cmpf oge, %23, %24 : vector<256x16xf32>
    %cst_12 = arith.constant 2.000000e-01 : f32
    %26 = vector.broadcast %cst_12 : f32 to vector<256x16xf32>
    %27 = arith.mulf %26, %23 : vector<256x16xf32>
    %28 = arith.select %25, %23, %27 : vector<256x16xi1>, vector<256x16xf32>
    %29 = arith.truncf %28 : vector<256x16xf32> to vector<256x16xbf16>
    %c0_13 = arith.constant 0 : index
    %c0_14 = arith.constant 0 : index
    %30 = vector.load %arg5[%c0_13, %c0_14] : memref<256x16xbf16, #tpu.memory_space<vmem>>, vector<256x16xbf16>
    tpu.vector_store %arg5[%c0_13, %c0_14], %29 {strides = array<i32>} : memref<256x16xbf16, #tpu.memory_space<vmem>>, vector<256x16xbf16>,
    return
  }
  func.func @transform_0(%arg0: i32) -> (i32, i32) {
    %c0_i32 = arith.constant 0 : i32
    %c0_i32_0 = arith.constant 0 : i32
    return %arg0, %c0_i32 : i32, i32
  }
  func.func @transform_1(%arg0: i32) -> (i32, i32) {
    %c0_i32 = arith.constant 0 : i32
    %c0_i32_0 = arith.constant 0 : i32
    %c0_i32_1 = arith.constant 0 : i32
    return %c0_i32, %c0_i32_0 : i32, i32
  }
  func.func @transform_2(%arg0: i32) -> (i32, i32) {
    %c0_i32 = arith.constant 0 : i32
    %c0_i32_0 = arith.constant 0 : i32
    %c0_i32_1 = arith.constant 0 : i32
    return %c0_i32, %c0_i32_0 : i32, i32
  }
  func.func @transform_3(%arg0: i32) -> (i32, i32) {
    %c0_i32 = arith.constant 0 : i32
    %c0_i32_0 = arith.constant 0 : i32
    %c0_i32_1 = arith.constant 0 : i32
    return %c0_i32, %c0_i32_0 : i32, i32
  }
  func.func @transform_4(%arg0: i32) -> (i32, i32) {
    %c0_i32 = arith.constant 0 : i32
    %c0_i32_0 = arith.constant 0 : i32
    return %arg0, %c0_i32 : i32, i32
  }
}

module attributes {stable_mosaic.version = 11 : i64} {
  func.func @_conv_bn_lrelu_fused_kernel(%arg0: i32, %arg1: memref<128x256xbf16, #tpu.memory_space<vmem>>, %arg2: memref<256x32xbf16, #tpu.memory_space<vmem>>, %arg3: memref<1x32xf32, #tpu.memory_space<vmem>>, %arg4: memref<1x32xf32, #tpu.memory_space<vmem>>, %arg5: memref<128x32xbf16, #tpu.memory_space<vmem>>) attributes {dimension_semantics = [#tpu.dimension_semantics<arbitrary>], iteration_bounds = array<i64: 1>, scalar_prefetch = 0 : i64, scratch_operands = 0 : i64, tpu.core_type = #tpu.core_type<tc>, window_params = [{pipeline_mode = #tpu.pipeline_mode<synchronous>, transform_indices = @transform_0, window_bounds = array<i64: 128, 256>}, {pipeline_mode = #tpu.pipeline_mode<synchronous>, transform_indices = @transform_1, window_bounds = array<i64: 256, 32>}, {pipeline_mode = #tpu.pipeline_mode<synchronous>, transform_indices = @transform_2, window_bounds = array<i64: 1, 32>}, {pipeline_mode = #tpu.pipeline_mode<synchronous>, transform_indices = @transform_3, window_bounds = array<i64: 1, 32>}, {pipeline_mode = #tpu.pipeline_mode<synchronous>, transform_indices = @transform_4, window_bounds = array<i64: 128, 32>}]} {
    %c0 = arith.constant 0 : index
    %c0_0 = arith.constant 0 : index
    %0 = vector.load %arg1[%c0, %c0_0] : memref<128x256xbf16, #tpu.memory_space<vmem>>, vector<128x256xbf16>
    %c0_1 = arith.constant 0 : index
    %c0_2 = arith.constant 0 : index
    %1 = vector.load %arg2[%c0_1, %c0_2] : memref<256x32xbf16, #tpu.memory_space<vmem>>, vector<256x32xbf16>
    %cst = arith.constant dense<0.000000e+00> : vector<128x32xf32>
    %2 = tpu.matmul %0, %1, %cst {dimension_numbers = #tpu.dot_dimension_numbers<[1], [0], [0], [1], [0, 0, 1, 1], [], []>} : vector<128x256xbf16>, vector<256x32xbf16>, vector<128x32xf32> -> vector<128x32xf32>
    %cst_3 = arith.constant dense<0.000000e+00> : vector<32xf32>
    %3 = vector.multi_reduction <add>, %2, %cst_3 [0] : vector<128x32xf32> to vector<32xf32>
    %4 = vector.shape_cast %3 : vector<32xf32> to vector<1x32xf32>
    %5 = arith.mulf %2, %2 : vector<128x32xf32>
    %cst_4 = arith.constant dense<0.000000e+00> : vector<32xf32>
    %6 = vector.multi_reduction <add>, %5, %cst_4 [0] : vector<128x32xf32> to vector<32xf32>
    %7 = vector.shape_cast %6 : vector<32xf32> to vector<1x32xf32>
    %cst_5 = arith.constant 7.812500e-03 : f32
    %8 = vector.broadcast %cst_5 : f32 to vector<1x32xf32>
    %9 = arith.mulf %4, %8 : vector<1x32xf32>
    %cst_6 = arith.constant 7.812500e-03 : f32
    %10 = vector.broadcast %cst_6 : f32 to vector<1x32xf32>
    %11 = arith.mulf %7, %10 : vector<1x32xf32>
    %12 = arith.mulf %9, %9 : vector<1x32xf32>
    %13 = arith.subf %11, %12 : vector<1x32xf32>
    %cst_7 = arith.constant 0.000000e+00 : f32
    %14 = vector.broadcast %cst_7 : f32 to vector<1x32xf32>
    %15 = arith.maximumf %13, %14 : vector<1x32xf32>
    %c0_8 = arith.constant 0 : index
    %c0_9 = arith.constant 0 : index
    %16 = vector.load %arg3[%c0_8, %c0_9] : memref<1x32xf32, #tpu.memory_space<vmem>>, vector<1x32xf32>
    %cst_10 = arith.constant 9.99999974E-6 : f32
    %17 = vector.broadcast %cst_10 : f32 to vector<1x32xf32>
    %18 = arith.addf %15, %17 : vector<1x32xf32>
    %19 = math.rsqrt %18 : vector<1x32xf32>
    %20 = arith.mulf %16, %19 : vector<1x32xf32>
    %c0_11 = arith.constant 0 : index
    %c0_12 = arith.constant 0 : index
    %21 = vector.load %arg4[%c0_11, %c0_12] : memref<1x32xf32, #tpu.memory_space<vmem>>, vector<1x32xf32>
    %22 = arith.mulf %9, %20 : vector<1x32xf32>
    %23 = arith.subf %21, %22 : vector<1x32xf32>
    %24 = vector.broadcast %20 : vector<1x32xf32> to vector<128x32xf32>
    %25 = arith.mulf %2, %24 : vector<128x32xf32>
    %26 = vector.broadcast %23 : vector<1x32xf32> to vector<128x32xf32>
    %27 = arith.addf %25, %26 : vector<128x32xf32>
    %cst_13 = arith.constant 0.000000e+00 : f32
    %28 = vector.broadcast %cst_13 : f32 to vector<128x32xf32>
    %29 = arith.cmpf oge, %27, %28 : vector<128x32xf32>
    %cst_14 = arith.constant 2.000000e-01 : f32
    %30 = vector.broadcast %cst_14 : f32 to vector<128x32xf32>
    %31 = arith.mulf %30, %27 : vector<128x32xf32>
    %32 = arith.select %29, %27, %31 : vector<128x32xi1>, vector<128x32xf32>
    %33 = arith.truncf %32 : vector<128x32xf32> to vector<128x32xbf16>
    %c0_15 = arith.constant 0 : index
    %c0_16 = arith.constant 0 : index
    %34 = vector.load %arg5[%c0_15, %c0_16] : memref<128x32xbf16, #tpu.memory_space<vmem>>, vector<128x32xbf16>
    tpu.vector_store %arg5[%c0_15, %c0_16], %33 {strides = array<i32>} : memref<128x32xbf16, #tpu.memory_space<vmem>>, vector<128x32xbf16>,
    return
  }
  func.func @transform_0(%arg0: i32) -> (i32, i32) {
    %c0_i32 = arith.constant 0 : i32
    %c0_i32_0 = arith.constant 0 : i32
    %c0_i32_1 = arith.constant 0 : i32
    return %c0_i32, %c0_i32_0 : i32, i32
  }
  func.func @transform_1(%arg0: i32) -> (i32, i32) {
    %c0_i32 = arith.constant 0 : i32
    %c0_i32_0 = arith.constant 0 : i32
    %c0_i32_1 = arith.constant 0 : i32
    return %c0_i32, %c0_i32_0 : i32, i32
  }
  func.func @transform_2(%arg0: i32) -> (i32, i32) {
    %c0_i32 = arith.constant 0 : i32
    %c0_i32_0 = arith.constant 0 : i32
    %c0_i32_1 = arith.constant 0 : i32
    return %c0_i32, %c0_i32_0 : i32, i32
  }
  func.func @transform_3(%arg0: i32) -> (i32, i32) {
    %c0_i32 = arith.constant 0 : i32
    %c0_i32_0 = arith.constant 0 : i32
    %c0_i32_1 = arith.constant 0 : i32
    return %c0_i32, %c0_i32_0 : i32, i32
  }
  func.func @transform_4(%arg0: i32) -> (i32, i32) {
    %c0_i32 = arith.constant 0 : i32
    %c0_i32_0 = arith.constant 0 : i32
    %c0_i32_1 = arith.constant 0 : i32
    return %c0_i32, %c0_i32_0 : i32, i32
  }
}

module attributes {stable_mosaic.version = 11 : i64} {
  func.func @_conv_bn_lrelu_fused_kernel(%arg0: i32, %arg1: memref<32x512xbf16, #tpu.memory_space<vmem>>, %arg2: memref<512x64xbf16, #tpu.memory_space<vmem>>, %arg3: memref<1x64xf32, #tpu.memory_space<vmem>>, %arg4: memref<1x64xf32, #tpu.memory_space<vmem>>, %arg5: memref<32x64xbf16, #tpu.memory_space<vmem>>) attributes {dimension_semantics = [#tpu.dimension_semantics<arbitrary>], iteration_bounds = array<i64: 1>, scalar_prefetch = 0 : i64, scratch_operands = 0 : i64, tpu.core_type = #tpu.core_type<tc>, window_params = [{pipeline_mode = #tpu.pipeline_mode<synchronous>, transform_indices = @transform_0, window_bounds = array<i64: 32, 512>}, {pipeline_mode = #tpu.pipeline_mode<synchronous>, transform_indices = @transform_1, window_bounds = array<i64: 512, 64>}, {pipeline_mode = #tpu.pipeline_mode<synchronous>, transform_indices = @transform_2, window_bounds = array<i64: 1, 64>}, {pipeline_mode = #tpu.pipeline_mode<synchronous>, transform_indices = @transform_3, window_bounds = array<i64: 1, 64>}, {pipeline_mode = #tpu.pipeline_mode<synchronous>, transform_indices = @transform_4, window_bounds = array<i64: 32, 64>}]} {
    %c0 = arith.constant 0 : index
    %c0_0 = arith.constant 0 : index
    %0 = vector.load %arg1[%c0, %c0_0] : memref<32x512xbf16, #tpu.memory_space<vmem>>, vector<32x512xbf16>
    %c0_1 = arith.constant 0 : index
    %c0_2 = arith.constant 0 : index
    %1 = vector.load %arg2[%c0_1, %c0_2] : memref<512x64xbf16, #tpu.memory_space<vmem>>, vector<512x64xbf16>
    %cst = arith.constant dense<0.000000e+00> : vector<32x64xf32>
    %2 = tpu.matmul %0, %1, %cst {dimension_numbers = #tpu.dot_dimension_numbers<[1], [0], [0], [1], [0, 0, 1, 1], [], []>} : vector<32x512xbf16>, vector<512x64xbf16>, vector<32x64xf32> -> vector<32x64xf32>
    %cst_3 = arith.constant dense<0.000000e+00> : vector<64xf32>
    %3 = vector.multi_reduction <add>, %2, %cst_3 [0] : vector<32x64xf32> to vector<64xf32>
    %4 = vector.shape_cast %3 : vector<64xf32> to vector<1x64xf32>
    %5 = arith.mulf %2, %2 : vector<32x64xf32>
    %cst_4 = arith.constant dense<0.000000e+00> : vector<64xf32>
    %6 = vector.multi_reduction <add>, %5, %cst_4 [0] : vector<32x64xf32> to vector<64xf32>
    %7 = vector.shape_cast %6 : vector<64xf32> to vector<1x64xf32>
    %cst_5 = arith.constant 3.125000e-02 : f32
    %8 = vector.broadcast %cst_5 : f32 to vector<1x64xf32>
    %9 = arith.mulf %4, %8 : vector<1x64xf32>
    %cst_6 = arith.constant 3.125000e-02 : f32
    %10 = vector.broadcast %cst_6 : f32 to vector<1x64xf32>
    %11 = arith.mulf %7, %10 : vector<1x64xf32>
    %12 = arith.mulf %9, %9 : vector<1x64xf32>
    %13 = arith.subf %11, %12 : vector<1x64xf32>
    %cst_7 = arith.constant 0.000000e+00 : f32
    %14 = vector.broadcast %cst_7 : f32 to vector<1x64xf32>
    %15 = arith.maximumf %13, %14 : vector<1x64xf32>
    %c0_8 = arith.constant 0 : index
    %c0_9 = arith.constant 0 : index
    %16 = vector.load %arg3[%c0_8, %c0_9] : memref<1x64xf32, #tpu.memory_space<vmem>>, vector<1x64xf32>
    %cst_10 = arith.constant 9.99999974E-6 : f32
    %17 = vector.broadcast %cst_10 : f32 to vector<1x64xf32>
    %18 = arith.addf %15, %17 : vector<1x64xf32>
    %19 = math.rsqrt %18 : vector<1x64xf32>
    %20 = arith.mulf %16, %19 : vector<1x64xf32>
    %c0_11 = arith.constant 0 : index
    %c0_12 = arith.constant 0 : index
    %21 = vector.load %arg4[%c0_11, %c0_12] : memref<1x64xf32, #tpu.memory_space<vmem>>, vector<1x64xf32>
    %22 = arith.mulf %9, %20 : vector<1x64xf32>
    %23 = arith.subf %21, %22 : vector<1x64xf32>
    %24 = vector.broadcast %20 : vector<1x64xf32> to vector<32x64xf32>
    %25 = arith.mulf %2, %24 : vector<32x64xf32>
    %26 = vector.broadcast %23 : vector<1x64xf32> to vector<32x64xf32>
    %27 = arith.addf %25, %26 : vector<32x64xf32>
    %cst_13 = arith.constant 0.000000e+00 : f32
    %28 = vector.broadcast %cst_13 : f32 to vector<32x64xf32>
    %29 = arith.cmpf oge, %27, %28 : vector<32x64xf32>
    %cst_14 = arith.constant 2.000000e-01 : f32
    %30 = vector.broadcast %cst_14 : f32 to vector<32x64xf32>
    %31 = arith.mulf %30, %27 : vector<32x64xf32>
    %32 = arith.select %29, %27, %31 : vector<32x64xi1>, vector<32x64xf32>
    %33 = arith.truncf %32 : vector<32x64xf32> to vector<32x64xbf16>
    %c0_15 = arith.constant 0 : index
    %c0_16 = arith.constant 0 : index
    %34 = vector.load %arg5[%c0_15, %c0_16] : memref<32x64xbf16, #tpu.memory_space<vmem>>, vector<32x64xbf16>
    tpu.vector_store %arg5[%c0_15, %c0_16], %33 {strides = array<i32>} : memref<32x64xbf16, #tpu.memory_space<vmem>>, vector<32x64xbf16>,
    return
  }
  func.func @transform_0(%arg0: i32) -> (i32, i32) {
    %c0_i32 = arith.constant 0 : i32
    %c0_i32_0 = arith.constant 0 : i32
    %c0_i32_1 = arith.constant 0 : i32
    return %c0_i32, %c0_i32_0 : i32, i32
  }
  func.func @transform_1(%arg0: i32) -> (i32, i32) {
    %c0_i32 = arith.constant 0 : i32
    %c0_i32_0 = arith.constant 0 : i32
    %c0_i32_1 = arith.constant 0 : i32
    return %c0_i32, %c0_i32_0 : i32, i32
  }
  func.func @transform_2(%arg0: i32) -> (i32, i32) {
    %c0_i32 = arith.constant 0 : i32
    %c0_i32_0 = arith.constant 0 : i32
    %c0_i32_1 = arith.constant 0 : i32
    return %c0_i32, %c0_i32_0 : i32, i32
  }
  func.func @transform_3(%arg0: i32) -> (i32, i32) {
    %c0_i32 = arith.constant 0 : i32
    %c0_i32_0 = arith.constant 0 : i32
    %c0_i32_1 = arith.constant 0 : i32
    return %c0_i32, %c0_i32_0 : i32, i32
  }
  func.func @transform_4(%arg0: i32) -> (i32, i32) {
    %c0_i32 = arith.constant 0 : i32
    %c0_i32_0 = arith.constant 0 : i32
    %c0_i32_1 = arith.constant 0 : i32
    return %c0_i32, %c0_i32_0 : i32, i32
  }
}

module attributes {stable_mosaic.version = 11 : i64} {
  func.func @_conv_act_kernel(%arg0: i32, %arg1: memref<2x1024xbf16, #tpu.memory_space<vmem>>, %arg2: memref<1024x1xbf16, #tpu.memory_space<vmem>>, %arg3: memref<2x1xf32, #tpu.memory_space<vmem>>) attributes {dimension_semantics = [#tpu.dimension_semantics<parallel>], iteration_bounds = array<i64: 1>, scalar_prefetch = 0 : i64, scratch_operands = 0 : i64, tpu.core_type = #tpu.core_type<tc>, window_params = [{transform_indices = @transform_0, window_bounds = array<i64: 2, 1024>}, {pipeline_mode = #tpu.pipeline_mode<synchronous>, transform_indices = @transform_1, window_bounds = array<i64: 1024, 1>}, {transform_indices = @transform_2, window_bounds = array<i64: 2, 1>}]} {
    %c0 = arith.constant 0 : index
    %c0_0 = arith.constant 0 : index
    %0 = vector.load %arg1[%c0, %c0_0] : memref<2x1024xbf16, #tpu.memory_space<vmem>>, vector<2x1024xbf16>
    %c0_1 = arith.constant 0 : index
    %c0_2 = arith.constant 0 : index
    %1 = vector.load %arg2[%c0_1, %c0_2] : memref<1024x1xbf16, #tpu.memory_space<vmem>>, vector<1024x1xbf16>
    %cst = arith.constant dense<0.000000e+00> : vector<2x1xf32>
    %2 = tpu.matmul %0, %1, %cst {dimension_numbers = #tpu.dot_dimension_numbers<[1], [0], [0], [1], [0, 0, 1, 1], [], []>} : vector<2x1024xbf16>, vector<1024x1xbf16>, vector<2x1xf32> -> vector<2x1xf32>
    %cst_3 = arith.constant 5.000000e-01 : f32
    %3 = vector.broadcast %cst_3 : f32 to vector<2x1xf32>
    %4 = arith.mulf %3, %2 : vector<2x1xf32>
    %5 = math.tanh %4 : vector<2x1xf32>
    %cst_4 = arith.constant 1.000000e+00 : f32
    %6 = vector.broadcast %cst_4 : f32 to vector<2x1xf32>
    %7 = arith.addf %5, %6 : vector<2x1xf32>
    %cst_5 = arith.constant 5.000000e-01 : f32
    %8 = vector.broadcast %cst_5 : f32 to vector<2x1xf32>
    %9 = arith.mulf %8, %7 : vector<2x1xf32>
    %c0_6 = arith.constant 0 : index
    %c0_7 = arith.constant 0 : index
    %10 = vector.load %arg3[%c0_6, %c0_7] : memref<2x1xf32, #tpu.memory_space<vmem>>, vector<2x1xf32>
    tpu.vector_store %arg3[%c0_6, %c0_7], %9 {strides = array<i32>} : memref<2x1xf32, #tpu.memory_space<vmem>>, vector<2x1xf32>,
    return
  }
  func.func @transform_0(%arg0: i32) -> (i32, i32) {
    %c0_i32 = arith.constant 0 : i32
    %c0_i32_0 = arith.constant 0 : i32
    return %arg0, %c0_i32 : i32, i32
  }
  func.func @transform_1(%arg0: i32) -> (i32, i32) {
    %c0_i32 = arith.constant 0 : i32
    %c0_i32_0 = arith.constant 0 : i32
    %c0_i32_1 = arith.constant 0 : i32
    return %c0_i32, %c0_i32_0 : i32, i32
  }
  func.func @transform_2(%arg0: i32) -> (i32, i32) {
    %c0_i32 = arith.constant 0 : i32
    %c0_i32_0 = arith.constant 0 : i32
    return %arg0, %c0_i32 : i32, i32
  }
}

</mosaic_0001>

<llo_original>
// kernel: discriminator_forward.6
$region0: #{discriminator_forward.6}
  #allocation0 [shape = 'u32[]', space=smem, size = 0x4, offset = 0x4, fixed_abs, tag = 'smem constant byte address 0x4 - core index']
  #allocation1 [shape = 'u32[144,128]{1,0:T(1,128)}', space=vmem, size = 0x12000, scoped, tag = 'internal scratch']
  %s0 = inlined_call_operand.vmem [shape: bf16[2048,48], index: 0, kind: input, shape index: {}]
  %s1 = inlined_call_operand.vmem [shape: bf16[48,8], index: 1, kind: input, shape index: {}]
  %s2 = inlined_call_operand.vmem [shape: bf16[2048,8], index: 2, kind: output, shape index: {}]
  %s3 = sld [smem:[#allocation0]]
  $region41: #{discriminator_forward.6} parent=0
    _
  %s5 = ssub.s32 1, %s3
  %s6 = scalar_select 0, %s5, %s3
  loop: start=0, step=1, limit=4
  $region2: #{discriminator_forward.6} parent=0 // loop_pre_header
    _
  $region3: #{discriminator_forward.6} parent=0 // loop_header
    %s8 = sphi 0, %s12
    %p9 = scmp.ge.s32.totalorder %s8, 4
    %s18 = sphi 0, %s20
    %s21 = sphi 0, %s18
    %s22 = sphi 0, %s21
    %s38 = sphi 0, %s22
    %s42 = sphi 0, %s42
    %s44 = sphi 0, %s42
    %s45 = sphi 0, %s44
    %s59 = sphi 0, %s45
    %s65 = sphi 0, %s67
    %s68 = sphi 0, %s65
    %s69 = sphi 0, %s68
    %s85 = sphi 0, %s69
  $region4: #{discriminator_forward.6} parent=0 // loop_header_branch
    %11 = sbr.rel (%p9) target = $region8
  $region5: #{discriminator_forward.6} parent=0 // loop_body
    %s13 = ssub.s32 %s8, 1
    %s14 = ssub.s32 %s8, 2
    %s15 = sadd.s32 %s8, 1
    %s16 = ssub.s32 %s8, %s15
    %p17 = scmp.eq.s32.totalorder %s16, 0
    %s19 = sadd.s32 %s18, 1
    %s20 = scalar_select %p17, %s18, %s19
    %p23 = pneg %p17
    %p24 = scmp.eq.s32.totalorder %s8, 1
    %p25 = por %p23, %p24
    %p26 = scmp.ne.s32.totalorder %s18, %s21
    %p27 = scmp.eq.s32.totalorder %s8, 0
    %p28 = por %p26, %p27
    %p29 = scmp.ne.s32.totalorder %s18, %s21
    %p30 = scmp.eq.s32.totalorder %s13, 1
    %p31 = por %p29, %p30
    %p32 = scmp.ne.s32.totalorder %s21, %s22
    %p33 = scmp.eq.s32.totalorder %s13, 0
    %p34 = por %p32, %p33
    %p35 = scmp.ne.s32.totalorder %s21, %s22
    %p36 = scmp.eq.s32.totalorder %s14, 1
    %p37 = por %p35, %p36
    %p39 = scmp.ne.s32.totalorder %s22, %s38
    %p40 = scmp.eq.s32.totalorder %s14, 0
    %p41 = por %p39, %p40
    %s43 = sadd.s32 %s42, 1
    %p46 = scmp.eq.s32.totalorder %s8, 1
    %p47 = scmp.ne.s32.totalorder %s42, %s44
    %p48 = scmp.eq.s32.totalorder %s8, 0
    %p49 = por %p47, %p48
    %p50 = scmp.ne.s32.totalorder %s42, %s44
    %p51 = scmp.eq.s32.totalorder %s13, 1
    %p52 = por %p50, %p51
    %p53 = scmp.ne.s32.totalorder %s44, %s45
    %p54 = scmp.eq.s32.totalorder %s13, 0
    %p55 = por %p53, %p54
    %p56 = scmp.ne.s32.totalorder %s44, %s45
    %p57 = scmp.eq.s32.totalorder %s14, 1
    %p58 = por %p56, %p57
    %p60 = scmp.ne.s32.totalorder %s45, %s59
    %p61 = scmp.eq.s32.totalorder %s14, 0
    %p62 = por %p60, %p61
    %s63 = ssub.s32 %s8, %s15
    %p64 = scmp.eq.s32.totalorder %s63, 0
    %s66 = sadd.s32 %s65, 1
    %s67 = scalar_select %p64, %s65, %s66
    %p70 = pneg %p64
    %p71 = scmp.eq.s32.totalorder %s8, 1
    %p72 = por %p70, %p71
    %p73 = scmp.ne.s32.totalorder %s65, %s68
    %p74 = scmp.eq.s32.totalorder %s8, 0
    %p75 = por %p73, %p74
    %p76 = scmp.ne.s32.totalorder %s65, %s68
    %p77 = scmp.eq.s32.totalorder %s13, 1
    %p78 = por %p76, %p77
    %p79 = scmp.ne.s32.totalorder %s68, %s69
    %p80 = scmp.eq.s32.totalorder %s13, 0
    %p81 = por %p79, %p80
    %p82 = scmp.ne.s32.totalorder %s68, %s69
    %p83 = scmp.eq.s32.totalorder %s14, 1
    %p84 = por %p82, %p83
    %p86 = scmp.ne.s32.totalorder %s69, %s85
    %p87 = scmp.eq.s32.totalorder %s14, 0
    %p88 = por %p86, %p87
    %p89 = scmp.le.s32.totalorder 1, %s8
    %p90 = scmp.lt.s32.totalorder %s8, 3
    %p91 = pnand %p89, %p90
    %p92 = pneg %p91
    // Predicated region
    $region9: #{discriminator_forward.6} parent=5 // pred_check
      _
    $region10: #{discriminator_forward.6} parent=5 // pred_check_branch
      %94 = sbr.rel (%p91) target = $region12
    $region11: #{discriminator_forward.6} parent=5 // pred_region
      %s95 = ssub.s32 %s8, 1
      // Predicated region
      $region13: #{discriminator_forward.6} parent=11 // pred_check
        %p96 = pneg %p55
      $region14: #{discriminator_forward.6} parent=11 // pred_check_branch
        %98 = sbr.rel (%p96) target = $region16
      $region15: #{discriminator_forward.6} parent=11 // pred_region
        _
      $region16: #{discriminator_forward.6} parent=11 // pred_fallthru
        _
    $region12: #{discriminator_forward.6} parent=5 // pred_fallthru
      _
    %p99 = scmp.lt.s32.totalorder %s8, 2
    // Predicated region
    $region17: #{discriminator_forward.6} parent=5 // pred_check
      %p100 = pneg %p99
    $region18: #{discriminator_forward.6} parent=5 // pred_check_branch
      %102 = sbr.rel (%p100) target = $region20
    $region19: #{discriminator_forward.6} parent=5 // pred_region
      // Predicated region
      $region21: #{discriminator_forward.6} parent=19 // pred_check
        %p103 = pneg %p28
      $region22: #{discriminator_forward.6} parent=19 // pred_check_branch
        %105 = sbr.rel (%p103) target = $region24
      $region23: #{discriminator_forward.6} parent=19 // pred_region
        %s106 = smul.u32 128, %s8
        %p107 = scmp.lt.s32.totalorder %s106, 255
        %s108 = scalar_select %p107, %s106, 255
        %s109 = smul.addr %s108, 4
        %s110 = scalar_lea.vmem %s0, %s109
        %s111 = smul.u32 128, %s8
      $region24: #{discriminator_forward.6} parent=19 // pred_fallthru
        _
    $region20: #{discriminator_forward.6} parent=5 // pred_fallthru
      _
    %p112 = scmp.le.s32.totalorder 1, %s8
    %p113 = scmp.lt.s32.totalorder %s8, 3
    %p114 = pnand %p112, %p113
    %p115 = pneg %p114
    // Predicated region
    $region25: #{discriminator_forward.6} parent=5 // pred_check
      _
    $region26: #{discriminator_forward.6} parent=5 // pred_check_branch
      %117 = sbr.rel (%p114) target = $region28
    $region27: #{discriminator_forward.6} parent=5 // pred_region
      %s118 = ssub.s32 %s8, 1
      %s119 = smul.u32 128, %s13
      %p120 = scmp.lt.s32.totalorder %s119, 255
      %s121 = scalar_select %p120, %s119, 255
      %s122 = smul.addr %s121, 4
      %s123 = scalar_lea.vmem %s0, %s122
      %p124 = pneg %p34
      %p125 = pneg %p31
      %p126 = pneg %p55
      %p127 = pneg %p52
      %p128 = pneg %p81
      %p129 = pneg %p78
      %s130 = smul.u32 128, %s13
      %p131 = scmp.lt.s32.totalorder %s130, 255
      %s132 = scalar_select %p131, %s130, 255
      %s133 = smul.addr %s132, 4
      %s134 = scalar_lea.vmem %s2, %s133
      %s135 = smul.u32 128, %s13
      %p136 = scmp.lt.s32.totalorder %s135, 255
      %s137 = scalar_select %p136, %s135, 255
      %s138 = smul.addr %s137, 4
      %s139 = scalar_lea.vmem %s0, %s138
      %s140 = smul.u32 128, %s13
      %s141 = smul.u32 128, %s13
      %p142 = scmp.lt.s32.totalorder %s141, 255
      %s143 = scalar_select %p142, %s141, 255
      %s144 = smul.addr %s143, 4
      %s145 = scalar_lea.vmem %s2, %s144
      %s146 = smul.u32 128, %s13
      %v148 = vld [vmem:[%s139] sm:$0xf]
      %v149 = vld [vmem:[%s139 + $0x4] sm:$0xf]
      %v150 = vld [vmem:[%s139 + $0x8] sm:$0xf]
      %v151 = vld [vmem:[%s139 + $0xc] sm:$0xf]
      %v152 = vld [vmem:[%s139 + $0x10] sm:$0xf]
      %v153 = vld [vmem:[%s139 + $0x14] sm:$0xf]
      %v154 = vld [vmem:[%s139 + $0x18] sm:$0xf]
      %v155 = vld [vmem:[%s139 + $0x1c] sm:$0xf]
      %v156 = vld [vmem:[%s139 + $0x20] sm:$0xf]
      %v157 = vld [vmem:[%s139 + $0x24] sm:$0xf]
      %v158 = vld [vmem:[%s139 + $0x28] sm:$0xf]
      %v159 = vld [vmem:[%s139 + $0x2c] sm:$0xf]
      %v160 = vld [vmem:[%s139 + $0x30] sm:$0xf]
      %v161 = vld [vmem:[%s139 + $0x34] sm:$0xf]
      %v162 = vld [vmem:[%s139 + $0x38] sm:$0xf]
      %v163 = vld [vmem:[%s139 + $0x3c] sm:$0xf]
      %v164 = vld [vmem:[%s139 + $0x40] sm:$0xf]
      %v165 = vld [vmem:[%s139 + $0x44] sm:$0xf]
      %v166 = vld [vmem:[%s139 + $0x48] sm:$0xf]
      %v167 = vld [vmem:[%s139 + $0x4c] sm:$0xf]
      %v168 = vld [vmem:[%s139 + $0x50] sm:$0xf]
      %v169 = vld [vmem:[%s139 + $0x54] sm:$0xf]
      %v170 = vld [vmem:[%s139 + $0x58] sm:$0xf]
      %v171 = vld [vmem:[%s139 + $0x5c] sm:$0xf]
      %v172 = vld [vmem:[%s139 + $0x60] sm:$0xf]
      %v173 = vld [vmem:[%s139 + $0x64] sm:$0xf]
      %v174 = vld [vmem:[%s139 + $0x68] sm:$0xf]
      %v175 = vld [vmem:[%s139 + $0x6c] sm:$0xf]
      %v176 = vld [vmem:[%s139 + $0x70] sm:$0xf]
      %v177 = vld [vmem:[%s139 + $0x74] sm:$0xf]
      %v178 = vld [vmem:[%s139 + $0x78] sm:$0xf]
      %v179 = vld [vmem:[%s139 + $0x7c] sm:$0xf]
      %v180 = vld [vmem:[%s139 + $0x80] sm:$0xf]
      %v181 = vld [vmem:[%s139 + $0x84] sm:$0xf]
      %v182 = vld [vmem:[%s139 + $0x88] sm:$0xf]
      %v183 = vld [vmem:[%s139 + $0x8c] sm:$0xf]
      %v184 = vld [vmem:[%s139 + $0x90] sm:$0xf]
      %v185 = vld [vmem:[%s139 + $0x94] sm:$0xf]
      %v186 = vld [vmem:[%s139 + $0x98] sm:$0xf]
      %v187 = vld [vmem:[%s139 + $0x9c] sm:$0xf]
      %v188 = vld [vmem:[%s139 + $0xa0] sm:$0xf]
      %v189 = vld [vmem:[%s139 + $0xa4] sm:$0xf]
      %v190 = vld [vmem:[%s139 + $0xa8] sm:$0xf]
      %v191 = vld [vmem:[%s139 + $0xac] sm:$0xf]
      %v192 = vld [vmem:[%s139 + $0xb0] sm:$0xf]
      %v193 = vld [vmem:[%s139 + $0xb4] sm:$0xf]
      %v194 = vld [vmem:[%s139 + $0xb8] sm:$0xf]
      %v195 = vld [vmem:[%s139 + $0xbc] sm:$0xf]
      %v196 = vld [vmem:[%s139 + $0xc0] sm:$0xf]
      %v197 = vld [vmem:[%s139 + $0xc4] sm:$0xf]
      %v198 = vld [vmem:[%s139 + $0xc8] sm:$0xf]
      %v199 = vld [vmem:[%s139 + $0xcc] sm:$0xf]
      %v200 = vld [vmem:[%s139 + $0xd0] sm:$0xf]
      %v201 = vld [vmem:[%s139 + $0xd4] sm:$0xf]
      %v202 = vld [vmem:[%s139 + $0xd8] sm:$0xf]
      %v203 = vld [vmem:[%s139 + $0xdc] sm:$0xf]
      %v204 = vld [vmem:[%s139 + $0xe0] sm:$0xf]
      %v205 = vld [vmem:[%s139 + $0xe4] sm:$0xf]
      %v206 = vld [vmem:[%s139 + $0xe8] sm:$0xf]
      %v207 = vld [vmem:[%s139 + $0xec] sm:$0xf]
      %v208 = vld [vmem:[%s139 + $0xf0] sm:$0xf]
      %v209 = vld [vmem:[%s139 + $0xf4] sm:$0xf]
      %v210 = vld [vmem:[%s139 + $0xf8] sm:$0xf]
      %v211 = vld [vmem:[%s139 + $0xfc] sm:$0xf]
      %v212 = vld [vmem:[%s139 + $0x100] sm:$0xf]
      %v213 = vld [vmem:[%s139 + $0x104] sm:$0xf]
      %v214 = vld [vmem:[%s139 + $0x108] sm:$0xf]
      %v215 = vld [vmem:[%s139 + $0x10c] sm:$0xf]
      %v216 = vld [vmem:[%s139 + $0x110] sm:$0xf]
      %v217 = vld [vmem:[%s139 + $0x114] sm:$0xf]
      %v218 = vld [vmem:[%s139 + $0x118] sm:$0xf]
      %v219 = vld [vmem:[%s139 + $0x11c] sm:$0xf]
      %v220 = vld [vmem:[%s139 + $0x120] sm:$0xf]
      %v221 = vld [vmem:[%s139 + $0x124] sm:$0xf]
      %v222 = vld [vmem:[%s139 + $0x128] sm:$0xf]
      %v223 = vld [vmem:[%s139 + $0x12c] sm:$0xf]
      %v224 = vld [vmem:[%s139 + $0x130] sm:$0xf]
      %v225 = vld [vmem:[%s139 + $0x134] sm:$0xf]
      %v226 = vld [vmem:[%s139 + $0x138] sm:$0xf]
      %v227 = vld [vmem:[%s139 + $0x13c] sm:$0xf]
      %v228 = vld [vmem:[%s139 + $0x140] sm:$0xf]
      %v229 = vld [vmem:[%s139 + $0x144] sm:$0xf]
      %v230 = vld [vmem:[%s139 + $0x148] sm:$0xf]
      %v231 = vld [vmem:[%s139 + $0x14c] sm:$0xf]
      %v232 = vld [vmem:[%s139 + $0x150] sm:$0xf]
      %v233 = vld [vmem:[%s139 + $0x154] sm:$0xf]
      %v234 = vld [vmem:[%s139 + $0x158] sm:$0xf]
      %v235 = vld [vmem:[%s139 + $0x15c] sm:$0xf]
      %v236 = vld [vmem:[%s139 + $0x160] sm:$0xf]
      %v237 = vld [vmem:[%s139 + $0x164] sm:$0xf]
      %v238 = vld [vmem:[%s139 + $0x168] sm:$0xf]
      %v239 = vld [vmem:[%s139 + $0x16c] sm:$0xf]
      %v240 = vld [vmem:[%s139 + $0x170] sm:$0xf]
      %v241 = vld [vmem:[%s139 + $0x174] sm:$0xf]
      %v242 = vld [vmem:[%s139 + $0x178] sm:$0xf]
      %v243 = vld [vmem:[%s139 + $0x17c] sm:$0xf]
      %v244 = vld [vmem:[%s139 + $0x180] sm:$0xf]
      %v245 = vld [vmem:[%s139 + $0x184] sm:$0xf]
      %v246 = vld [vmem:[%s139 + $0x188] sm:$0xf]
      %v247 = vld [vmem:[%s139 + $0x18c] sm:$0xf]
      %v248 = vld [vmem:[%s139 + $0x190] sm:$0xf]
      %v249 = vld [vmem:[%s139 + $0x194] sm:$0xf]
      %v250 = vld [vmem:[%s139 + $0x198] sm:$0xf]
      %v251 = vld [vmem:[%s139 + $0x19c] sm:$0xf]
      %v252 = vld [vmem:[%s139 + $0x1a0] sm:$0xf]
      %v253 = vld [vmem:[%s139 + $0x1a4] sm:$0xf]
      %v254 = vld [vmem:[%s139 + $0x1a8] sm:$0xf]
      %v255 = vld [vmem:[%s139 + $0x1ac] sm:$0xf]
      %v256 = vld [vmem:[%s139 + $0x1b0] sm:$0xf]
      %v257 = vld [vmem:[%s139 + $0x1b4] sm:$0xf]
      %v258 = vld [vmem:[%s139 + $0x1b8] sm:$0xf]
      %v259 = vld [vmem:[%s139 + $0x1bc] sm:$0xf]
      %v260 = vld [vmem:[%s139 + $0x1c0] sm:$0xf]
      %v261 = vld [vmem:[%s139 + $0x1c4] sm:$0xf]
      %v262 = vld [vmem:[%s139 + $0x1c8] sm:$0xf]
      %v263 = vld [vmem:[%s139 + $0x1cc] sm:$0xf]
      %v264 = vld [vmem:[%s139 + $0x1d0] sm:$0xf]
      %v265 = vld [vmem:[%s139 + $0x1d4] sm:$0xf]
      %v266 = vld [vmem:[%s139 + $0x1d8] sm:$0xf]
      %v267 = vld [vmem:[%s139 + $0x1dc] sm:$0xf]
      %v268 = vld [vmem:[%s139 + $0x1e0] sm:$0xf]
      %v269 = vld [vmem:[%s139 + $0x1e4] sm:$0xf]
      %v270 = vld [vmem:[%s139 + $0x1e8] sm:$0xf]
      %v271 = vld [vmem:[%s139 + $0x1ec] sm:$0xf]
      %v272 = vld [vmem:[%s139 + $0x1f0] sm:$0xf]
      %v273 = vld [vmem:[%s139 + $0x1f4] sm:$0xf]
      %v274 = vld [vmem:[%s139 + $0x1f8] sm:$0xf]
      %v275 = vld [vmem:[%s139 + $0x1fc] sm:$0xf]
      %v276 = vld [vmem:[%s1] sm:$0xf]
      %v277 = vld [vmem:[%s1 + $0x4] sm:$0xf]
      %v278 = vld [vmem:[%s1 + $0x8] sm:$0xf]
      %v279 = vld [vmem:[%s1 + $0xc] sm:$0xf]
      %v280 = vld [vmem:[%s1 + $0x10] sm:$0xf]
      %v281 = vld [vmem:[%s1 + $0x14] sm:$0xf]
      %v410 = vunpack.c.l.b16 %v148
      %v411 = vunpack.c.l.b16 %v149
      %v412 = vunpack.c.l.b16 %v150
      %v413 = vunpack.c.l.b16 %v151
      %v414 = vunpack.c.l.b16 %v152
      %v415 = vunpack.c.l.b16 %v153
      %v416 = vunpack.c.l.b16 %v154
      %v417 = vunpack.c.l.b16 %v155
      %v418 = vunpack.c.l.b16 %v156
      %v419 = vunpack.c.l.b16 %v157
      %v420 = vunpack.c.l.b16 %v158
      %v421 = vunpack.c.l.b16 %v159
      %v422 = vunpack.c.l.b16 %v160
      %v423 = vunpack.c.l.b16 %v161
      %v424 = vunpack.c.l.b16 %v162
      %v425 = vunpack.c.l.b16 %v163
      %v426 = vunpack.c.l.b16 %v164
      %v427 = vunpack.c.l.b16 %v165
      %v428 = vunpack.c.l.b16 %v166
      %v429 = vunpack.c.l.b16 %v167
      %v430 = vunpack.c.l.b16 %v168
      %v431 = vunpack.c.l.b16 %v169
      %v432 = vunpack.c.l.b16 %v170
      %v433 = vunpack.c.l.b16 %v171
      %v434 = vunpack.c.l.b16 %v172
      %v435 = vunpack.c.l.b16 %v173
      %v436 = vunpack.c.l.b16 %v174
      %v437 = vunpack.c.l.b16 %v175
      %v438 = vunpack.c.l.b16 %v176
      %v439 = vunpack.c.l.b16 %v177
      %v440 = vunpack.c.l.b16 %v178
      %v441 = vunpack.c.l.b16 %v179
      %v442 = vunpack.c.l.b16 %v180
      %v443 = vunpack.c.l.b16 %v181
      %v444 = vunpack.c.l.b16 %v182
      %v445 = vunpack.c.l.b16 %v183
      %v446 = vunpack.c.l.b16 %v184
      %v447 = vunpack.c.l.b16 %v185
      %v448 = vunpack.c.l.b16 %v186
      %v449 = vunpack.c.l.b16 %v187
      %v450 = vunpack.c.l.b16 %v188
      %v451 = vunpack.c.l.b16 %v189
      %v452 = vunpack.c.l.b16 %v190
      %v453 = vunpack.c.l.b16 %v191
      %v454 = vunpack.c.l.b16 %v192
      %v455 = vunpack.c.l.b16 %v193
      %v456 = vunpack.c.l.b16 %v194
      %v457 = vunpack.c.l.b16 %v195
      %v458 = vunpack.c.l.b16 %v196
      %v459 = vunpack.c.l.b16 %v197
      %v460 = vunpack.c.l.b16 %v198
      %v461 = vunpack.c.l.b16 %v199
      %v462 = vunpack.c.l.b16 %v200
      %v463 = vunpack.c.l.b16 %v201
      %v464 = vunpack.c.l.b16 %v202
      %v465 = vunpack.c.l.b16 %v203
      %v466 = vunpack.c.l.b16 %v204
      %v467 = vunpack.c.l.b16 %v205
      %v468 = vunpack.c.l.b16 %v206
      %v469 = vunpack.c.l.b16 %v207
      %v470 = vunpack.c.l.b16 %v208
      %v471 = vunpack.c.l.b16 %v209
      %v472 = vunpack.c.l.b16 %v210
      %v473 = vunpack.c.l.b16 %v211
      %v474 = vunpack.c.l.b16 %v212
      %v475 = vunpack.c.l.b16 %v213
      %v476 = vunpack.c.l.b16 %v214
      %v477 = vunpack.c.l.b16 %v215
      %v478 = vunpack.c.l.b16 %v216
      %v479 = vunpack.c.l.b16 %v217
      %v480 = vunpack.c.l.b16 %v218
      %v481 = vunpack.c.l.b16 %v219
      %v482 = vunpack.c.l.b16 %v220
      %v483 = vunpack.c.l.b16 %v221
      %v484 = vunpack.c.l.b16 %v222
      %v485 = vunpack.c.l.b16 %v223
      %v486 = vunpack.c.l.b16 %v224
      %v487 = vunpack.c.l.b16 %v225
      %v488 = vunpack.c.l.b16 %v226
      %v489 = vunpack.c.l.b16 %v227
      %v490 = vunpack.c.l.b16 %v228
      %v491 = vunpack.c.l.b16 %v229
      %v492 = vunpack.c.l.b16 %v230
      %v493 = vunpack.c.l.b16 %v231
      %v494 = vunpack.c.l.b16 %v232
      %v495 = vunpack.c.l.b16 %v233
      %v496 = vunpack.c.l.b16 %v234
      %v497 = vunpack.c.l.b16 %v235
      %v498 = vunpack.c.l.b16 %v236
      %v499 = vunpack.c.l.b16 %v237
      %v500 = vunpack.c.l.b16 %v238
      %v501 = vunpack.c.l.b16 %v239
      %v502 = vunpack.c.l.b16 %v240
      %v503 = vunpack.c.l.b16 %v241
      %v504 = vunpack.c.l.b16 %v242
      %v505 = vunpack.c.l.b16 %v243
      %v506 = vunpack.c.l.b16 %v244
      %v507 = vunpack.c.l.b16 %v245
      %v508 = vunpack.c.l.b16 %v246
      %v509 = vunpack.c.l.b16 %v247
      %v510 = vunpack.c.l.b16 %v248
      %v511 = vunpack.c.l.b16 %v249
      %v512 = vunpack.c.l.b16 %v250
      %v513 = vunpack.c.l.b16 %v251
      %v514 = vunpack.c.l.b16 %v252
      %v515 = vunpack.c.l.b16 %v253
      %v516 = vunpack.c.l.b16 %v254
      %v517 = vunpack.c.l.b16 %v255
      %v518 = vunpack.c.l.b16 %v256
      %v519 = vunpack.c.l.b16 %v257
      %v520 = vunpack.c.l.b16 %v258
      %v521 = vunpack.c.l.b16 %v259
      %v522 = vunpack.c.l.b16 %v260
      %v523 = vunpack.c.l.b16 %v261
      %v524 = vunpack.c.l.b16 %v262
      %v525 = vunpack.c.l.b16 %v263
      %v526 = vunpack.c.l.b16 %v264
      %v527 = vunpack.c.l.b16 %v265
      %v528 = vunpack.c.l.b16 %v266
      %v529 = vunpack.c.l.b16 %v267
      %v530 = vunpack.c.l.b16 %v268
      %v531 = vunpack.c.l.b16 %v269
      %v532 = vunpack.c.l.b16 %v270
      %v533 = vunpack.c.l.b16 %v271
      %v534 = vunpack.c.l.b16 %v272
      %v535 = vunpack.c.l.b16 %v273
      %v536 = vunpack.c.l.b16 %v274
      %v537 = vunpack.c.l.b16 %v275
      %v538 = vpack.c.b16 %v411, %v410
      %v539 = vpack.c.b16 %v413, %v412
      %v540 = vpack.c.b16 %v415, %v414
      %v541 = vpack.c.b16 %v417, %v416
      %v542 = vpack.c.b16 %v419, %v418
      %v543 = vpack.c.b16 %v421, %v420
      %v544 = vpack.c.b16 %v423, %v422
      %v545 = vpack.c.b16 %v425, %v424
      %v546 = vpack.c.b16 %v427, %v426
      %v547 = vpack.c.b16 %v429, %v428
      %v548 = vpack.c.b16 %v431, %v430
      %v549 = vpack.c.b16 %v433, %v432
      %v550 = vpack.c.b16 %v435, %v434
      %v551 = vpack.c.b16 %v437, %v436
      %v552 = vpack.c.b16 %v439, %v438
      %v553 = vpack.c.b16 %v441, %v440
      %v554 = vpack.c.b16 %v443, %v442
      %v555 = vpack.c.b16 %v445, %v444
      %v556 = vpack.c.b16 %v447, %v446
      %v557 = vpack.c.b16 %v449, %v448
      %v558 = vpack.c.b16 %v451, %v450
      %v559 = vpack.c.b16 %v453, %v452
      %v560 = vpack.c.b16 %v455, %v454
      %v561 = vpack.c.b16 %v457, %v456
      %v562 = vpack.c.b16 %v459, %v458
      %v563 = vpack.c.b16 %v461, %v460
      %v564 = vpack.c.b16 %v463, %v462
      %v565 = vpack.c.b16 %v465, %v464
      %v566 = vpack.c.b16 %v467, %v466
      %v567 = vpack.c.b16 %v469, %v468
      %v568 = vpack.c.b16 %v471, %v470
      %v569 = vpack.c.b16 %v473, %v472
      %v570 = vpack.c.b16 %v475, %v474
      %v571 = vpack.c.b16 %v477, %v476
      %v572 = vpack.c.b16 %v479, %v478
      %v573 = vpack.c.b16 %v481, %v480
      %v574 = vpack.c.b16 %v483, %v482
      %v575 = vpack.c.b16 %v485, %v484
      %v576 = vpack.c.b16 %v487, %v486
      %v577 = vpack.c.b16 %v489, %v488
      %v578 = vpack.c.b16 %v491, %v490
      %v579 = vpack.c.b16 %v493, %v492
      %v580 = vpack.c.b16 %v495, %v494
      %v581 = vpack.c.b16 %v497, %v496
      %v582 = vpack.c.b16 %v499, %v498
      %v583 = vpack.c.b16 %v501, %v500
      %v584 = vpack.c.b16 %v503, %v502
      %v585 = vpack.c.b16 %v505, %v504
      %v586 = vpack.c.b16 %v507, %v506
      %v587 = vpack.c.b16 %v509, %v508
      %v588 = vpack.c.b16 %v511, %v510
      %v589 = vpack.c.b16 %v513, %v512
      %v590 = vpack.c.b16 %v515, %v514
      %v591 = vpack.c.b16 %v517, %v516
      %v592 = vpack.c.b16 %v519, %v518
      %v593 = vpack.c.b16 %v521, %v520
      %v594 = vpack.c.b16 %v523, %v522
      %v595 = vpack.c.b16 %v525, %v524
      %v596 = vpack.c.b16 %v527, %v526
      %v597 = vpack.c.b16 %v529, %v528
      %v598 = vpack.c.b16 %v531, %v530
      %v599 = vpack.c.b16 %v533, %v532
      %v600 = vpack.c.b16 %v535, %v534
      %v601 = vpack.c.b16 %v537, %v536
      %v608 = vunpack.c.l.b16 %v276
      %v609 = vunpack.c.l.b16 %v277
      %v610 = vunpack.c.l.b16 %v278
      %v611 = vunpack.c.l.b16 %v279
      %v612 = vunpack.c.l.b16 %v280
      %v613 = vunpack.c.l.b16 %v281
      %v614 = vpack.c.b16 %v609, %v608
      %v615 = vpack.c.b16 %v611, %v610
      %v616 = vpack.c.b16 %v613, %v612
      %vm620 = vcmask 392192
      %v622 = vsel %vm620, %v538, 0
      %v625 = vsel %vm620, %v539, 0
      %v628 = vsel %vm620, %v540, 0
      %v631 = vsel %vm620, %v541, 0
      %v634 = vsel %vm620, %v542, 0
      %v637 = vsel %vm620, %v543, 0
      %v640 = vsel %vm620, %v544, 0
      %v643 = vsel %vm620, %v545, 0
      %v646 = vsel %vm620, %v546, 0
      %v649 = vsel %vm620, %v547, 0
      %v652 = vsel %vm620, %v548, 0
      %v655 = vsel %vm620, %v549, 0
      %v658 = vsel %vm620, %v550, 0
      %v661 = vsel %vm620, %v551, 0
      %v664 = vsel %vm620, %v552, 0
      %v667 = vsel %vm620, %v553, 0
      %v670 = vsel %vm620, %v554, 0
      %v673 = vsel %vm620, %v555, 0
      %v676 = vsel %vm620, %v556, 0
      %v679 = vsel %vm620, %v557, 0
      %v682 = vsel %vm620, %v558, 0
      %v685 = vsel %vm620, %v559, 0
      %v688 = vsel %vm620, %v560, 0
      %v691 = vsel %vm620, %v561, 0
      %v694 = vsel %vm620, %v562, 0
      %v697 = vsel %vm620, %v563, 0
      %v700 = vsel %vm620, %v564, 0
      %v703 = vsel %vm620, %v565, 0
      %v706 = vsel %vm620, %v566, 0
      %v709 = vsel %vm620, %v567, 0
      %v712 = vsel %vm620, %v568, 0
      %v715 = vsel %vm620, %v569, 0
      %v718 = vsel %vm620, %v570, 0
      %v721 = vsel %vm620, %v571, 0
      %v724 = vsel %vm620, %v572, 0
      %v727 = vsel %vm620, %v573, 0
      %v730 = vsel %vm620, %v574, 0
      %v733 = vsel %vm620, %v575, 0
      %v736 = vsel %vm620, %v576, 0
      %v739 = vsel %vm620, %v577, 0
      %v742 = vsel %vm620, %v578, 0
      %v745 = vsel %vm620, %v579, 0
      %v748 = vsel %vm620, %v580, 0
      %v751 = vsel %vm620, %v581, 0
      %v754 = vsel %vm620, %v582, 0
      %v757 = vsel %vm620, %v583, 0
      %v760 = vsel %vm620, %v584, 0
      %v763 = vsel %vm620, %v585, 0
      %v766 = vsel %vm620, %v586, 0
      %v769 = vsel %vm620, %v587, 0
      %v772 = vsel %vm620, %v588, 0
      %v775 = vsel %vm620, %v589, 0
      %v778 = vsel %vm620, %v590, 0
      %v781 = vsel %vm620, %v591, 0
      %v784 = vsel %vm620, %v592, 0
      %v787 = vsel %vm620, %v593, 0
      %v790 = vsel %vm620, %v594, 0
      %v793 = vsel %vm620, %v595, 0
      %v796 = vsel %vm620, %v596, 0
      %v799 = vsel %vm620, %v597, 0
      %v802 = vsel %vm620, %v598, 0
      %v805 = vsel %vm620, %v599, 0
      %v808 = vsel %vm620, %v600, 0
      %v811 = vsel %vm620, %v601, 0
      %813 = vmatprep.subr.bf16.mxu0 0
      %814 = vmatpush1.bf16.msra.mxu0 0
      %815 = vmatprep.subr.bf16.mxu0 0
      %816 = vmatpush1.bf16.msra.mxu0 0
      %817 = vmatprep.subr.bf16.mxu0 0
      %818 = vmatpush1.bf16.msra.mxu0 0
      %819 = vmatprep.subr.bf16.mxu0 0
      %820 = vmatpush1.bf16.msra.mxu0 0
      %821 = vmatprep.subr.bf16.mxu0 0
      %822 = vmatpush1.bf16.msra.mxu0 0
      %823 = vmatprep.subr.bf16.mxu0 0
      %824 = vmatpush1.bf16.msra.mxu0 %v616
      %825 = vmatprep.subr.bf16.mxu0 0
      %826 = vmatpush1.bf16.msra.mxu0 %v615
      %827 = vmatprep.subr.bf16.mxu0 0
      %828 = vmatpush1.bf16.msra.mxu0 %v614
      %829 = vmatprep.subr.bf16.mxu0 0
      %830 = vmatpush2.bf16.msra.mxu0 0
      %831 = vmatprep.subr.bf16.mxu0 0
      %832 = vmatpush2.bf16.msra.mxu0 0
      %833 = vmatprep.subr.bf16.mxu0 0
      %834 = vmatpush2.bf16.msra.mxu0 0
      %835 = vmatprep.subr.bf16.mxu0 0
      %836 = vmatpush2.bf16.msra.mxu0 0
      %837 = vmatprep.subr.bf16.mxu0 0
      %838 = vmatpush2.bf16.msra.mxu0 0
      %839 = vmatprep.subr.bf16.mxu0 0
      %840 = vmatpush2.bf16.msra.mxu0 0
      %841 = vmatprep.subr.bf16.mxu0 0
      %842 = vmatpush2.bf16.msra.mxu0 0
      %843 = vmatprep.subr.bf16.mxu0 0
      %844 = vmatpush2.bf16.msra.mxu0 0
      %845 = vmatprep.mubr.bf16.mxu0 0
      %846 = vmatmul.mubr.bf16.gmra.mxu0 %v622
      %v847 = vpop.f32.mrf.mxu0
      %v848 = vadd.f32 0.0, %v847
      %v849 = vpop.f32.mrf.mxu0
      %v850 = vpop.f32.mrf.mxu0
      %v851 = vadd.f32 0.0, %v850
      %v852 = vpop.f32.mrf.mxu0
      %853 = vmatprep.mubr.bf16.mxu0 0
      %854 = vmatmul.mubr.bf16.gmra.mxu0 %v625
      %v855 = vpop.f32.mrf.mxu0
      %v856 = vadd.f32 0.0, %v855
      %v857 = vpop.f32.mrf.mxu0
      %v858 = vpop.f32.mrf.mxu0
      %v859 = vadd.f32 0.0, %v858
      %v860 = vpop.f32.mrf.mxu0
      %861 = vmatprep.mubr.bf16.mxu0 0
      %862 = vmatmul.mubr.bf16.gmra.mxu0 %v628
      %v863 = vpop.f32.mrf.mxu0
      %v864 = vadd.f32 0.0, %v863
      %v865 = vpop.f32.mrf.mxu0
      %v866 = vpop.f32.mrf.mxu0
      %v867 = vadd.f32 0.0, %v866
      %v868 = vpop.f32.mrf.mxu0
      %869 = vmatprep.mubr.bf16.mxu0 0
      %870 = vmatmul.mubr.bf16.gmra.mxu0 %v631
      %v871 = vpop.f32.mrf.mxu0
      %v872 = vadd.f32 0.0, %v871
      %v873 = vpop.f32.mrf.mxu0
      %v874 = vpop.f32.mrf.mxu0
      %v875 = vadd.f32 0.0, %v874
      %v876 = vpop.f32.mrf.mxu0
      %877 = vmatprep.mubr.bf16.mxu0 0
      %878 = vmatmul.mubr.bf16.gmra.mxu0 %v634
      %v879 = vpop.f32.mrf.mxu0
      %v880 = vadd.f32 0.0, %v879
      %v881 = vpop.f32.mrf.mxu0
      %v882 = vpop.f32.mrf.mxu0
      %v883 = vadd.f32 0.0, %v882
      %v884 = vpop.f32.mrf.mxu0
      %885 = vmatprep.mubr.bf16.mxu0 0
      %886 = vmatmul.mubr.bf16.gmra.mxu0 %v637
      %v887 = vpop.f32.mrf.mxu0
      %v888 = vadd.f32 0.0, %v887
      %v889 = vpop.f32.mrf.mxu0
      %v890 = vpop.f32.mrf.mxu0
      %v891 = vadd.f32 0.0, %v890
      %v892 = vpop.f32.mrf.mxu0
      %893 = vmatprep.mubr.bf16.mxu0 0
      %894 = vmatmul.mubr.bf16.gmra.mxu0 %v640
      %v895 = vpop.f32.mrf.mxu0
      %v896 = vadd.f32 0.0, %v895
      %v897 = vpop.f32.mrf.mxu0
      %v898 = vpop.f32.mrf.mxu0
      %v899 = vadd.f32 0.0, %v898
      %v900 = vpop.f32.mrf.mxu0
      %901 = vmatprep.mubr.bf16.mxu0 0
      %902 = vmatmul.mubr.bf16.gmra.mxu0 %v643
      %v903 = vpop.f32.mrf.mxu0
      %v904 = vadd.f32 0.0, %v903
      %v905 = vpop.f32.mrf.mxu0
      %v906 = vpop.f32.mrf.mxu0
      %v907 = vadd.f32 0.0, %v906
      %v908 = vpop.f32.mrf.mxu0
      %909 = vmatprep.mubr.bf16.mxu0 0
      %910 = vmatmul.mubr.bf16.gmra.mxu0 %v646
      %v911 = vpop.f32.mrf.mxu0
      %v912 = vadd.f32 0.0, %v911
      %v913 = vpop.f32.mrf.mxu0
      %v914 = vpop.f32.mrf.mxu0
      %v915 = vadd.f32 0.0, %v914
      %v916 = vpop.f32.mrf.mxu0
      %917 = vmatprep.mubr.bf16.mxu0 0
      %918 = vmatmul.mubr.bf16.gmra.mxu0 %v649
      %v919 = vpop.f32.mrf.mxu0
      %v920 = vadd.f32 0.0, %v919
      %v921 = vpop.f32.mrf.mxu0
      %v922 = vpop.f32.mrf.mxu0
      %v923 = vadd.f32 0.0, %v922
      %v924 = vpop.f32.mrf.mxu0
      %925 = vmatprep.mubr.bf16.mxu0 0
      %926 = vmatmul.mubr.bf16.gmra.mxu0 %v652
      %v927 = vpop.f32.mrf.mxu0
      %v928 = vadd.f32 0.0, %v927
      %v929 = vpop.f32.mrf.mxu0
      %v930 = vpop.f32.mrf.mxu0
      %v931 = vadd.f32 0.0, %v930
      %v932 = vpop.f32.mrf.mxu0
      %933 = vmatprep.mubr.bf16.mxu0 0
      %934 = vmatmul.mubr.bf16.gmra.mxu0 %v655
      %v935 = vpop.f32.mrf.mxu0
      %v936 = vadd.f32 0.0, %v935
      %v937 = vpop.f32.mrf.mxu0
      %v938 = vpop.f32.mrf.mxu0
      %v939 = vadd.f32 0.0, %v938
      %v940 = vpop.f32.mrf.mxu0
      %941 = vmatprep.mubr.bf16.mxu0 0
      %942 = vmatmul.mubr.bf16.gmra.mxu0 %v658
      %v943 = vpop.f32.mrf.mxu0
      %v944 = vadd.f32 0.0, %v943
      %v945 = vpop.f32.mrf.mxu0
      %v946 = vpop.f32.mrf.mxu0
      %v947 = vadd.f32 0.0, %v946
      %v948 = vpop.f32.mrf.mxu0
      %949 = vmatprep.mubr.bf16.mxu0 0
      %950 = vmatmul.mubr.bf16.gmra.mxu0 %v661
      %v951 = vpop.f32.mrf.mxu0
      %v952 = vadd.f32 0.0, %v951
      %v953 = vpop.f32.mrf.mxu0
      %v954 = vpop.f32.mrf.mxu0
      %v955 = vadd.f32 0.0, %v954
      %v956 = vpop.f32.mrf.mxu0
      %957 = vmatprep.mubr.bf16.mxu0 0
      %958 = vmatmul.mubr.bf16.gmra.mxu0 %v664
      %v959 = vpop.f32.mrf.mxu0
      %v960 = vadd.f32 0.0, %v959
      %v961 = vpop.f32.mrf.mxu0
      %v962 = vpop.f32.mrf.mxu0
      %v963 = vadd.f32 0.0, %v962
      %v964 = vpop.f32.mrf.mxu0
      %965 = vmatprep.mubr.bf16.mxu0 0
      %966 = vmatmul.mubr.bf16.gmra.mxu0 %v667
      %v967 = vpop.f32.mrf.mxu0
      %v968 = vadd.f32 0.0, %v967
      %v969 = vpop.f32.mrf.mxu0
      %v970 = vpop.f32.mrf.mxu0
      %v971 = vadd.f32 0.0, %v970
      %v972 = vpop.f32.mrf.mxu0
      %973 = vmatprep.mubr.bf16.mxu0 0
      %974 = vmatmul.mubr.bf16.gmra.mxu0 %v670
      %v975 = vpop.f32.mrf.mxu0
      %v976 = vadd.f32 0.0, %v975
      %v977 = vpop.f32.mrf.mxu0
      %v978 = vpop.f32.mrf.mxu0
      %v979 = vadd.f32 0.0, %v978
      %v980 = vpop.f32.mrf.mxu0
      %981 = vmatprep.mubr.bf16.mxu0 0
      %982 = vmatmul.mubr.bf16.gmra.mxu0 %v673
      %v983 = vpop.f32.mrf.mxu0
      %v984 = vadd.f32 0.0, %v983
      %v985 = vpop.f32.mrf.mxu0
      %v986 = vpop.f32.mrf.mxu0
      %v987 = vadd.f32 0.0, %v986
      %v988 = vpop.f32.mrf.mxu0
      %989 = vmatprep.mubr.bf16.mxu0 0
      %990 = vmatmul.mubr.bf16.gmra.mxu0 %v676
      %v991 = vpop.f32.mrf.mxu0
      %v992 = vadd.f32 0.0, %v991
      %v993 = vpop.f32.mrf.mxu0
      %v994 = vpop.f32.mrf.mxu0
      %v995 = vadd.f32 0.0, %v994
      %v996 = vpop.f32.mrf.mxu0
      %997 = vmatprep.mubr.bf16.mxu0 0
      %998 = vmatmul.mubr.bf16.gmra.mxu0 %v679
      %v999 = vpop.f32.mrf.mxu0
      %v1000 = vadd.f32 0.0, %v999
      %v1001 = vpop.f32.mrf.mxu0
      %v1002 = vpop.f32.mrf.mxu0
      %v1003 = vadd.f32 0.0, %v1002
      %v1004 = vpop.f32.mrf.mxu0
      %1005 = vmatprep.mubr.bf16.mxu0 0
      %1006 = vmatmul.mubr.bf16.gmra.mxu0 %v682
      %v1007 = vpop.f32.mrf.mxu0
      %v1008 = vadd.f32 0.0, %v1007
      %v1009 = vpop.f32.mrf.mxu0
      %v1010 = vpop.f32.mrf.mxu0
      %v1011 = vadd.f32 0.0, %v1010
      %v1012 = vpop.f32.mrf.mxu0
      %1013 = vmatprep.mubr.bf16.mxu0 0
      %1014 = vmatmul.mubr.bf16.gmra.mxu0 %v685
      %v1015 = vpop.f32.mrf.mxu0
      %v1016 = vadd.f32 0.0, %v1015
      %v1017 = vpop.f32.mrf.mxu0
      %v1018 = vpop.f32.mrf.mxu0
      %v1019 = vadd.f32 0.0, %v1018
      %v1020 = vpop.f32.mrf.mxu0
      %1021 = vmatprep.mubr.bf16.mxu0 0
      %1022 = vmatmul.mubr.bf16.gmra.mxu0 %v688
      %v1023 = vpop.f32.mrf.mxu0
      %v1024 = vadd.f32 0.0, %v1023
      %v1025 = vpop.f32.mrf.mxu0
      %v1026 = vpop.f32.mrf.mxu0
      %v1027 = vadd.f32 0.0, %v1026
      %v1028 = vpop.f32.mrf.mxu0
      %1029 = vmatprep.mubr.bf16.mxu0 0
      %1030 = vmatmul.mubr.bf16.gmra.mxu0 %v691
      %v1031 = vpop.f32.mrf.mxu0
      %v1032 = vadd.f32 0.0, %v1031
      %v1033 = vpop.f32.mrf.mxu0
      %v1034 = vpop.f32.mrf.mxu0
      %v1035 = vadd.f32 0.0, %v1034
      %v1036 = vpop.f32.mrf.mxu0
      %1037 = vmatprep.mubr.bf16.mxu0 0
      %1038 = vmatmul.mubr.bf16.gmra.mxu0 %v694
      %v1039 = vpop.f32.mrf.mxu0
      %v1040 = vadd.f32 0.0, %v1039
      %v1041 = vpop.f32.mrf.mxu0
      %v1042 = vpop.f32.mrf.mxu0
      %v1043 = vadd.f32 0.0, %v1042
      %v1044 = vpop.f32.mrf.mxu0
      %1045 = vmatprep.mubr.bf16.mxu0 0
      %1046 = vmatmul.mubr.bf16.gmra.mxu0 %v697
      %v1047 = vpop.f32.mrf.mxu0
      %v1048 = vadd.f32 0.0, %v1047
      %v1049 = vpop.f32.mrf.mxu0
      %v1050 = vpop.f32.mrf.mxu0
      %v1051 = vadd.f32 0.0, %v1050
      %v1052 = vpop.f32.mrf.mxu0
      %1053 = vmatprep.mubr.bf16.mxu0 0
      %1054 = vmatmul.mubr.bf16.gmra.mxu0 %v700
      %v1055 = vpop.f32.mrf.mxu0
      %v1056 = vadd.f32 0.0, %v1055
      %v1057 = vpop.f32.mrf.mxu0
      %v1058 = vpop.f32.mrf.mxu0
      %v1059 = vadd.f32 0.0, %v1058
      %v1060 = vpop.f32.mrf.mxu0
      %1061 = vmatprep.mubr.bf16.mxu0 0
      %1062 = vmatmul.mubr.bf16.gmra.mxu0 %v703
      %v1063 = vpop.f32.mrf.mxu0
      %v1064 = vadd.f32 0.0, %v1063
      %v1065 = vpop.f32.mrf.mxu0
      %v1066 = vpop.f32.mrf.mxu0
      %v1067 = vadd.f32 0.0, %v1066
      %v1068 = vpop.f32.mrf.mxu0
      %1069 = vmatprep.mubr.bf16.mxu0 0
      %1070 = vmatmul.mubr.bf16.gmra.mxu0 %v706
      %v1071 = vpop.f32.mrf.mxu0
      %v1072 = vadd.f32 0.0, %v1071
      %v1073 = vpop.f32.mrf.mxu0
      %v1074 = vpop.f32.mrf.mxu0
      %v1075 = vadd.f32 0.0, %v1074
      %v1076 = vpop.f32.mrf.mxu0
      %1077 = vmatprep.mubr.bf16.mxu0 0
      %1078 = vmatmul.mubr.bf16.gmra.mxu0 %v709
      %v1079 = vpop.f32.mrf.mxu0
      %v1080 = vadd.f32 0.0, %v1079
      %v1081 = vpop.f32.mrf.mxu0
      %v1082 = vpop.f32.mrf.mxu0
      %v1083 = vadd.f32 0.0, %v1082
      %v1084 = vpop.f32.mrf.mxu0
      %1085 = vmatprep.mubr.bf16.mxu0 0
      %1086 = vmatmul.mubr.bf16.gmra.mxu0 %v712
      %v1087 = vpop.f32.mrf.mxu0
      %v1088 = vadd.f32 0.0, %v1087
      %v1089 = vpop.f32.mrf.mxu0
      %v1090 = vpop.f32.mrf.mxu0
      %v1091 = vadd.f32 0.0, %v1090
      %v1092 = vpop.f32.mrf.mxu0
      %1093 = vmatprep.mubr.bf16.mxu0 0
      %1094 = vmatmul.mubr.bf16.gmra.mxu0 %v715
      %v1095 = vpop.f32.mrf.mxu0
      %v1096 = vadd.f32 0.0, %v1095
      %v1097 = vpop.f32.mrf.mxu0
      %v1098 = vpop.f32.mrf.mxu0
      %v1099 = vadd.f32 0.0, %v1098
      %v1100 = vpop.f32.mrf.mxu0
      %1101 = vmatprep.mubr.bf16.mxu0 0
      %1102 = vmatmul.mubr.bf16.gmra.mxu0 %v718
      %v1103 = vpop.f32.mrf.mxu0
      %v1104 = vadd.f32 0.0, %v1103
      %v1105 = vpop.f32.mrf.mxu0
      %v1106 = vpop.f32.mrf.mxu0
      %v1107 = vadd.f32 0.0, %v1106
      %v1108 = vpop.f32.mrf.mxu0
      %1109 = vmatprep.mubr.bf16.mxu0 0
      %1110 = vmatmul.mubr.bf16.gmra.mxu0 %v721
      %v1111 = vpop.f32.mrf.mxu0
      %v1112 = vadd.f32 0.0, %v1111
      %v1113 = vpop.f32.mrf.mxu0
      %v1114 = vpop.f32.mrf.mxu0
      %v1115 = vadd.f32 0.0, %v1114
      %v1116 = vpop.f32.mrf.mxu0
      %1117 = vmatprep.mubr.bf16.mxu0 0
      %1118 = vmatmul.mubr.bf16.gmra.mxu0 %v724
      %v1119 = vpop.f32.mrf.mxu0
      %v1120 = vadd.f32 0.0, %v1119
      %v1121 = vpop.f32.mrf.mxu0
      %v1122 = vpop.f32.mrf.mxu0
      %v1123 = vadd.f32 0.0, %v1122
      %v1124 = vpop.f32.mrf.mxu0
      %1125 = vmatprep.mubr.bf16.mxu0 0
      %1126 = vmatmul.mubr.bf16.gmra.mxu0 %v727
      %v1127 = vpop.f32.mrf.mxu0
      %v1128 = vadd.f32 0.0, %v1127
      %v1129 = vpop.f32.mrf.mxu0
      %v1130 = vpop.f32.mrf.mxu0
      %v1131 = vadd.f32 0.0, %v1130
      %v1132 = vpop.f32.mrf.mxu0
      %1133 = vmatprep.mubr.bf16.mxu0 0
      %1134 = vmatmul.mubr.bf16.gmra.mxu0 %v730
      %v1135 = vpop.f32.mrf.mxu0
      %v1136 = vadd.f32 0.0, %v1135
      %v1137 = vpop.f32.mrf.mxu0
      %v1138 = vpop.f32.mrf.mxu0
      %v1139 = vadd.f32 0.0, %v1138
      %v1140 = vpop.f32.mrf.mxu0
      %1141 = vmatprep.mubr.bf16.mxu0 0
      %1142 = vmatmul.mubr.bf16.gmra.mxu0 %v733
      %v1143 = vpop.f32.mrf.mxu0
      %v1144 = vadd.f32 0.0, %v1143
      %v1145 = vpop.f32.mrf.mxu0
      %v1146 = vpop.f32.mrf.mxu0
      %v1147 = vadd.f32 0.0, %v1146
      %v1148 = vpop.f32.mrf.mxu0
      %1149 = vmatprep.mubr.bf16.mxu0 0
      %1150 = vmatmul.mubr.bf16.gmra.mxu0 %v736
      %v1151 = vpop.f32.mrf.mxu0
      %v1152 = vadd.f32 0.0, %v1151
      %v1153 = vpop.f32.mrf.mxu0
      %v1154 = vpop.f32.mrf.mxu0
      %v1155 = vadd.f32 0.0, %v1154
      %v1156 = vpop.f32.mrf.mxu0
      %1157 = vmatprep.mubr.bf16.mxu0 0
      %1158 = vmatmul.mubr.bf16.gmra.mxu0 %v739
      %v1159 = vpop.f32.mrf.mxu0
      %v1160 = vadd.f32 0.0, %v1159
      %v1161 = vpop.f32.mrf.mxu0
      %v1162 = vpop.f32.mrf.mxu0
      %v1163 = vadd.f32 0.0, %v1162
      %v1164 = vpop.f32.mrf.mxu0
      %1165 = vmatprep.mubr.bf16.mxu0 0
      %1166 = vmatmul.mubr.bf16.gmra.mxu0 %v742
      %v1167 = vpop.f32.mrf.mxu0
      %v1168 = vadd.f32 0.0, %v1167
      %v1169 = vpop.f32.mrf.mxu0
      %v1170 = vpop.f32.mrf.mxu0
      %v1171 = vadd.f32 0.0, %v1170
      %v1172 = vpop.f32.mrf.mxu0
      %1173 = vmatprep.mubr.bf16.mxu0 0
      %1174 = vmatmul.mubr.bf16.gmra.mxu0 %v745
      %v1175 = vpop.f32.mrf.mxu0
      %v1176 = vadd.f32 0.0, %v1175
      %v1177 = vpop.f32.mrf.mxu0
      %v1178 = vpop.f32.mrf.mxu0
      %v1179 = vadd.f32 0.0, %v1178
      %v1180 = vpop.f32.mrf.mxu0
      %1181 = vmatprep.mubr.bf16.mxu0 0
      %1182 = vmatmul.mubr.bf16.gmra.mxu0 %v748
      %v1183 = vpop.f32.mrf.mxu0
      %v1184 = vadd.f32 0.0, %v1183
      %v1185 = vpop.f32.mrf.mxu0
      %v1186 = vpop.f32.mrf.mxu0
      %v1187 = vadd.f32 0.0, %v1186
      %v1188 = vpop.f32.mrf.mxu0
      %1189 = vmatprep.mubr.bf16.mxu0 0
      %1190 = vmatmul.mubr.bf16.gmra.mxu0 %v751
      %v1191 = vpop.f32.mrf.mxu0
      %v1192 = vadd.f32 0.0, %v1191
      %v1193 = vpop.f32.mrf.mxu0
      %v1194 = vpop.f32.mrf.mxu0
      %v1195 = vadd.f32 0.0, %v1194
      %v1196 = vpop.f32.mrf.mxu0
      %1197 = vmatprep.mubr.bf16.mxu0 0
      %1198 = vmatmul.mubr.bf16.gmra.mxu0 %v754
      %v1199 = vpop.f32.mrf.mxu0
      %v1200 = vadd.f32 0.0, %v1199
      %v1201 = vpop.f32.mrf.mxu0
      %v1202 = vpop.f32.mrf.mxu0
      %v1203 = vadd.f32 0.0, %v1202
      %v1204 = vpop.f32.mrf.mxu0
      %1205 = vmatprep.mubr.bf16.mxu0 0
      %1206 = vmatmul.mubr.bf16.gmra.mxu0 %v757
      %v1207 = vpop.f32.mrf.mxu0
      %v1208 = vadd.f32 0.0, %v1207
      %v1209 = vpop.f32.mrf.mxu0
      %v1210 = vpop.f32.mrf.mxu0
      %v1211 = vadd.f32 0.0, %v1210
      %v1212 = vpop.f32.mrf.mxu0
      %1213 = vmatprep.mubr.bf16.mxu0 0
      %1214 = vmatmul.mubr.bf16.gmra.mxu0 %v760
      %v1215 = vpop.f32.mrf.mxu0
      %v1216 = vadd.f32 0.0, %v1215
      %v1217 = vpop.f32.mrf.mxu0
      %v1218 = vpop.f32.mrf.mxu0
      %v1219 = vadd.f32 0.0, %v1218
      %v1220 = vpop.f32.mrf.mxu0
      %1221 = vmatprep.mubr.bf16.mxu0 0
      %1222 = vmatmul.mubr.bf16.gmra.mxu0 %v763
      %v1223 = vpop.f32.mrf.mxu0
      %v1224 = vadd.f32 0.0, %v1223
      %v1225 = vpop.f32.mrf.mxu0
      %v1226 = vpop.f32.mrf.mxu0
      %v1227 = vadd.f32 0.0, %v1226
      %v1228 = vpop.f32.mrf.mxu0
      %1229 = vmatprep.mubr.bf16.mxu0 0
      %1230 = vmatmul.mubr.bf16.gmra.mxu0 %v766
      %v1231 = vpop.f32.mrf.mxu0
      %v1232 = vadd.f32 0.0, %v1231
      %v1233 = vpop.f32.mrf.mxu0
      %v1234 = vpop.f32.mrf.mxu0
      %v1235 = vadd.f32 0.0, %v1234
      %v1236 = vpop.f32.mrf.mxu0
      %1237 = vmatprep.mubr.bf16.mxu0 0
      %1238 = vmatmul.mubr.bf16.gmra.mxu0 %v769
      %v1239 = vpop.f32.mrf.mxu0
      %v1240 = vadd.f32 0.0, %v1239
      %v1241 = vpop.f32.mrf.mxu0
      %v1242 = vpop.f32.mrf.mxu0
      %v1243 = vadd.f32 0.0, %v1242
      %v1244 = vpop.f32.mrf.mxu0
      %1245 = vmatprep.mubr.bf16.mxu0 0
      %1246 = vmatmul.mubr.bf16.gmra.mxu0 %v772
      %v1247 = vpop.f32.mrf.mxu0
      %v1248 = vadd.f32 0.0, %v1247
      %v1249 = vpop.f32.mrf.mxu0
      %v1250 = vpop.f32.mrf.mxu0
      %v1251 = vadd.f32 0.0, %v1250
      %v1252 = vpop.f32.mrf.mxu0
      %1253 = vmatprep.mubr.bf16.mxu0 0
      %1254 = vmatmul.mubr.bf16.gmra.mxu0 %v775
      %v1255 = vpop.f32.mrf.mxu0
      %v1256 = vadd.f32 0.0, %v1255
      %v1257 = vpop.f32.mrf.mxu0
      %v1258 = vpop.f32.mrf.mxu0
      %v1259 = vadd.f32 0.0, %v1258
      %v1260 = vpop.f32.mrf.mxu0
      %1261 = vmatprep.mubr.bf16.mxu0 0
      %1262 = vmatmul.mubr.bf16.gmra.mxu0 %v778
      %v1263 = vpop.f32.mrf.mxu0
      %v1264 = vadd.f32 0.0, %v1263
      %v1265 = vpop.f32.mrf.mxu0
      %v1266 = vpop.f32.mrf.mxu0
      %v1267 = vadd.f32 0.0, %v1266
      %v1268 = vpop.f32.mrf.mxu0
      %1269 = vmatprep.mubr.bf16.mxu0 0
      %1270 = vmatmul.mubr.bf16.gmra.mxu0 %v781
      %v1271 = vpop.f32.mrf.mxu0
      %v1272 = vadd.f32 0.0, %v1271
      %v1273 = vpop.f32.mrf.mxu0
      %v1274 = vpop.f32.mrf.mxu0
      %v1275 = vadd.f32 0.0, %v1274
      %v1276 = vpop.f32.mrf.mxu0
      %1277 = vmatprep.mubr.bf16.mxu0 0
      %1278 = vmatmul.mubr.bf16.gmra.mxu0 %v784
      %v1279 = vpop.f32.mrf.mxu0
      %v1280 = vadd.f32 0.0, %v1279
      %v1281 = vpop.f32.mrf.mxu0
      %v1282 = vpop.f32.mrf.mxu0
      %v1283 = vadd.f32 0.0, %v1282
      %v1284 = vpop.f32.mrf.mxu0
      %1285 = vmatprep.mubr.bf16.mxu0 0
      %1286 = vmatmul.mubr.bf16.gmra.mxu0 %v787
      %v1287 = vpop.f32.mrf.mxu0
      %v1288 = vadd.f32 0.0, %v1287
      %v1289 = vpop.f32.mrf.mxu0
      %v1290 = vpop.f32.mrf.mxu0
      %v1291 = vadd.f32 0.0, %v1290
      %v1292 = vpop.f32.mrf.mxu0
      %1293 = vmatprep.mubr.bf16.mxu0 0
      %1294 = vmatmul.mubr.bf16.gmra.mxu0 %v790
      %v1295 = vpop.f32.mrf.mxu0
      %v1296 = vadd.f32 0.0, %v1295
      %v1297 = vpop.f32.mrf.mxu0
      %v1298 = vpop.f32.mrf.mxu0
      %v1299 = vadd.f32 0.0, %v1298
      %v1300 = vpop.f32.mrf.mxu0
      %1301 = vmatprep.mubr.bf16.mxu0 0
      %1302 = vmatmul.mubr.bf16.gmra.mxu0 %v793
      %v1303 = vpop.f32.mrf.mxu0
      %v1304 = vadd.f32 0.0, %v1303
      %v1305 = vpop.f32.mrf.mxu0
      %v1306 = vpop.f32.mrf.mxu0
      %v1307 = vadd.f32 0.0, %v1306
      %v1308 = vpop.f32.mrf.mxu0
      %1309 = vmatprep.mubr.bf16.mxu0 0
      %1310 = vmatmul.mubr.bf16.gmra.mxu0 %v796
      %v1311 = vpop.f32.mrf.mxu0
      %v1312 = vadd.f32 0.0, %v1311
      %v1313 = vpop.f32.mrf.mxu0
      %v1314 = vpop.f32.mrf.mxu0
      %v1315 = vadd.f32 0.0, %v1314
      %v1316 = vpop.f32.mrf.mxu0
      %1317 = vmatprep.mubr.bf16.mxu0 0
      %1318 = vmatmul.mubr.bf16.gmra.mxu0 %v799
      %v1319 = vpop.f32.mrf.mxu0
      %v1320 = vadd.f32 0.0, %v1319
      %v1321 = vpop.f32.mrf.mxu0
      %v1322 = vpop.f32.mrf.mxu0
      %v1323 = vadd.f32 0.0, %v1322
      %v1324 = vpop.f32.mrf.mxu0
      %1325 = vmatprep.mubr.bf16.mxu0 0
      %1326 = vmatmul.mubr.bf16.gmra.mxu0 %v802
      %v1327 = vpop.f32.mrf.mxu0
      %v1328 = vadd.f32 0.0, %v1327
      %v1329 = vpop.f32.mrf.mxu0
      %v1330 = vpop.f32.mrf.mxu0
      %v1331 = vadd.f32 0.0, %v1330
      %v1332 = vpop.f32.mrf.mxu0
      %1333 = vmatprep.mubr.bf16.mxu0 0
      %1334 = vmatmul.mubr.bf16.gmra.mxu0 %v805
      %v1335 = vpop.f32.mrf.mxu0
      %v1336 = vadd.f32 0.0, %v1335
      %v1337 = vpop.f32.mrf.mxu0
      %v1338 = vpop.f32.mrf.mxu0
      %v1339 = vadd.f32 0.0, %v1338
      %v1340 = vpop.f32.mrf.mxu0
      %1341 = vmatprep.mubr.bf16.mxu0 0
      %1342 = vmatmul.mubr.bf16.gmra.mxu0 %v808
      %v1343 = vpop.f32.mrf.mxu0
      %v1344 = vadd.f32 0.0, %v1343
      %v1345 = vpop.f32.mrf.mxu0
      %v1346 = vpop.f32.mrf.mxu0
      %v1347 = vadd.f32 0.0, %v1346
      %v1348 = vpop.f32.mrf.mxu0
      %1349 = vmatprep.mubr.bf16.mxu0 0
      %1350 = vmatmul.mubr.bf16.gmra.mxu0 %v811
      %v1351 = vpop.f32.mrf.mxu0
      %v1352 = vadd.f32 0.0, %v1351
      %v1353 = vpop.f32.mrf.mxu0
      %v1354 = vpop.f32.mrf.mxu0
      %v1355 = vadd.f32 0.0, %v1354
      %v1356 = vpop.f32.mrf.mxu0
      %1357 = vdwg.mxu0
      %vm1358 = vcmp.ge.f32.partialorder %v848, 0.0
      %vm1359 = vcmp.ge.f32.partialorder %v851, 0.0
      %vm1360 = vcmp.ge.f32.partialorder %v856, 0.0
      %vm1361 = vcmp.ge.f32.partialorder %v859, 0.0
      %vm1362 = vcmp.ge.f32.partialorder %v864, 0.0
      %vm1363 = vcmp.ge.f32.partialorder %v867, 0.0
      %vm1364 = vcmp.ge.f32.partialorder %v872, 0.0
      %vm1365 = vcmp.ge.f32.partialorder %v875, 0.0
      %vm1366 = vcmp.ge.f32.partialorder %v880, 0.0
      %vm1367 = vcmp.ge.f32.partialorder %v883, 0.0
      %vm1368 = vcmp.ge.f32.partialorder %v888, 0.0
      %vm1369 = vcmp.ge.f32.partialorder %v891, 0.0
      %vm1370 = vcmp.ge.f32.partialorder %v896, 0.0
      %vm1371 = vcmp.ge.f32.partialorder %v899, 0.0
      %vm1372 = vcmp.ge.f32.partialorder %v904, 0.0
      %vm1373 = vcmp.ge.f32.partialorder %v907, 0.0
      %vm1374 = vcmp.ge.f32.partialorder %v912, 0.0
      %vm1375 = vcmp.ge.f32.partialorder %v915, 0.0
      %vm1376 = vcmp.ge.f32.partialorder %v920, 0.0
      %vm1377 = vcmp.ge.f32.partialorder %v923, 0.0
      %vm1378 = vcmp.ge.f32.partialorder %v928, 0.0
      %vm1379 = vcmp.ge.f32.partialorder %v931, 0.0
      %vm1380 = vcmp.ge.f32.partialorder %v936, 0.0
      %vm1381 = vcmp.ge.f32.partialorder %v939, 0.0
      %vm1382 = vcmp.ge.f32.partialorder %v944, 0.0
      %vm1383 = vcmp.ge.f32.partialorder %v947, 0.0
      %vm1384 = vcmp.ge.f32.partialorder %v952, 0.0
      %vm1385 = vcmp.ge.f32.partialorder %v955, 0.0
      %vm1386 = vcmp.ge.f32.partialorder %v960, 0.0
      %vm1387 = vcmp.ge.f32.partialorder %v963, 0.0
      %vm1388 = vcmp.ge.f32.partialorder %v968, 0.0
      %vm1389 = vcmp.ge.f32.partialorder %v971, 0.0
      %vm1390 = vcmp.ge.f32.partialorder %v976, 0.0
      %vm1391 = vcmp.ge.f32.partialorder %v979, 0.0
      %vm1392 = vcmp.ge.f32.partialorder %v984, 0.0
      %vm1393 = vcmp.ge.f32.partialorder %v987, 0.0
      %vm1394 = vcmp.ge.f32.partialorder %v992, 0.0
      %vm1395 = vcmp.ge.f32.partialorder %v995, 0.0
      %vm1396 = vcmp.ge.f32.partialorder %v1000, 0.0
      %vm1397 = vcmp.ge.f32.partialorder %v1003, 0.0
      %vm1398 = vcmp.ge.f32.partialorder %v1008, 0.0
      %vm1399 = vcmp.ge.f32.partialorder %v1011, 0.0
      %vm1400 = vcmp.ge.f32.partialorder %v1016, 0.0
      %vm1401 = vcmp.ge.f32.partialorder %v1019, 0.0
      %vm1402 = vcmp.ge.f32.partialorder %v1024, 0.0
      %vm1403 = vcmp.ge.f32.partialorder %v1027, 0.0
      %vm1404 = vcmp.ge.f32.partialorder %v1032, 0.0
      %vm1405 = vcmp.ge.f32.partialorder %v1035, 0.0
      %vm1406 = vcmp.ge.f32.partialorder %v1040, 0.0
      %vm1407 = vcmp.ge.f32.partialorder %v1043, 0.0
      %vm1408 = vcmp.ge.f32.partialorder %v1048, 0.0
      %vm1409 = vcmp.ge.f32.partialorder %v1051, 0.0
      %vm1410 = vcmp.ge.f32.partialorder %v1056, 0.0
      %vm1411 = vcmp.ge.f32.partialorder %v1059, 0.0
      %vm1412 = vcmp.ge.f32.partialorder %v1064, 0.0
      %vm1413 = vcmp.ge.f32.partialorder %v1067, 0.0
      %vm1414 = vcmp.ge.f32.partialorder %v1072, 0.0
      %vm1415 = vcmp.ge.f32.partialorder %v1075, 0.0
      %vm1416 = vcmp.ge.f32.partialorder %v1080, 0.0
      %vm1417 = vcmp.ge.f32.partialorder %v1083, 0.0
      %vm1418 = vcmp.ge.f32.partialorder %v1088, 0.0
      %vm1419 = vcmp.ge.f32.partialorder %v1091, 0.0
      %vm1420 = vcmp.ge.f32.partialorder %v1096, 0.0
      %vm1421 = vcmp.ge.f32.partialorder %v1099, 0.0
      %vm1422 = vcmp.ge.f32.partialorder %v1104, 0.0
      %vm1423 = vcmp.ge.f32.partialorder %v1107, 0.0
      %vm1424 = vcmp.ge.f32.partialorder %v1112, 0.0
      %vm1425 = vcmp.ge.f32.partialorder %v1115, 0.0
      %vm1426 = vcmp.ge.f32.partialorder %v1120, 0.0
      %vm1427 = vcmp.ge.f32.partialorder %v1123, 0.0
      %vm1428 = vcmp.ge.f32.partialorder %v1128, 0.0
      %vm1429 = vcmp.ge.f32.partialorder %v1131, 0.0
      %vm1430 = vcmp.ge.f32.partialorder %v1136, 0.0
      %vm1431 = vcmp.ge.f32.partialorder %v1139, 0.0
      %vm1432 = vcmp.ge.f32.partialorder %v1144, 0.0
      %vm1433 = vcmp.ge.f32.partialorder %v1147, 0.0
      %vm1434 = vcmp.ge.f32.partialorder %v1152, 0.0
      %vm1435 = vcmp.ge.f32.partialorder %v1155, 0.0
      %vm1436 = vcmp.ge.f32.partialorder %v1160, 0.0
      %vm1437 = vcmp.ge.f32.partialorder %v1163, 0.0
      %vm1438 = vcmp.ge.f32.partialorder %v1168, 0.0
      %vm1439 = vcmp.ge.f32.partialorder %v1171, 0.0
      %vm1440 = vcmp.ge.f32.partialorder %v1176, 0.0
      %vm1441 = vcmp.ge.f32.partialorder %v1179, 0.0
      %vm1442 = vcmp.ge.f32.partialorder %v1184, 0.0
      %vm1443 = vcmp.ge.f32.partialorder %v1187, 0.0
      %vm1444 = vcmp.ge.f32.partialorder %v1192, 0.0
      %vm1445 = vcmp.ge.f32.partialorder %v1195, 0.0
      %vm1446 = vcmp.ge.f32.partialorder %v1200, 0.0
      %vm1447 = vcmp.ge.f32.partialorder %v1203, 0.0
      %vm1448 = vcmp.ge.f32.partialorder %v1208, 0.0
      %vm1449 = vcmp.ge.f32.partialorder %v1211, 0.0
      %vm1450 = vcmp.ge.f32.partialorder %v1216, 0.0
      %vm1451 = vcmp.ge.f32.partialorder %v1219, 0.0
      %vm1452 = vcmp.ge.f32.partialorder %v1224, 0.0
      %vm1453 = vcmp.ge.f32.partialorder %v1227, 0.0
      %vm1454 = vcmp.ge.f32.partialorder %v1232, 0.0
      %vm1455 = vcmp.ge.f32.partialorder %v1235, 0.0
      %vm1456 = vcmp.ge.f32.partialorder %v1240, 0.0
      %vm1457 = vcmp.ge.f32.partialorder %v1243, 0.0
      %vm1458 = vcmp.ge.f32.partialorder %v1248, 0.0
      %vm1459 = vcmp.ge.f32.partialorder %v1251, 0.0
      %vm1460 = vcmp.ge.f32.partialorder %v1256, 0.0
      %vm1461 = vcmp.ge.f32.partialorder %v1259, 0.0
      %vm1462 = vcmp.ge.f32.partialorder %v1264, 0.0
      %vm1463 = vcmp.ge.f32.partialorder %v1267, 0.0
      %vm1464 = vcmp.ge.f32.partialorder %v1272, 0.0
      %vm1465 = vcmp.ge.f32.partialorder %v1275, 0.0
      %vm1466 = vcmp.ge.f32.partialorder %v1280, 0.0
      %vm1467 = vcmp.ge.f32.partialorder %v1283, 0.0
      %vm1468 = vcmp.ge.f32.partialorder %v1288, 0.0
      %vm1469 = vcmp.ge.f32.partialorder %v1291, 0.0
      %vm1470 = vcmp.ge.f32.partialorder %v1296, 0.0
      %vm1471 = vcmp.ge.f32.partialorder %v1299, 0.0
      %vm1472 = vcmp.ge.f32.partialorder %v1304, 0.0
      %vm1473 = vcmp.ge.f32.partialorder %v1307, 0.0
      %vm1474 = vcmp.ge.f32.partialorder %v1312, 0.0
      %vm1475 = vcmp.ge.f32.partialorder %v1315, 0.0
      %vm1476 = vcmp.ge.f32.partialorder %v1320, 0.0
      %vm1477 = vcmp.ge.f32.partialorder %v1323, 0.0
      %vm1478 = vcmp.ge.f32.partialorder %v1328, 0.0
      %vm1479 = vcmp.ge.f32.partialorder %v1331, 0.0
      %vm1480 = vcmp.ge.f32.partialorder %v1336, 0.0
      %vm1481 = vcmp.ge.f32.partialorder %v1339, 0.0
      %vm1482 = vcmp.ge.f32.partialorder %v1344, 0.0
      %vm1483 = vcmp.ge.f32.partialorder %v1347, 0.0
      %vm1484 = vcmp.ge.f32.partialorder %v1352, 0.0
      %vm1485 = vcmp.ge.f32.partialorder %v1355, 0.0
      %v1486 = vmul.f32 %v848, 0.2
      %v1487 = vmul.f32 %v851, 0.2
      %v1488 = vmul.f32 %v856, 0.2
      %v1489 = vmul.f32 %v859, 0.2
      %v1490 = vmul.f32 %v864, 0.2
      %v1491 = vmul.f32 %v867, 0.2
      %v1492 = vmul.f32 %v872, 0.2
      %v1493 = vmul.f32 %v875, 0.2
      %v1494 = vmul.f32 %v880, 0.2
      %v1495 = vmul.f32 %v883, 0.2
      %v1496 = vmul.f32 %v888, 0.2
      %v1497 = vmul.f32 %v891, 0.2
      %v1498 = vmul.f32 %v896, 0.2
      %v1499 = vmul.f32 %v899, 0.2
      %v1500 = vmul.f32 %v904, 0.2
      %v1501 = vmul.f32 %v907, 0.2
      %v1502 = vmul.f32 %v912, 0.2
      %v1503 = vmul.f32 %v915, 0.2
      %v1504 = vmul.f32 %v920, 0.2
      %v1505 = vmul.f32 %v923, 0.2
      %v1506 = vmul.f32 %v928, 0.2
      %v1507 = vmul.f32 %v931, 0.2
      %v1508 = vmul.f32 %v936, 0.2
      %v1509 = vmul.f32 %v939, 0.2
      %v1510 = vmul.f32 %v944, 0.2
      %v1511 = vmul.f32 %v947, 0.2
      %v1512 = vmul.f32 %v952, 0.2
      %v1513 = vmul.f32 %v955, 0.2
      %v1514 = vmul.f32 %v960, 0.2
      %v1515 = vmul.f32 %v963, 0.2
      %v1516 = vmul.f32 %v968, 0.2
      %v1517 = vmul.f32 %v971, 0.2
      %v1518 = vmul.f32 %v976, 0.2
      %v1519 = vmul.f32 %v979, 0.2
      %v1520 = vmul.f32 %v984, 0.2
      %v1521 = vmul.f32 %v987, 0.2
      %v1522 = vmul.f32 %v992, 0.2
      %v1523 = vmul.f32 %v995, 0.2
      %v1524 = vmul.f32 %v1000, 0.2
      %v1525 = vmul.f32 %v1003, 0.2
      %v1526 = vmul.f32 %v1008, 0.2
      %v1527 = vmul.f32 %v1011, 0.2
      %v1528 = vmul.f32 %v1016, 0.2
      %v1529 = vmul.f32 %v1019, 0.2
      %v1530 = vmul.f32 %v1024, 0.2
      %v1531 = vmul.f32 %v1027, 0.2
      %v1532 = vmul.f32 %v1032, 0.2
      %v1533 = vmul.f32 %v1035, 0.2
      %v1534 = vmul.f32 %v1040, 0.2
      %v1535 = vmul.f32 %v1043, 0.2
      %v1536 = vmul.f32 %v1048, 0.2
      %v1537 = vmul.f32 %v1051, 0.2
      %v1538 = vmul.f32 %v1056, 0.2
      %v1539 = vmul.f32 %v1059, 0.2
      %v1540 = vmul.f32 %v1064, 0.2
      %v1541 = vmul.f32 %v1067, 0.2
      %v1542 = vmul.f32 %v1072, 0.2
      %v1543 = vmul.f32 %v1075, 0.2
      %v1544 = vmul.f32 %v1080, 0.2
      %v1545 = vmul.f32 %v1083, 0.2
      %v1546 = vmul.f32 %v1088, 0.2
      %v1547 = vmul.f32 %v1091, 0.2
      %v1548 = vmul.f32 %v1096, 0.2
      %v1549 = vmul.f32 %v1099, 0.2
      %v1550 = vmul.f32 %v1104, 0.2
      %v1551 = vmul.f32 %v1107, 0.2
      %v1552 = vmul.f32 %v1112, 0.2
      %v1553 = vmul.f32 %v1115, 0.2
      %v1554 = vmul.f32 %v1120, 0.2
      %v1555 = vmul.f32 %v1123, 0.2
      %v1556 = vmul.f32 %v1128, 0.2
      %v1557 = vmul.f32 %v1131, 0.2
      %v1558 = vmul.f32 %v1136, 0.2
      %v1559 = vmul.f32 %v1139, 0.2
      %v1560 = vmul.f32 %v1144, 0.2
      %v1561 = vmul.f32 %v1147, 0.2
      %v1562 = vmul.f32 %v1152, 0.2
      %v1563 = vmul.f32 %v1155, 0.2
      %v1564 = vmul.f32 %v1160, 0.2
      %v1565 = vmul.f32 %v1163, 0.2
      %v1566 = vmul.f32 %v1168, 0.2
      %v1567 = vmul.f32 %v1171, 0.2
      %v1568 = vmul.f32 %v1176, 0.2
      %v1569 = vmul.f32 %v1179, 0.2
      %v1570 = vmul.f32 %v1184, 0.2
      %v1571 = vmul.f32 %v1187, 0.2
      %v1572 = vmul.f32 %v1192, 0.2
      %v1573 = vmul.f32 %v1195, 0.2
      %v1574 = vmul.f32 %v1200, 0.2
      %v1575 = vmul.f32 %v1203, 0.2
      %v1576 = vmul.f32 %v1208, 0.2
      %v1577 = vmul.f32 %v1211, 0.2
      %v1578 = vmul.f32 %v1216, 0.2
      %v1579 = vmul.f32 %v1219, 0.2
      %v1580 = vmul.f32 %v1224, 0.2
      %v1581 = vmul.f32 %v1227, 0.2
      %v1582 = vmul.f32 %v1232, 0.2
      %v1583 = vmul.f32 %v1235, 0.2
      %v1584 = vmul.f32 %v1240, 0.2
      %v1585 = vmul.f32 %v1243, 0.2
      %v1586 = vmul.f32 %v1248, 0.2
      %v1587 = vmul.f32 %v1251, 0.2
      %v1588 = vmul.f32 %v1256, 0.2
      %v1589 = vmul.f32 %v1259, 0.2
      %v1590 = vmul.f32 %v1264, 0.2
      %v1591 = vmul.f32 %v1267, 0.2
      %v1592 = vmul.f32 %v1272, 0.2
      %v1593 = vmul.f32 %v1275, 0.2
      %v1594 = vmul.f32 %v1280, 0.2
      %v1595 = vmul.f32 %v1283, 0.2
      %v1596 = vmul.f32 %v1288, 0.2
      %v1597 = vmul.f32 %v1291, 0.2
      %v1598 = vmul.f32 %v1296, 0.2
      %v1599 = vmul.f32 %v1299, 0.2
      %v1600 = vmul.f32 %v1304, 0.2
      %v1601 = vmul.f32 %v1307, 0.2
      %v1602 = vmul.f32 %v1312, 0.2
      %v1603 = vmul.f32 %v1315, 0.2
      %v1604 = vmul.f32 %v1320, 0.2
      %v1605 = vmul.f32 %v1323, 0.2
      %v1606 = vmul.f32 %v1328, 0.2
      %v1607 = vmul.f32 %v1331, 0.2
      %v1608 = vmul.f32 %v1336, 0.2
      %v1609 = vmul.f32 %v1339, 0.2
      %v1610 = vmul.f32 %v1344, 0.2
      %v1611 = vmul.f32 %v1347, 0.2
      %v1612 = vmul.f32 %v1352, 0.2
      %v1613 = vmul.f32 %v1355, 0.2
      %v1614 = vsel %vm1358, %v848, %v1486
      %v1615 = vsel %vm1359, %v851, %v1487
      %v1616 = vsel %vm1360, %v856, %v1488
      %v1617 = vsel %vm1361, %v859, %v1489
      %v1618 = vsel %vm1362, %v864, %v1490
      %v1619 = vsel %vm1363, %v867, %v1491
      %v1620 = vsel %vm1364, %v872, %v1492
      %v1621 = vsel %vm1365, %v875, %v1493
      %v1622 = vsel %vm1366, %v880, %v1494
      %v1623 = vsel %vm1367, %v883, %v1495
      %v1624 = vsel %vm1368, %v888, %v1496
      %v1625 = vsel %vm1369, %v891, %v1497
      %v1626 = vsel %vm1370, %v896, %v1498
      %v1627 = vsel %vm1371, %v899, %v1499
      %v1628 = vsel %vm1372, %v904, %v1500
      %v1629 = vsel %vm1373, %v907, %v1501
      %v1630 = vsel %vm1374, %v912, %v1502
      %v1631 = vsel %vm1375, %v915, %v1503
      %v1632 = vsel %vm1376, %v920, %v1504
      %v1633 = vsel %vm1377, %v923, %v1505
      %v1634 = vsel %vm1378, %v928, %v1506
      %v1635 = vsel %vm1379, %v931, %v1507
      %v1636 = vsel %vm1380, %v936, %v1508
      %v1637 = vsel %vm1381, %v939, %v1509
      %v1638 = vsel %vm1382, %v944, %v1510
      %v1639 = vsel %vm1383, %v947, %v1511
      %v1640 = vsel %vm1384, %v952, %v1512
      %v1641 = vsel %vm1385, %v955, %v1513
      %v1642 = vsel %vm1386, %v960, %v1514
      %v1643 = vsel %vm1387, %v963, %v1515
      %v1644 = vsel %vm1388, %v968, %v1516
      %v1645 = vsel %vm1389, %v971, %v1517
      %v1646 = vsel %vm1390, %v976, %v1518
      %v1647 = vsel %vm1391, %v979, %v1519
      %v1648 = vsel %vm1392, %v984, %v1520
      %v1649 = vsel %vm1393, %v987, %v1521
      %v1650 = vsel %vm1394, %v992, %v1522
      %v1651 = vsel %vm1395, %v995, %v1523
      %v1652 = vsel %vm1396, %v1000, %v1524
      %v1653 = vsel %vm1397, %v1003, %v1525
      %v1654 = vsel %vm1398, %v1008, %v1526
      %v1655 = vsel %vm1399, %v1011, %v1527
      %v1656 = vsel %vm1400, %v1016, %v1528
      %v1657 = vsel %vm1401, %v1019, %v1529
      %v1658 = vsel %vm1402, %v1024, %v1530
      %v1659 = vsel %vm1403, %v1027, %v1531
      %v1660 = vsel %vm1404, %v1032, %v1532
      %v1661 = vsel %vm1405, %v1035, %v1533
      %v1662 = vsel %vm1406, %v1040, %v1534
      %v1663 = vsel %vm1407, %v1043, %v1535
      %v1664 = vsel %vm1408, %v1048, %v1536
      %v1665 = vsel %vm1409, %v1051, %v1537
      %v1666 = vsel %vm1410, %v1056, %v1538
      %v1667 = vsel %vm1411, %v1059, %v1539
      %v1668 = vsel %vm1412, %v1064, %v1540
      %v1669 = vsel %vm1413, %v1067, %v1541
      %v1670 = vsel %vm1414, %v1072, %v1542
      %v1671 = vsel %vm1415, %v1075, %v1543
      %v1672 = vsel %vm1416, %v1080, %v1544
      %v1673 = vsel %vm1417, %v1083, %v1545
      %v1674 = vsel %vm1418, %v1088, %v1546
      %v1675 = vsel %vm1419, %v1091, %v1547
      %v1676 = vsel %vm1420, %v1096, %v1548
      %v1677 = vsel %vm1421, %v1099, %v1549
      %v1678 = vsel %vm1422, %v1104, %v1550
      %v1679 = vsel %vm1423, %v1107, %v1551
      %v1680 = vsel %vm1424, %v1112, %v1552
      %v1681 = vsel %vm1425, %v1115, %v1553
      %v1682 = vsel %vm1426, %v1120, %v1554
      %v1683 = vsel %vm1427, %v1123, %v1555
      %v1684 = vsel %vm1428, %v1128, %v1556
      %v1685 = vsel %vm1429, %v1131, %v1557
      %v1686 = vsel %vm1430, %v1136, %v1558
      %v1687 = vsel %vm1431, %v1139, %v1559
      %v1688 = vsel %vm1432, %v1144, %v1560
      %v1689 = vsel %vm1433, %v1147, %v1561
      %v1690 = vsel %vm1434, %v1152, %v1562
      %v1691 = vsel %vm1435, %v1155, %v1563
      %v1692 = vsel %vm1436, %v1160, %v1564
      %v1693 = vsel %vm1437, %v1163, %v1565
      %v1694 = vsel %vm1438, %v1168, %v1566
      %v1695 = vsel %vm1439, %v1171, %v1567
      %v1696 = vsel %vm1440, %v1176, %v1568
      %v1697 = vsel %vm1441, %v1179, %v1569
      %v1698 = vsel %vm1442, %v1184, %v1570
      %v1699 = vsel %vm1443, %v1187, %v1571
      %v1700 = vsel %vm1444, %v1192, %v1572
      %v1701 = vsel %vm1445, %v1195, %v1573
      %v1702 = vsel %vm1446, %v1200, %v1574
      %v1703 = vsel %vm1447, %v1203, %v1575
      %v1704 = vsel %vm1448, %v1208, %v1576
      %v1705 = vsel %vm1449, %v1211, %v1577
      %v1706 = vsel %vm1450, %v1216, %v1578
      %v1707 = vsel %vm1451, %v1219, %v1579
      %v1708 = vsel %vm1452, %v1224, %v1580
      %v1709 = vsel %vm1453, %v1227, %v1581
      %v1710 = vsel %vm1454, %v1232, %v1582
      %v1711 = vsel %vm1455, %v1235, %v1583
      %v1712 = vsel %vm1456, %v1240, %v1584
      %v1713 = vsel %vm1457, %v1243, %v1585
      %v1714 = vsel %vm1458, %v1248, %v1586
      %v1715 = vsel %vm1459, %v1251, %v1587
      %v1716 = vsel %vm1460, %v1256, %v1588
      %v1717 = vsel %vm1461, %v1259, %v1589
      %v1718 = vsel %vm1462, %v1264, %v1590
      %v1719 = vsel %vm1463, %v1267, %v1591
      %v1720 = vsel %vm1464, %v1272, %v1592
      %v1721 = vsel %vm1465, %v1275, %v1593
      %v1722 = vsel %vm1466, %v1280, %v1594
      %v1723 = vsel %vm1467, %v1283, %v1595
      %v1724 = vsel %vm1468, %v1288, %v1596
      %v1725 = vsel %vm1469, %v1291, %v1597
      %v1726 = vsel %vm1470, %v1296, %v1598
      %v1727 = vsel %vm1471, %v1299, %v1599
      %v1728 = vsel %vm1472, %v1304, %v1600
      %v1729 = vsel %vm1473, %v1307, %v1601
      %v1730 = vsel %vm1474, %v1312, %v1602
      %v1731 = vsel %vm1475, %v1315, %v1603
      %v1732 = vsel %vm1476, %v1320, %v1604
      %v1733 = vsel %vm1477, %v1323, %v1605
      %v1734 = vsel %vm1478, %v1328, %v1606
      %v1735 = vsel %vm1479, %v1331, %v1607
      %v1736 = vsel %vm1480, %v1336, %v1608
      %v1737 = vsel %vm1481, %v1339, %v1609
      %v1738 = vsel %vm1482, %v1344, %v1610
      %v1739 = vsel %vm1483, %v1347, %v1611
      %v1740 = vsel %vm1484, %v1352, %v1612
      %v1741 = vsel %vm1485, %v1355, %v1613
      %v1742 = vpack.c.bf16 %v1615, %v1614
      %v1743 = vpack.c.bf16 %v1617, %v1616
      %v1744 = vpack.c.bf16 %v1619, %v1618
      %v1745 = vpack.c.bf16 %v1621, %v1620
      %v1746 = vpack.c.bf16 %v1623, %v1622
      %v1747 = vpack.c.bf16 %v1625, %v1624
      %v1748 = vpack.c.bf16 %v1627, %v1626
      %v1749 = vpack.c.bf16 %v1629, %v1628
      %v1750 = vpack.c.bf16 %v1631, %v1630
      %v1751 = vpack.c.bf16 %v1633, %v1632
      %v1752 = vpack.c.bf16 %v1635, %v1634
      %v1753 = vpack.c.bf16 %v1637, %v1636
      %v1754 = vpack.c.bf16 %v1639, %v1638
      %v1755 = vpack.c.bf16 %v1641, %v1640
      %v1756 = vpack.c.bf16 %v1643, %v1642
      %v1757 = vpack.c.bf16 %v1645, %v1644
      %v1758 = vpack.c.bf16 %v1647, %v1646
      %v1759 = vpack.c.bf16 %v1649, %v1648
      %v1760 = vpack.c.bf16 %v1651, %v1650
      %v1761 = vpack.c.bf16 %v1653, %v1652
      %v1762 = vpack.c.bf16 %v1655, %v1654
      %v1763 = vpack.c.bf16 %v1657, %v1656
      %v1764 = vpack.c.bf16 %v1659, %v1658
      %v1765 = vpack.c.bf16 %v1661, %v1660
      %v1766 = vpack.c.bf16 %v1663, %v1662
      %v1767 = vpack.c.bf16 %v1665, %v1664
      %v1768 = vpack.c.bf16 %v1667, %v1666
      %v1769 = vpack.c.bf16 %v1669, %v1668
      %v1770 = vpack.c.bf16 %v1671, %v1670
      %v1771 = vpack.c.bf16 %v1673, %v1672
      %v1772 = vpack.c.bf16 %v1675, %v1674
      %v1773 = vpack.c.bf16 %v1677, %v1676
      %v1774 = vpack.c.bf16 %v1679, %v1678
      %v1775 = vpack.c.bf16 %v1681, %v1680
      %v1776 = vpack.c.bf16 %v1683, %v1682
      %v1777 = vpack.c.bf16 %v1685, %v1684
      %v1778 = vpack.c.bf16 %v1687, %v1686
      %v1779 = vpack.c.bf16 %v1689, %v1688
      %v1780 = vpack.c.bf16 %v1691, %v1690
      %v1781 = vpack.c.bf16 %v1693, %v1692
      %v1782 = vpack.c.bf16 %v1695, %v1694
      %v1783 = vpack.c.bf16 %v1697, %v1696
      %v1784 = vpack.c.bf16 %v1699, %v1698
      %v1785 = vpack.c.bf16 %v1701, %v1700
      %v1786 = vpack.c.bf16 %v1703, %v1702
      %v1787 = vpack.c.bf16 %v1705, %v1704
      %v1788 = vpack.c.bf16 %v1707, %v1706
      %v1789 = vpack.c.bf16 %v1709, %v1708
      %v1790 = vpack.c.bf16 %v1711, %v1710
      %v1791 = vpack.c.bf16 %v1713, %v1712
      %v1792 = vpack.c.bf16 %v1715, %v1714
      %v1793 = vpack.c.bf16 %v1717, %v1716
      %v1794 = vpack.c.bf16 %v1719, %v1718
      %v1795 = vpack.c.bf16 %v1721, %v1720
      %v1796 = vpack.c.bf16 %v1723, %v1722
      %v1797 = vpack.c.bf16 %v1725, %v1724
      %v1798 = vpack.c.bf16 %v1727, %v1726
      %v1799 = vpack.c.bf16 %v1729, %v1728
      %v1800 = vpack.c.bf16 %v1731, %v1730
      %v1801 = vpack.c.bf16 %v1733, %v1732
      %v1802 = vpack.c.bf16 %v1735, %v1734
      %v1803 = vpack.c.bf16 %v1737, %v1736
      %v1804 = vpack.c.bf16 %v1739, %v1738
      %v1805 = vpack.c.bf16 %v1741, %v1740
      %v1870 = vunpack.c.l.b16 %v1742
      %v1871 = vunpack.c.h.b16 %v1742
      %v1872 = vunpack.c.l.b16 %v1743
      %v1873 = vunpack.c.h.b16 %v1743
      %v1874 = vunpack.c.l.b16 %v1744
      %v1875 = vunpack.c.h.b16 %v1744
      %v1876 = vunpack.c.l.b16 %v1745
      %v1877 = vunpack.c.h.b16 %v1745
      %v1878 = vunpack.c.l.b16 %v1746
      %v1879 = vunpack.c.h.b16 %v1746
      %v1880 = vunpack.c.l.b16 %v1747
      %v1881 = vunpack.c.h.b16 %v1747
      %v1882 = vunpack.c.l.b16 %v1748
      %v1883 = vunpack.c.h.b16 %v1748
      %v1884 = vunpack.c.l.b16 %v1749
      %v1885 = vunpack.c.h.b16 %v1749
      %v1886 = vunpack.c.l.b16 %v1750
      %v1887 = vunpack.c.h.b16 %v1750
      %v1888 = vunpack.c.l.b16 %v1751
      %v1889 = vunpack.c.h.b16 %v1751
      %v1890 = vunpack.c.l.b16 %v1752
      %v1891 = vunpack.c.h.b16 %v1752
      %v1892 = vunpack.c.l.b16 %v1753
      %v1893 = vunpack.c.h.b16 %v1753
      %v1894 = vunpack.c.l.b16 %v1754
      %v1895 = vunpack.c.h.b16 %v1754
      %v1896 = vunpack.c.l.b16 %v1755
      %v1897 = vunpack.c.h.b16 %v1755
      %v1898 = vunpack.c.l.b16 %v1756
      %v1899 = vunpack.c.h.b16 %v1756
      %v1900 = vunpack.c.l.b16 %v1757
      %v1901 = vunpack.c.h.b16 %v1757
      %v1902 = vunpack.c.l.b16 %v1758
      %v1903 = vunpack.c.h.b16 %v1758
      %v1904 = vunpack.c.l.b16 %v1759
      %v1905 = vunpack.c.h.b16 %v1759
      %v1906 = vunpack.c.l.b16 %v1760
      %v1907 = vunpack.c.h.b16 %v1760
      %v1908 = vunpack.c.l.b16 %v1761
      %v1909 = vunpack.c.h.b16 %v1761
      %v1910 = vunpack.c.l.b16 %v1762
      %v1911 = vunpack.c.h.b16 %v1762
      %v1912 = vunpack.c.l.b16 %v1763
      %v1913 = vunpack.c.h.b16 %v1763
      %v1914 = vunpack.c.l.b16 %v1764
      %v1915 = vunpack.c.h.b16 %v1764
      %v1916 = vunpack.c.l.b16 %v1765
      %v1917 = vunpack.c.h.b16 %v1765
      %v1918 = vunpack.c.l.b16 %v1766
      %v1919 = vunpack.c.h.b16 %v1766
      %v1920 = vunpack.c.l.b16 %v1767
      %v1921 = vunpack.c.h.b16 %v1767
      %v1922 = vunpack.c.l.b16 %v1768
      %v1923 = vunpack.c.h.b16 %v1768
      %v1924 = vunpack.c.l.b16 %v1769
      %v1925 = vunpack.c.h.b16 %v1769
      %v1926 = vunpack.c.l.b16 %v1770
      %v1927 = vunpack.c.h.b16 %v1770
      %v1928 = vunpack.c.l.b16 %v1771
      %v1929 = vunpack.c.h.b16 %v1771
      %v1930 = vunpack.c.l.b16 %v1772
      %v1931 = vunpack.c.h.b16 %v1772
      %v1932 = vunpack.c.l.b16 %v1773
      %v1933 = vunpack.c.h.b16 %v1773
      %v1934 = vunpack.c.l.b16 %v1774
      %v1935 = vunpack.c.h.b16 %v1774
      %v1936 = vunpack.c.l.b16 %v1775
      %v1937 = vunpack.c.h.b16 %v1775
      %v1938 = vunpack.c.l.b16 %v1776
      %v1939 = vunpack.c.h.b16 %v1776
      %v1940 = vunpack.c.l.b16 %v1777
      %v1941 = vunpack.c.h.b16 %v1777
      %v1942 = vunpack.c.l.b16 %v1778
      %v1943 = vunpack.c.h.b16 %v1778
      %v1944 = vunpack.c.l.b16 %v1779
      %v1945 = vunpack.c.h.b16 %v1779
      %v1946 = vunpack.c.l.b16 %v1780
      %v1947 = vunpack.c.h.b16 %v1780
      %v1948 = vunpack.c.l.b16 %v1781
      %v1949 = vunpack.c.h.b16 %v1781
      %v1950 = vunpack.c.l.b16 %v1782
      %v1951 = vunpack.c.h.b16 %v1782
      %v1952 = vunpack.c.l.b16 %v1783
      %v1953 = vunpack.c.h.b16 %v1783
      %v1954 = vunpack.c.l.b16 %v1784
      %v1955 = vunpack.c.h.b16 %v1784
      %v1956 = vunpack.c.l.b16 %v1785
      %v1957 = vunpack.c.h.b16 %v1785
      %v1958 = vunpack.c.l.b16 %v1786
      %v1959 = vunpack.c.h.b16 %v1786
      %v1960 = vunpack.c.l.b16 %v1787
      %v1961 = vunpack.c.h.b16 %v1787
      %v1962 = vunpack.c.l.b16 %v1788
      %v1963 = vunpack.c.h.b16 %v1788
      %v1964 = vunpack.c.l.b16 %v1789
      %v1965 = vunpack.c.h.b16 %v1789
      %v1966 = vunpack.c.l.b16 %v1790
      %v1967 = vunpack.c.h.b16 %v1790
      %v1968 = vunpack.c.l.b16 %v1791
      %v1969 = vunpack.c.h.b16 %v1791
      %v1970 = vunpack.c.l.b16 %v1792
      %v1971 = vunpack.c.h.b16 %v1792
      %v1972 = vunpack.c.l.b16 %v1793
      %v1973 = vunpack.c.h.b16 %v1793
      %v1974 = vunpack.c.l.b16 %v1794
      %v1975 = vunpack.c.h.b16 %v1794
      %v1976 = vunpack.c.l.b16 %v1795
      %v1977 = vunpack.c.h.b16 %v1795
      %v1978 = vunpack.c.l.b16 %v1796
      %v1979 = vunpack.c.h.b16 %v1796
      %v1980 = vunpack.c.l.b16 %v1797
      %v1981 = vunpack.c.h.b16 %v1797
      %v1982 = vunpack.c.l.b16 %v1798
      %v1983 = vunpack.c.h.b16 %v1798
      %v1984 = vunpack.c.l.b16 %v1799
      %v1985 = vunpack.c.h.b16 %v1799
      %v1986 = vunpack.c.l.b16 %v1800
      %v1987 = vunpack.c.h.b16 %v1800
      %v1988 = vunpack.c.l.b16 %v1801
      %v1989 = vunpack.c.h.b16 %v1801
      %v1990 = vunpack.c.l.b16 %v1802
      %v1991 = vunpack.c.h.b16 %v1802
      %v1992 = vunpack.c.l.b16 %v1803
      %v1993 = vunpack.c.h.b16 %v1803
      %v1994 = vunpack.c.l.b16 %v1804
      %v1995 = vunpack.c.h.b16 %v1804
      %v1996 = vunpack.c.l.b16 %v1805
      %v1997 = vunpack.c.h.b16 %v1805
      %v1998 = vpack.c.b16 %v1870, %v1870
      %v1999 = vpack.c.b16 %v1871, %v1871
      %v2000 = vpack.c.b16 %v1872, %v1872
      %v2001 = vpack.c.b16 %v1873, %v1873
      %v2002 = vpack.c.b16 %v1874, %v1874
      %v2003 = vpack.c.b16 %v1875, %v1875
      %v2004 = vpack.c.b16 %v1876, %v1876
      %v2005 = vpack.c.b16 %v1877, %v1877
      %v2006 = vpack.c.b16 %v1878, %v1878
      %v2007 = vpack.c.b16 %v1879, %v1879
      %v2008 = vpack.c.b16 %v1880, %v1880
      %v2009 = vpack.c.b16 %v1881, %v1881
      %v2010 = vpack.c.b16 %v1882, %v1882
      %v2011 = vpack.c.b16 %v1883, %v1883
      %v2012 = vpack.c.b16 %v1884, %v1884
      %v2013 = vpack.c.b16 %v1885, %v1885
      %v2014 = vpack.c.b16 %v1886, %v1886
      %v2015 = vpack.c.b16 %v1887, %v1887
      %v2016 = vpack.c.b16 %v1888, %v1888
      %v2017 = vpack.c.b16 %v1889, %v1889
      %v2018 = vpack.c.b16 %v1890, %v1890
      %v2019 = vpack.c.b16 %v1891, %v1891
      %v2020 = vpack.c.b16 %v1892, %v1892
      %v2021 = vpack.c.b16 %v1893, %v1893
      %v2022 = vpack.c.b16 %v1894, %v1894
      %v2023 = vpack.c.b16 %v1895, %v1895
      %v2024 = vpack.c.b16 %v1896, %v1896
      %v2025 = vpack.c.b16 %v1897, %v1897
      %v2026 = vpack.c.b16 %v1898, %v1898
      %v2027 = vpack.c.b16 %v1899, %v1899
      %v2028 = vpack.c.b16 %v1900, %v1900
      %v2029 = vpack.c.b16 %v1901, %v1901
      %v2030 = vpack.c.b16 %v1902, %v1902
      %v2031 = vpack.c.b16 %v1903, %v1903
      %v2032 = vpack.c.b16 %v1904, %v1904
      %v2033 = vpack.c.b16 %v1905, %v1905
      %v2034 = vpack.c.b16 %v1906, %v1906
      %v2035 = vpack.c.b16 %v1907, %v1907
      %v2036 = vpack.c.b16 %v1908, %v1908
      %v2037 = vpack.c.b16 %v1909, %v1909
      %v2038 = vpack.c.b16 %v1910, %v1910
      %v2039 = vpack.c.b16 %v1911, %v1911
      %v2040 = vpack.c.b16 %v1912, %v1912
      %v2041 = vpack.c.b16 %v1913, %v1913
      %v2042 = vpack.c.b16 %v1914, %v1914
      %v2043 = vpack.c.b16 %v1915, %v1915
      %v2044 = vpack.c.b16 %v1916, %v1916
      %v2045 = vpack.c.b16 %v1917, %v1917
      %v2046 = vpack.c.b16 %v1918, %v1918
      %v2047 = vpack.c.b16 %v1919, %v1919
      %v2048 = vpack.c.b16 %v1920, %v1920
      %v2049 = vpack.c.b16 %v1921, %v1921
      %v2050 = vpack.c.b16 %v1922, %v1922
      %v2051 = vpack.c.b16 %v1923, %v1923
      %v2052 = vpack.c.b16 %v1924, %v1924
      %v2053 = vpack.c.b16 %v1925, %v1925
      %v2054 = vpack.c.b16 %v1926, %v1926
      %v2055 = vpack.c.b16 %v1927, %v1927
      %v2056 = vpack.c.b16 %v1928, %v1928
      %v2057 = vpack.c.b16 %v1929, %v1929
      %v2058 = vpack.c.b16 %v1930, %v1930
      %v2059 = vpack.c.b16 %v1931, %v1931
      %v2060 = vpack.c.b16 %v1932, %v1932
      %v2061 = vpack.c.b16 %v1933, %v1933
      %v2062 = vpack.c.b16 %v1934, %v1934
      %v2063 = vpack.c.b16 %v1935, %v1935
      %v2064 = vpack.c.b16 %v1936, %v1936
      %v2065 = vpack.c.b16 %v1937, %v1937
      %v2066 = vpack.c.b16 %v1938, %v1938
      %v2067 = vpack.c.b16 %v1939, %v1939
      %v2068 = vpack.c.b16 %v1940, %v1940
      %v2069 = vpack.c.b16 %v1941, %v1941
      %v2070 = vpack.c.b16 %v1942, %v1942
      %v2071 = vpack.c.b16 %v1943, %v1943
      %v2072 = vpack.c.b16 %v1944, %v1944
      %v2073 = vpack.c.b16 %v1945, %v1945
      %v2074 = vpack.c.b16 %v1946, %v1946
      %v2075 = vpack.c.b16 %v1947, %v1947
      %v2076 = vpack.c.b16 %v1948, %v1948
      %v2077 = vpack.c.b16 %v1949, %v1949
      %v2078 = vpack.c.b16 %v1950, %v1950
      %v2079 = vpack.c.b16 %v1951, %v1951
      %v2080 = vpack.c.b16 %v1952, %v1952
      %v2081 = vpack.c.b16 %v1953, %v1953
      %v2082 = vpack.c.b16 %v1954, %v1954
      %v2083 = vpack.c.b16 %v1955, %v1955
      %v2084 = vpack.c.b16 %v1956, %v1956
      %v2085 = vpack.c.b16 %v1957, %v1957
      %v2086 = vpack.c.b16 %v1958, %v1958
      %v2087 = vpack.c.b16 %v1959, %v1959
      %v2088 = vpack.c.b16 %v1960, %v1960
      %v2089 = vpack.c.b16 %v1961, %v1961
      %v2090 = vpack.c.b16 %v1962, %v1962
      %v2091 = vpack.c.b16 %v1963, %v1963
      %v2092 = vpack.c.b16 %v1964, %v1964
      %v2093 = vpack.c.b16 %v1965, %v1965
      %v2094 = vpack.c.b16 %v1966, %v1966
      %v2095 = vpack.c.b16 %v1967, %v1967
      %v2096 = vpack.c.b16 %v1968, %v1968
      %v2097 = vpack.c.b16 %v1969, %v1969
      %v2098 = vpack.c.b16 %v1970, %v1970
      %v2099 = vpack.c.b16 %v1971, %v1971
      %v2100 = vpack.c.b16 %v1972, %v1972
      %v2101 = vpack.c.b16 %v1973, %v1973
      %v2102 = vpack.c.b16 %v1974, %v1974
      %v2103 = vpack.c.b16 %v1975, %v1975
      %v2104 = vpack.c.b16 %v1976, %v1976
      %v2105 = vpack.c.b16 %v1977, %v1977
      %v2106 = vpack.c.b16 %v1978, %v1978
      %v2107 = vpack.c.b16 %v1979, %v1979
      %v2108 = vpack.c.b16 %v1980, %v1980
      %v2109 = vpack.c.b16 %v1981, %v1981
      %v2110 = vpack.c.b16 %v1982, %v1982
      %v2111 = vpack.c.b16 %v1983, %v1983
      %v2112 = vpack.c.b16 %v1984, %v1984
      %v2113 = vpack.c.b16 %v1985, %v1985
      %v2114 = vpack.c.b16 %v1986, %v1986
      %v2115 = vpack.c.b16 %v1987, %v1987
      %v2116 = vpack.c.b16 %v1988, %v1988
      %v2117 = vpack.c.b16 %v1989, %v1989
      %v2118 = vpack.c.b16 %v1990, %v1990
      %v2119 = vpack.c.b16 %v1991, %v1991
      %v2120 = vpack.c.b16 %v1992, %v1992
      %v2121 = vpack.c.b16 %v1993, %v1993
      %v2122 = vpack.c.b16 %v1994, %v1994
      %v2123 = vpack.c.b16 %v1995, %v1995
      %v2124 = vpack.c.b16 %v1996, %v1996
      %v2125 = vpack.c.b16 %v1997, %v1997
      %vm2254 = vcmask 60416
      %2255 = vst.msk [vmem:[%s145] sm:$0xf] %vm2254, %v1998
      %2256 = vst.msk [vmem:[%s145 + $0x4] sm:$0xf] %vm2254, %v1999
      %2257 = vst.msk [vmem:[%s145 + $0x8] sm:$0xf] %vm2254, %v2000
      %2258 = vst.msk [vmem:[%s145 + $0xc] sm:$0xf] %vm2254, %v2001
      %2259 = vst.msk [vmem:[%s145 + $0x10] sm:$0xf] %vm2254, %v2002
      %2260 = vst.msk [vmem:[%s145 + $0x14] sm:$0xf] %vm2254, %v2003
      %2261 = vst.msk [vmem:[%s145 + $0x18] sm:$0xf] %vm2254, %v2004
      %2262 = vst.msk [vmem:[%s145 + $0x1c] sm:$0xf] %vm2254, %v2005
      %2263 = vst.msk [vmem:[%s145 + $0x20] sm:$0xf] %vm2254, %v2006
      %2264 = vst.msk [vmem:[%s145 + $0x24] sm:$0xf] %vm2254, %v2007
      %2265 = vst.msk [vmem:[%s145 + $0x28] sm:$0xf] %vm2254, %v2008
      %2266 = vst.msk [vmem:[%s145 + $0x2c] sm:$0xf] %vm2254, %v2009
      %2267 = vst.msk [vmem:[%s145 + $0x30] sm:$0xf] %vm2254, %v2010
      %2268 = vst.msk [vmem:[%s145 + $0x34] sm:$0xf] %vm2254, %v2011
      %2269 = vst.msk [vmem:[%s145 + $0x38] sm:$0xf] %vm2254, %v2012
      %2270 = vst.msk [vmem:[%s145 + $0x3c] sm:$0xf] %vm2254, %v2013
      %2271 = vst.msk [vmem:[%s145 + $0x40] sm:$0xf] %vm2254, %v2014
      %2272 = vst.msk [vmem:[%s145 + $0x44] sm:$0xf] %vm2254, %v2015
      %2273 = vst.msk [vmem:[%s145 + $0x48] sm:$0xf] %vm2254, %v2016
      %2274 = vst.msk [vmem:[%s145 + $0x4c] sm:$0xf] %vm2254, %v2017
      %2275 = vst.msk [vmem:[%s145 + $0x50] sm:$0xf] %vm2254, %v2018
      %2276 = vst.msk [vmem:[%s145 + $0x54] sm:$0xf] %vm2254, %v2019
      %2277 = vst.msk [vmem:[%s145 + $0x58] sm:$0xf] %vm2254, %v2020
      %2278 = vst.msk [vmem:[%s145 + $0x5c] sm:$0xf] %vm2254, %v2021
      %2279 = vst.msk [vmem:[%s145 + $0x60] sm:$0xf] %vm2254, %v2022
      %2280 = vst.msk [vmem:[%s145 + $0x64] sm:$0xf] %vm2254, %v2023
      %2281 = vst.msk [vmem:[%s145 + $0x68] sm:$0xf] %vm2254, %v2024
      %2282 = vst.msk [vmem:[%s145 + $0x6c] sm:$0xf] %vm2254, %v2025
      %2283 = vst.msk [vmem:[%s145 + $0x70] sm:$0xf] %vm2254, %v2026
      %2284 = vst.msk [vmem:[%s145 + $0x74] sm:$0xf] %vm2254, %v2027
      %2285 = vst.msk [vmem:[%s145 + $0x78] sm:$0xf] %vm2254, %v2028
      %2286 = vst.msk [vmem:[%s145 + $0x7c] sm:$0xf] %vm2254, %v2029
      %2287 = vst.msk [vmem:[%s145 + $0x80] sm:$0xf] %vm2254, %v2030
      %2288 = vst.msk [vmem:[%s145 + $0x84] sm:$0xf] %vm2254, %v2031
      %2289 = vst.msk [vmem:[%s145 + $0x88] sm:$0xf] %vm2254, %v2032
      %2290 = vst.msk [vmem:[%s145 + $0x8c] sm:$0xf] %vm2254, %v2033
      %2291 = vst.msk [vmem:[%s145 + $0x90] sm:$0xf] %vm2254, %v2034
      %2292 = vst.msk [vmem:[%s145 + $0x94] sm:$0xf] %vm2254, %v2035
      %2293 = vst.msk [vmem:[%s145 + $0x98] sm:$0xf] %vm2254, %v2036
      %2294 = vst.msk [vmem:[%s145 + $0x9c] sm:$0xf] %vm2254, %v2037
      %2295 = vst.msk [vmem:[%s145 + $0xa0] sm:$0xf] %vm2254, %v2038
      %2296 = vst.msk [vmem:[%s145 + $0xa4] sm:$0xf] %vm2254, %v2039
      %2297 = vst.msk [vmem:[%s145 + $0xa8] sm:$0xf] %vm2254, %v2040
      %2298 = vst.msk [vmem:[%s145 + $0xac] sm:$0xf] %vm2254, %v2041
      %2299 = vst.msk [vmem:[%s145 + $0xb0] sm:$0xf] %vm2254, %v2042
      %2300 = vst.msk [vmem:[%s145 + $0xb4] sm:$0xf] %vm2254, %v2043
      %2301 = vst.msk [vmem:[%s145 + $0xb8] sm:$0xf] %vm2254, %v2044
      %2302 = vst.msk [vmem:[%s145 + $0xbc] sm:$0xf] %vm2254, %v2045
      %2303 = vst.msk [vmem:[%s145 + $0xc0] sm:$0xf] %vm2254, %v2046
      %2304 = vst.msk [vmem:[%s145 + $0xc4] sm:$0xf] %vm2254, %v2047
      %2305 = vst.msk [vmem:[%s145 + $0xc8] sm:$0xf] %vm2254, %v2048
      %2306 = vst.msk [vmem:[%s145 + $0xcc] sm:$0xf] %vm2254, %v2049
      %2307 = vst.msk [vmem:[%s145 + $0xd0] sm:$0xf] %vm2254, %v2050
      %2308 = vst.msk [vmem:[%s145 + $0xd4] sm:$0xf] %vm2254, %v2051
      %2309 = vst.msk [vmem:[%s145 + $0xd8] sm:$0xf] %vm2254, %v2052
      %2310 = vst.msk [vmem:[%s145 + $0xdc] sm:$0xf] %vm2254, %v2053
      %2311 = vst.msk [vmem:[%s145 + $0xe0] sm:$0xf] %vm2254, %v2054
      %2312 = vst.msk [vmem:[%s145 + $0xe4] sm:$0xf] %vm2254, %v2055
      %2313 = vst.msk [vmem:[%s145 + $0xe8] sm:$0xf] %vm2254, %v2056
      %2314 = vst.msk [vmem:[%s145 + $0xec] sm:$0xf] %vm2254, %v2057
      %2315 = vst.msk [vmem:[%s145 + $0xf0] sm:$0xf] %vm2254, %v2058
      %2316 = vst.msk [vmem:[%s145 + $0xf4] sm:$0xf] %vm2254, %v2059
      %2317 = vst.msk [vmem:[%s145 + $0xf8] sm:$0xf] %vm2254, %v2060
      %2318 = vst.msk [vmem:[%s145 + $0xfc] sm:$0xf] %vm2254, %v2061
      %2319 = vst.msk [vmem:[%s145 + $0x100] sm:$0xf] %vm2254, %v2062
      %2320 = vst.msk [vmem:[%s145 + $0x104] sm:$0xf] %vm2254, %v2063
      %2321 = vst.msk [vmem:[%s145 + $0x108] sm:$0xf] %vm2254, %v2064
      %2322 = vst.msk [vmem:[%s145 + $0x10c] sm:$0xf] %vm2254, %v2065
      %2323 = vst.msk [vmem:[%s145 + $0x110] sm:$0xf] %vm2254, %v2066
      %2324 = vst.msk [vmem:[%s145 + $0x114] sm:$0xf] %vm2254, %v2067
      %2325 = vst.msk [vmem:[%s145 + $0x118] sm:$0xf] %vm2254, %v2068
      %2326 = vst.msk [vmem:[%s145 + $0x11c] sm:$0xf] %vm2254, %v2069
      %2327 = vst.msk [vmem:[%s145 + $0x120] sm:$0xf] %vm2254, %v2070
      %2328 = vst.msk [vmem:[%s145 + $0x124] sm:$0xf] %vm2254, %v2071
      %2329 = vst.msk [vmem:[%s145 + $0x128] sm:$0xf] %vm2254, %v2072
      %2330 = vst.msk [vmem:[%s145 + $0x12c] sm:$0xf] %vm2254, %v2073
      %2331 = vst.msk [vmem:[%s145 + $0x130] sm:$0xf] %vm2254, %v2074
      %2332 = vst.msk [vmem:[%s145 + $0x134] sm:$0xf] %vm2254, %v2075
      %2333 = vst.msk [vmem:[%s145 + $0x138] sm:$0xf] %vm2254, %v2076
      %2334 = vst.msk [vmem:[%s145 + $0x13c] sm:$0xf] %vm2254, %v2077
      %2335 = vst.msk [vmem:[%s145 + $0x140] sm:$0xf] %vm2254, %v2078
      %2336 = vst.msk [vmem:[%s145 + $0x144] sm:$0xf] %vm2254, %v2079
      %2337 = vst.msk [vmem:[%s145 + $0x148] sm:$0xf] %vm2254, %v2080
      %2338 = vst.msk [vmem:[%s145 + $0x14c] sm:$0xf] %vm2254, %v2081
      %2339 = vst.msk [vmem:[%s145 + $0x150] sm:$0xf] %vm2254, %v2082
      %2340 = vst.msk [vmem:[%s145 + $0x154] sm:$0xf] %vm2254, %v2083
      %2341 = vst.msk [vmem:[%s145 + $0x158] sm:$0xf] %vm2254, %v2084
      %2342 = vst.msk [vmem:[%s145 + $0x15c] sm:$0xf] %vm2254, %v2085
      %2343 = vst.msk [vmem:[%s145 + $0x160] sm:$0xf] %vm2254, %v2086
      %2344 = vst.msk [vmem:[%s145 + $0x164] sm:$0xf] %vm2254, %v2087
      %2345 = vst.msk [vmem:[%s145 + $0x168] sm:$0xf] %vm2254, %v2088
      %2346 = vst.msk [vmem:[%s145 + $0x16c] sm:$0xf] %vm2254, %v2089
      %2347 = vst.msk [vmem:[%s145 + $0x170] sm:$0xf] %vm2254, %v2090
      %2348 = vst.msk [vmem:[%s145 + $0x174] sm:$0xf] %vm2254, %v2091
      %2349 = vst.msk [vmem:[%s145 + $0x178] sm:$0xf] %vm2254, %v2092
      %2350 = vst.msk [vmem:[%s145 + $0x17c] sm:$0xf] %vm2254, %v2093
      %2351 = vst.msk [vmem:[%s145 + $0x180] sm:$0xf] %vm2254, %v2094
      %2352 = vst.msk [vmem:[%s145 + $0x184] sm:$0xf] %vm2254, %v2095
      %2353 = vst.msk [vmem:[%s145 + $0x188] sm:$0xf] %vm2254, %v2096
      %2354 = vst.msk [vmem:[%s145 + $0x18c] sm:$0xf] %vm2254, %v2097
      %2355 = vst.msk [vmem:[%s145 + $0x190] sm:$0xf] %vm2254, %v2098
      %2356 = vst.msk [vmem:[%s145 + $0x194] sm:$0xf] %vm2254, %v2099
      %2357 = vst.msk [vmem:[%s145 + $0x198] sm:$0xf] %vm2254, %v2100
      %2358 = vst.msk [vmem:[%s145 + $0x19c] sm:$0xf] %vm2254, %v2101
      %2359 = vst.msk [vmem:[%s145 + $0x1a0] sm:$0xf] %vm2254, %v2102
      %2360 = vst.msk [vmem:[%s145 + $0x1a4] sm:$0xf] %vm2254, %v2103
      %2361 = vst.msk [vmem:[%s145 + $0x1a8] sm:$0xf] %vm2254, %v2104
      %2362 = vst.msk [vmem:[%s145 + $0x1ac] sm:$0xf] %vm2254, %v2105
      %2363 = vst.msk [vmem:[%s145 + $0x1b0] sm:$0xf] %vm2254, %v2106
      %2364 = vst.msk [vmem:[%s145 + $0x1b4] sm:$0xf] %vm2254, %v2107
      %2365 = vst.msk [vmem:[%s145 + $0x1b8] sm:$0xf] %vm2254, %v2108
      %2366 = vst.msk [vmem:[%s145 + $0x1bc] sm:$0xf] %vm2254, %v2109
      %2367 = vst.msk [vmem:[%s145 + $0x1c0] sm:$0xf] %vm2254, %v2110
      %2368 = vst.msk [vmem:[%s145 + $0x1c4] sm:$0xf] %vm2254, %v2111
      %2369 = vst.msk [vmem:[%s145 + $0x1c8] sm:$0xf] %vm2254, %v2112
      %2370 = vst.msk [vmem:[%s145 + $0x1cc] sm:$0xf] %vm2254, %v2113
      %2371 = vst.msk [vmem:[%s145 + $0x1d0] sm:$0xf] %vm2254, %v2114
      %2372 = vst.msk [vmem:[%s145 + $0x1d4] sm:$0xf] %vm2254, %v2115
      %2373 = vst.msk [vmem:[%s145 + $0x1d8] sm:$0xf] %vm2254, %v2116
      %2374 = vst.msk [vmem:[%s145 + $0x1dc] sm:$0xf] %vm2254, %v2117
      %2375 = vst.msk [vmem:[%s145 + $0x1e0] sm:$0xf] %vm2254, %v2118
      %2376 = vst.msk [vmem:[%s145 + $0x1e4] sm:$0xf] %vm2254, %v2119
      %2377 = vst.msk [vmem:[%s145 + $0x1e8] sm:$0xf] %vm2254, %v2120
      %2378 = vst.msk [vmem:[%s145 + $0x1ec] sm:$0xf] %vm2254, %v2121
      %2379 = vst.msk [vmem:[%s145 + $0x1f0] sm:$0xf] %vm2254, %v2122
      %2380 = vst.msk [vmem:[%s145 + $0x1f4] sm:$0xf] %vm2254, %v2123
      %2381 = vst.msk [vmem:[%s145 + $0x1f8] sm:$0xf] %vm2254, %v2124
      %2382 = vst.msk [vmem:[%s145 + $0x1fc] sm:$0xf] %vm2254, %v2125
      %s2383 = smul.u32 128, %s13
      %p2384 = scmp.lt.s32.totalorder %s2383, 255
      %s2385 = scalar_select %p2384, %s2383, 255
      %s2386 = smul.addr %s2385, 4
      %s2387 = scalar_lea.vmem %s2, %s2386
      // Predicated region
      $region29: #{discriminator_forward.6} parent=27 // pred_check
        %p2388 = pneg %p78
      $region30: #{discriminator_forward.6} parent=27 // pred_check_branch
        %2390 = sbr.rel (%p2388) target = $region32
      $region31: #{discriminator_forward.6} parent=27 // pred_region
        %s2391 = smul.u32 128, %s13
      $region32: #{discriminator_forward.6} parent=27 // pred_fallthru
        _
    $region28: #{discriminator_forward.6} parent=5 // pred_fallthru
      _
    %p2392 = scmp.le.s32.totalorder 2, %s8
    // Predicated region
    $region33: #{discriminator_forward.6} parent=5 // pred_check
      %p2393 = pneg %p2392
    $region34: #{discriminator_forward.6} parent=5 // pred_check_branch
      %2395 = sbr.rel (%p2393) target = $region36
    $region35: #{discriminator_forward.6} parent=5 // pred_region
      %s2396 = ssub.s32 %s8, 2
      // Predicated region
      $region37: #{discriminator_forward.6} parent=35 // pred_check
        %p2397 = pneg %p84
      $region38: #{discriminator_forward.6} parent=35 // pred_check_branch
        %2399 = sbr.rel (%p2397) target = $region40
      $region39: #{discriminator_forward.6} parent=35 // pred_region
        %s2400 = smul.u32 128, %s14
        %p2401 = scmp.lt.s32.totalorder %s2400, 255
        %s2402 = scalar_select %p2401, %s2400, 255
        %s2403 = smul.addr %s2402, 4
        %s2404 = scalar_lea.vmem %s2, %s2403
      $region40: #{discriminator_forward.6} parent=35 // pred_fallthru
        _
    $region36: #{discriminator_forward.6} parent=5 // pred_fallthru
      _
  $region6: #{discriminator_forward.6} parent=0 // loop_footer
    %s12 = sadd.s32 1, %s8
  $region7: #{discriminator_forward.6} parent=0 // loop_footer_branch
    %7 = sbr.rel target = $region3
  $region8: #{discriminator_forward.6} parent=0 // loop_exit
    _

// kernel: discriminator_forward.7
$region0: #{discriminator_forward.7}
  #allocation0 [shape = 'u32[]', space=smem, size = 0x4, offset = 0x4, fixed_abs, tag = 'smem constant byte address 0x4 - core index']
  #allocation1 [shape = 'u32[144,128]{1,0:T(1,128)}', space=vmem, size = 0x12000, scoped, tag = 'internal scratch']
  %s0 = inlined_call_operand.vmem [shape: bf16[512,128], index: 0, kind: input, shape index: {}]
  %s1 = inlined_call_operand.vmem [shape: bf16[128,16], index: 1, kind: input, shape index: {}]
  %s2 = inlined_call_operand.vmem [shape: bf16[512,16], index: 2, kind: output, shape index: {0}]
  %s3 = inlined_call_operand.vmem [shape: f32[2,16], index: 3, kind: output, shape index: {1}]
  %4 = xla_tuple %s2, %s3
  %s5 = sld [smem:[#allocation0]]
  $region53: #{discriminator_forward.7} parent=0
    _
  %s7 = ssub.s32 1, %s5
  %s8 = scalar_select 0, %s7, %s5
  loop: start=0, step=1, limit=4
  $region2: #{discriminator_forward.7} parent=0 // loop_pre_header
    _
  $region3: #{discriminator_forward.7} parent=0 // loop_header
    %s10 = sphi 0, %s14
    %p11 = scmp.ge.s32.totalorder %s10, 4
    %s20 = sphi 0, %s22
    %s23 = sphi 0, %s20
    %s24 = sphi 0, %s23
    %s40 = sphi 0, %s24
    %s44 = sphi 0, %s44
    %s46 = sphi 0, %s44
    %s47 = sphi 0, %s46
    %s61 = sphi 0, %s47
    %s67 = sphi 0, %s69
    %s70 = sphi 0, %s67
    %s71 = sphi 0, %s70
    %s87 = sphi 0, %s71
    %s91 = sphi 0, %s91
    %s93 = sphi 0, %s91
    %s94 = sphi 0, %s93
    %s108 = sphi 0, %s94
  $region4: #{discriminator_forward.7} parent=0 // loop_header_branch
    %13 = sbr.rel (%p11) target = $region8
  $region5: #{discriminator_forward.7} parent=0 // loop_body
    %s15 = ssub.s32 %s10, 1
    %s16 = ssub.s32 %s10, 2
    %s17 = sadd.s32 %s10, 1
    %s18 = ssub.s32 %s10, %s17
    %p19 = scmp.eq.s32.totalorder %s18, 0
    %s21 = sadd.s32 %s20, 1
    %s22 = scalar_select %p19, %s20, %s21
    %p25 = pneg %p19
    %p26 = scmp.eq.s32.totalorder %s10, 1
    %p27 = por %p25, %p26
    %p28 = scmp.ne.s32.totalorder %s20, %s23
    %p29 = scmp.eq.s32.totalorder %s10, 0
    %p30 = por %p28, %p29
    %p31 = scmp.ne.s32.totalorder %s20, %s23
    %p32 = scmp.eq.s32.totalorder %s15, 1
    %p33 = por %p31, %p32
    %p34 = scmp.ne.s32.totalorder %s23, %s24
    %p35 = scmp.eq.s32.totalorder %s15, 0
    %p36 = por %p34, %p35
    %p37 = scmp.ne.s32.totalorder %s23, %s24
    %p38 = scmp.eq.s32.totalorder %s16, 1
    %p39 = por %p37, %p38
    %p41 = scmp.ne.s32.totalorder %s24, %s40
    %p42 = scmp.eq.s32.totalorder %s16, 0
    %p43 = por %p41, %p42
    %s45 = sadd.s32 %s44, 1
    %p48 = scmp.eq.s32.totalorder %s10, 1
    %p49 = scmp.ne.s32.totalorder %s44, %s46
    %p50 = scmp.eq.s32.totalorder %s10, 0
    %p51 = por %p49, %p50
    %p52 = scmp.ne.s32.totalorder %s44, %s46
    %p53 = scmp.eq.s32.totalorder %s15, 1
    %p54 = por %p52, %p53
    %p55 = scmp.ne.s32.totalorder %s46, %s47
    %p56 = scmp.eq.s32.totalorder %s15, 0
    %p57 = por %p55, %p56
    %p58 = scmp.ne.s32.totalorder %s46, %s47
    %p59 = scmp.eq.s32.totalorder %s16, 1
    %p60 = por %p58, %p59
    %p62 = scmp.ne.s32.totalorder %s47, %s61
    %p63 = scmp.eq.s32.totalorder %s16, 0
    %p64 = por %p62, %p63
    %s65 = ssub.s32 %s10, %s17
    %p66 = scmp.eq.s32.totalorder %s65, 0
    %s68 = sadd.s32 %s67, 1
    %s69 = scalar_select %p66, %s67, %s68
    %p72 = pneg %p66
    %p73 = scmp.eq.s32.totalorder %s10, 1
    %p74 = por %p72, %p73
    %p75 = scmp.ne.s32.totalorder %s67, %s70
    %p76 = scmp.eq.s32.totalorder %s10, 0
    %p77 = por %p75, %p76
    %p78 = scmp.ne.s32.totalorder %s67, %s70
    %p79 = scmp.eq.s32.totalorder %s15, 1
    %p80 = por %p78, %p79
    %p81 = scmp.ne.s32.totalorder %s70, %s71
    %p82 = scmp.eq.s32.totalorder %s15, 0
    %p83 = por %p81, %p82
    %p84 = scmp.ne.s32.totalorder %s70, %s71
    %p85 = scmp.eq.s32.totalorder %s16, 1
    %p86 = por %p84, %p85
    %p88 = scmp.ne.s32.totalorder %s71, %s87
    %p89 = scmp.eq.s32.totalorder %s16, 0
    %p90 = por %p88, %p89
    %s92 = sadd.s32 %s91, 1
    %p95 = scmp.eq.s32.totalorder %s10, 1
    %p96 = scmp.ne.s32.totalorder %s91, %s93
    %p97 = scmp.eq.s32.totalorder %s10, 0
    %p98 = por %p96, %p97
    %p99 = scmp.ne.s32.totalorder %s91, %s93
    %p100 = scmp.eq.s32.totalorder %s15, 1
    %p101 = por %p99, %p100
    %p102 = scmp.ne.s32.totalorder %s93, %s94
    %p103 = scmp.eq.s32.totalorder %s15, 0
    %p104 = por %p102, %p103
    %p105 = scmp.ne.s32.totalorder %s93, %s94
    %p106 = scmp.eq.s32.totalorder %s16, 1
    %p107 = por %p105, %p106
    %p109 = scmp.ne.s32.totalorder %s94, %s108
    %p110 = scmp.eq.s32.totalorder %s16, 0
    %p111 = por %p109, %p110
    %p112 = scmp.le.s32.totalorder 1, %s10
    %p113 = scmp.lt.s32.totalorder %s10, 3
    %p114 = pnand %p112, %p113
    %p115 = pneg %p114
    // Predicated region
    $region9: #{discriminator_forward.7} parent=5 // pred_check
      _
    $region10: #{discriminator_forward.7} parent=5 // pred_check_branch
      %117 = sbr.rel (%p114) target = $region12
    $region11: #{discriminator_forward.7} parent=5 // pred_region
      %s118 = ssub.s32 %s10, 1
      // Predicated region
      $region13: #{discriminator_forward.7} parent=11 // pred_check
        %p119 = pneg %p57
      $region14: #{discriminator_forward.7} parent=11 // pred_check_branch
        %121 = sbr.rel (%p119) target = $region16
      $region15: #{discriminator_forward.7} parent=11 // pred_region
        _
      $region16: #{discriminator_forward.7} parent=11 // pred_fallthru
        _
    $region12: #{discriminator_forward.7} parent=5 // pred_fallthru
      _
    %p122 = scmp.lt.s32.totalorder %s10, 2
    // Predicated region
    $region17: #{discriminator_forward.7} parent=5 // pred_check
      %p123 = pneg %p122
    $region18: #{discriminator_forward.7} parent=5 // pred_check_branch
      %125 = sbr.rel (%p123) target = $region20
    $region19: #{discriminator_forward.7} parent=5 // pred_region
      // Predicated region
      $region21: #{discriminator_forward.7} parent=19 // pred_check
        %p126 = pneg %p30
      $region22: #{discriminator_forward.7} parent=19 // pred_check_branch
        %128 = sbr.rel (%p126) target = $region24
      $region23: #{discriminator_forward.7} parent=19 // pred_region
        %s129 = smul.u32 32, %s10
        %p130 = scmp.lt.s32.totalorder %s129, 63
        %s131 = scalar_select %p130, %s129, 63
        %s132 = smul.addr %s131, 4
        %s133 = scalar_lea.vmem %s0, %s132
        %s134 = smul.u32 32, %s10
      $region24: #{discriminator_forward.7} parent=19 // pred_fallthru
        _
    $region20: #{discriminator_forward.7} parent=5 // pred_fallthru
      _
    %p135 = scmp.le.s32.totalorder 1, %s10
    %p136 = scmp.lt.s32.totalorder %s10, 3
    %p137 = pnand %p135, %p136
    %p138 = pneg %p137
    // Predicated region
    $region25: #{discriminator_forward.7} parent=5 // pred_check
      _
    $region26: #{discriminator_forward.7} parent=5 // pred_check_branch
      %140 = sbr.rel (%p137) target = $region28
    $region27: #{discriminator_forward.7} parent=5 // pred_region
      %s141 = ssub.s32 %s10, 1
      %s142 = smul.u32 32, %s15
      %p143 = scmp.lt.s32.totalorder %s142, 63
      %s144 = scalar_select %p143, %s142, 63
      %s145 = smul.addr %s144, 4
      %s146 = scalar_lea.vmem %s0, %s145
      %p147 = pneg %p36
      %p148 = pneg %p33
      %p149 = pneg %p57
      %p150 = pneg %p54
      %p151 = pneg %p83
      %p152 = pneg %p80
      %s153 = smul.u32 32, %s15
      %p154 = scmp.lt.s32.totalorder %s153, 63
      %s155 = scalar_select %p154, %s153, 63
      %s156 = smul.addr %s155, 4
      %s157 = scalar_lea.vmem %s2, %s156
      %p158 = pneg %p104
      %p159 = pneg %p101
      %s160 = smul.u32 32, %s15
      %p161 = scmp.lt.s32.totalorder %s160, 63
      %s162 = scalar_select %p161, %s160, 63
      %s163 = smul.addr %s162, 4
      %s164 = scalar_lea.vmem %s0, %s163
      %s165 = smul.u32 32, %s15
      %s166 = smul.u32 32, %s15
      %p167 = scmp.lt.s32.totalorder %s166, 63
      %s168 = scalar_select %p167, %s166, 63
      %s169 = smul.addr %s168, 4
      %s170 = scalar_lea.vmem %s2, %s169
      %s171 = smul.u32 32, %s15
      %p173 = scmp.eq.s32.totalorder %s15, 0
      // Predicated region
      $region29: #{discriminator_forward.7} parent=27 // pred_check
        %p174 = pneg %p173
      $region30: #{discriminator_forward.7} parent=27 // pred_check_branch
        %176 = sbr.rel (%p174) target = $region32
      $region31: #{discriminator_forward.7} parent=27 // pred_region
        %vm177 = vcmask 123904
        %178 = vst.msk [vmem:[%s3] sm:$0x3] %vm177, 0.0
      $region32: #{discriminator_forward.7} parent=27 // pred_fallthru
        _
      %v179 = vld [vmem:[%s164] sm:$0xf]
      %v180 = vld [vmem:[%s164 + $0x4] sm:$0xf]
      %v181 = vld [vmem:[%s164 + $0x8] sm:$0xf]
      %v182 = vld [vmem:[%s164 + $0xc] sm:$0xf]
      %v183 = vld [vmem:[%s164 + $0x10] sm:$0xf]
      %v184 = vld [vmem:[%s164 + $0x14] sm:$0xf]
      %v185 = vld [vmem:[%s164 + $0x18] sm:$0xf]
      %v186 = vld [vmem:[%s164 + $0x1c] sm:$0xf]
      %v187 = vld [vmem:[%s164 + $0x20] sm:$0xf]
      %v188 = vld [vmem:[%s164 + $0x24] sm:$0xf]
      %v189 = vld [vmem:[%s164 + $0x28] sm:$0xf]
      %v190 = vld [vmem:[%s164 + $0x2c] sm:$0xf]
      %v191 = vld [vmem:[%s164 + $0x30] sm:$0xf]
      %v192 = vld [vmem:[%s164 + $0x34] sm:$0xf]
      %v193 = vld [vmem:[%s164 + $0x38] sm:$0xf]
      %v194 = vld [vmem:[%s164 + $0x3c] sm:$0xf]
      %v195 = vld [vmem:[%s164 + $0x40] sm:$0xf]
      %v196 = vld [vmem:[%s164 + $0x44] sm:$0xf]
      %v197 = vld [vmem:[%s164 + $0x48] sm:$0xf]
      %v198 = vld [vmem:[%s164 + $0x4c] sm:$0xf]
      %v199 = vld [vmem:[%s164 + $0x50] sm:$0xf]
      %v200 = vld [vmem:[%s164 + $0x54] sm:$0xf]
      %v201 = vld [vmem:[%s164 + $0x58] sm:$0xf]
      %v202 = vld [vmem:[%s164 + $0x5c] sm:$0xf]
      %v203 = vld [vmem:[%s164 + $0x60] sm:$0xf]
      %v204 = vld [vmem:[%s164 + $0x64] sm:$0xf]
      %v205 = vld [vmem:[%s164 + $0x68] sm:$0xf]
      %v206 = vld [vmem:[%s164 + $0x6c] sm:$0xf]
      %v207 = vld [vmem:[%s164 + $0x70] sm:$0xf]
      %v208 = vld [vmem:[%s164 + $0x74] sm:$0xf]
      %v209 = vld [vmem:[%s164 + $0x78] sm:$0xf]
      %v210 = vld [vmem:[%s164 + $0x7c] sm:$0xf]
      %v211 = vld [vmem:[%s1] sm:$0xf]
      %v212 = vld [vmem:[%s1 + $0x4] sm:$0xf]
      %v213 = vld [vmem:[%s1 + $0x8] sm:$0xf]
      %v214 = vld [vmem:[%s1 + $0xc] sm:$0xf]
      %v215 = vld [vmem:[%s1 + $0x10] sm:$0xf]
      %v216 = vld [vmem:[%s1 + $0x14] sm:$0xf]
      %v217 = vld [vmem:[%s1 + $0x18] sm:$0xf]
      %v218 = vld [vmem:[%s1 + $0x1c] sm:$0xf]
      %v219 = vld [vmem:[%s1 + $0x20] sm:$0xf]
      %v220 = vld [vmem:[%s1 + $0x24] sm:$0xf]
      %v221 = vld [vmem:[%s1 + $0x28] sm:$0xf]
      %v222 = vld [vmem:[%s1 + $0x2c] sm:$0xf]
      %v223 = vld [vmem:[%s1 + $0x30] sm:$0xf]
      %v224 = vld [vmem:[%s1 + $0x34] sm:$0xf]
      %v225 = vld [vmem:[%s1 + $0x38] sm:$0xf]
      %v226 = vld [vmem:[%s1 + $0x3c] sm:$0xf]
      %v259 = vunpack.c.l.b16 %v179
      %v260 = vunpack.c.l.b16 %v180
      %v261 = vunpack.c.l.b16 %v181
      %v262 = vunpack.c.l.b16 %v182
      %v263 = vunpack.c.l.b16 %v183
      %v264 = vunpack.c.l.b16 %v184
      %v265 = vunpack.c.l.b16 %v185
      %v266 = vunpack.c.l.b16 %v186
      %v267 = vunpack.c.l.b16 %v187
      %v268 = vunpack.c.l.b16 %v188
      %v269 = vunpack.c.l.b16 %v189
      %v270 = vunpack.c.l.b16 %v190
      %v271 = vunpack.c.l.b16 %v191
      %v272 = vunpack.c.l.b16 %v192
      %v273 = vunpack.c.l.b16 %v193
      %v274 = vunpack.c.l.b16 %v194
      %v275 = vunpack.c.l.b16 %v195
      %v276 = vunpack.c.l.b16 %v196
      %v277 = vunpack.c.l.b16 %v197
      %v278 = vunpack.c.l.b16 %v198
      %v279 = vunpack.c.l.b16 %v199
      %v280 = vunpack.c.l.b16 %v200
      %v281 = vunpack.c.l.b16 %v201
      %v282 = vunpack.c.l.b16 %v202
      %v283 = vunpack.c.l.b16 %v203
      %v284 = vunpack.c.l.b16 %v204
      %v285 = vunpack.c.l.b16 %v205
      %v286 = vunpack.c.l.b16 %v206
      %v287 = vunpack.c.l.b16 %v207
      %v288 = vunpack.c.l.b16 %v208
      %v289 = vunpack.c.l.b16 %v209
      %v290 = vunpack.c.l.b16 %v210
      %v291 = vpack.c.b16 %v260, %v259
      %v292 = vpack.c.b16 %v262, %v261
      %v293 = vpack.c.b16 %v264, %v263
      %v294 = vpack.c.b16 %v266, %v265
      %v295 = vpack.c.b16 %v268, %v267
      %v296 = vpack.c.b16 %v270, %v269
      %v297 = vpack.c.b16 %v272, %v271
      %v298 = vpack.c.b16 %v274, %v273
      %v299 = vpack.c.b16 %v276, %v275
      %v300 = vpack.c.b16 %v278, %v277
      %v301 = vpack.c.b16 %v280, %v279
      %v302 = vpack.c.b16 %v282, %v281
      %v303 = vpack.c.b16 %v284, %v283
      %v304 = vpack.c.b16 %v286, %v285
      %v305 = vpack.c.b16 %v288, %v287
      %v306 = vpack.c.b16 %v290, %v289
      %v339 = vunpack.c.l.b16 %v211
      %v340 = vunpack.c.l.b16 %v212
      %v341 = vunpack.c.l.b16 %v213
      %v342 = vunpack.c.l.b16 %v214
      %v343 = vunpack.c.l.b16 %v215
      %v344 = vunpack.c.l.b16 %v216
      %v345 = vunpack.c.l.b16 %v217
      %v346 = vunpack.c.l.b16 %v218
      %v347 = vunpack.c.l.b16 %v219
      %v348 = vunpack.c.l.b16 %v220
      %v349 = vunpack.c.l.b16 %v221
      %v350 = vunpack.c.l.b16 %v222
      %v351 = vunpack.c.l.b16 %v223
      %v352 = vunpack.c.l.b16 %v224
      %v353 = vunpack.c.l.b16 %v225
      %v354 = vunpack.c.l.b16 %v226
      %v355 = vpack.c.b16 %v340, %v339
      %v356 = vpack.c.b16 %v342, %v341
      %v357 = vpack.c.b16 %v344, %v343
      %v358 = vpack.c.b16 %v346, %v345
      %v359 = vpack.c.b16 %v348, %v347
      %v360 = vpack.c.b16 %v350, %v349
      %v361 = vpack.c.b16 %v352, %v351
      %v362 = vpack.c.b16 %v354, %v353
      %371 = vmatprep.subr.bf16.mxu0 0
      %372 = vmatpush1.bf16.msra.mxu0 %v362
      %373 = vmatprep.subr.bf16.mxu0 0
      %374 = vmatpush1.bf16.msra.mxu0 %v361
      %375 = vmatprep.subr.bf16.mxu0 0
      %376 = vmatpush1.bf16.msra.mxu0 %v360
      %377 = vmatprep.subr.bf16.mxu0 0
      %378 = vmatpush1.bf16.msra.mxu0 %v359
      %379 = vmatprep.subr.bf16.mxu0 0
      %380 = vmatpush1.bf16.msra.mxu0 %v358
      %381 = vmatprep.subr.bf16.mxu0 0
      %382 = vmatpush1.bf16.msra.mxu0 %v357
      %383 = vmatprep.subr.bf16.mxu0 0
      %384 = vmatpush1.bf16.msra.mxu0 %v356
      %385 = vmatprep.subr.bf16.mxu0 0
      %386 = vmatpush1.bf16.msra.mxu0 %v355
      %387 = vmatprep.subr.bf16.mxu0 0
      %388 = vmatpush2.bf16.msra.mxu0 0
      %389 = vmatprep.subr.bf16.mxu0 0
      %390 = vmatpush2.bf16.msra.mxu0 0
      %391 = vmatprep.subr.bf16.mxu0 0
      %392 = vmatpush2.bf16.msra.mxu0 0
      %393 = vmatprep.subr.bf16.mxu0 0
      %394 = vmatpush2.bf16.msra.mxu0 0
      %395 = vmatprep.subr.bf16.mxu0 0
      %396 = vmatpush2.bf16.msra.mxu0 0
      %397 = vmatprep.subr.bf16.mxu0 0
      %398 = vmatpush2.bf16.msra.mxu0 0
      %399 = vmatprep.subr.bf16.mxu0 0
      %400 = vmatpush2.bf16.msra.mxu0 0
      %401 = vmatprep.subr.bf16.mxu0 0
      %402 = vmatpush2.bf16.msra.mxu0 0
      %403 = vmatprep.mubr.bf16.mxu0 0
      %404 = vmatmul.mubr.bf16.gmra.mxu0 %v291
      %v405 = vpop.f32.mrf.mxu0
      %v406 = vadd.f32 0.0, %v405
      %v407 = vpop.f32.mrf.mxu0
      %v408 = vpop.f32.mrf.mxu0
      %v409 = vadd.f32 0.0, %v408
      %v410 = vpop.f32.mrf.mxu0
      %411 = vmatprep.mubr.bf16.mxu0 0
      %412 = vmatmul.mubr.bf16.gmra.mxu0 %v292
      %v413 = vpop.f32.mrf.mxu0
      %v414 = vadd.f32 0.0, %v413
      %v415 = vpop.f32.mrf.mxu0
      %v416 = vpop.f32.mrf.mxu0
      %v417 = vadd.f32 0.0, %v416
      %v418 = vpop.f32.mrf.mxu0
      %419 = vmatprep.mubr.bf16.mxu0 0
      %420 = vmatmul.mubr.bf16.gmra.mxu0 %v293
      %v421 = vpop.f32.mrf.mxu0
      %v422 = vadd.f32 0.0, %v421
      %v423 = vpop.f32.mrf.mxu0
      %v424 = vpop.f32.mrf.mxu0
      %v425 = vadd.f32 0.0, %v424
      %v426 = vpop.f32.mrf.mxu0
      %427 = vmatprep.mubr.bf16.mxu0 0
      %428 = vmatmul.mubr.bf16.gmra.mxu0 %v294
      %v429 = vpop.f32.mrf.mxu0
      %v430 = vadd.f32 0.0, %v429
      %v431 = vpop.f32.mrf.mxu0
      %v432 = vpop.f32.mrf.mxu0
      %v433 = vadd.f32 0.0, %v432
      %v434 = vpop.f32.mrf.mxu0
      %435 = vmatprep.mubr.bf16.mxu0 0
      %436 = vmatmul.mubr.bf16.gmra.mxu0 %v295
      %v437 = vpop.f32.mrf.mxu0
      %v438 = vadd.f32 0.0, %v437
      %v439 = vpop.f32.mrf.mxu0
      %v440 = vpop.f32.mrf.mxu0
      %v441 = vadd.f32 0.0, %v440
      %v442 = vpop.f32.mrf.mxu0
      %443 = vmatprep.mubr.bf16.mxu0 0
      %444 = vmatmul.mubr.bf16.gmra.mxu0 %v296
      %v445 = vpop.f32.mrf.mxu0
      %v446 = vadd.f32 0.0, %v445
      %v447 = vpop.f32.mrf.mxu0
      %v448 = vpop.f32.mrf.mxu0
      %v449 = vadd.f32 0.0, %v448
      %v450 = vpop.f32.mrf.mxu0
      %451 = vmatprep.mubr.bf16.mxu0 0
      %452 = vmatmul.mubr.bf16.gmra.mxu0 %v297
      %v453 = vpop.f32.mrf.mxu0
      %v454 = vadd.f32 0.0, %v453
      %v455 = vpop.f32.mrf.mxu0
      %v456 = vpop.f32.mrf.mxu0
      %v457 = vadd.f32 0.0, %v456
      %v458 = vpop.f32.mrf.mxu0
      %459 = vmatprep.mubr.bf16.mxu0 0
      %460 = vmatmul.mubr.bf16.gmra.mxu0 %v298
      %v461 = vpop.f32.mrf.mxu0
      %v462 = vadd.f32 0.0, %v461
      %v463 = vpop.f32.mrf.mxu0
      %v464 = vpop.f32.mrf.mxu0
      %v465 = vadd.f32 0.0, %v464
      %v466 = vpop.f32.mrf.mxu0
      %467 = vmatprep.mubr.bf16.mxu0 0
      %468 = vmatmul.mubr.bf16.gmra.mxu0 %v299
      %v469 = vpop.f32.mrf.mxu0
      %v470 = vadd.f32 0.0, %v469
      %v471 = vpop.f32.mrf.mxu0
      %v472 = vpop.f32.mrf.mxu0
      %v473 = vadd.f32 0.0, %v472
      %v474 = vpop.f32.mrf.mxu0
      %475 = vmatprep.mubr.bf16.mxu0 0
      %476 = vmatmul.mubr.bf16.gmra.mxu0 %v300
      %v477 = vpop.f32.mrf.mxu0
      %v478 = vadd.f32 0.0, %v477
      %v479 = vpop.f32.mrf.mxu0
      %v480 = vpop.f32.mrf.mxu0
      %v481 = vadd.f32 0.0, %v480
      %v482 = vpop.f32.mrf.mxu0
      %483 = vmatprep.mubr.bf16.mxu0 0
      %484 = vmatmul.mubr.bf16.gmra.mxu0 %v301
      %v485 = vpop.f32.mrf.mxu0
      %v486 = vadd.f32 0.0, %v485
      %v487 = vpop.f32.mrf.mxu0
      %v488 = vpop.f32.mrf.mxu0
      %v489 = vadd.f32 0.0, %v488
      %v490 = vpop.f32.mrf.mxu0
      %491 = vmatprep.mubr.bf16.mxu0 0
      %492 = vmatmul.mubr.bf16.gmra.mxu0 %v302
      %v493 = vpop.f32.mrf.mxu0
      %v494 = vadd.f32 0.0, %v493
      %v495 = vpop.f32.mrf.mxu0
      %v496 = vpop.f32.mrf.mxu0
      %v497 = vadd.f32 0.0, %v496
      %v498 = vpop.f32.mrf.mxu0
      %499 = vmatprep.mubr.bf16.mxu0 0
      %500 = vmatmul.mubr.bf16.gmra.mxu0 %v303
      %v501 = vpop.f32.mrf.mxu0
      %v502 = vadd.f32 0.0, %v501
      %v503 = vpop.f32.mrf.mxu0
      %v504 = vpop.f32.mrf.mxu0
      %v505 = vadd.f32 0.0, %v504
      %v506 = vpop.f32.mrf.mxu0
      %507 = vmatprep.mubr.bf16.mxu0 0
      %508 = vmatmul.mubr.bf16.gmra.mxu0 %v304
      %v509 = vpop.f32.mrf.mxu0
      %v510 = vadd.f32 0.0, %v509
      %v511 = vpop.f32.mrf.mxu0
      %v512 = vpop.f32.mrf.mxu0
      %v513 = vadd.f32 0.0, %v512
      %v514 = vpop.f32.mrf.mxu0
      %515 = vmatprep.mubr.bf16.mxu0 0
      %516 = vmatmul.mubr.bf16.gmra.mxu0 %v305
      %v517 = vpop.f32.mrf.mxu0
      %v518 = vadd.f32 0.0, %v517
      %v519 = vpop.f32.mrf.mxu0
      %v520 = vpop.f32.mrf.mxu0
      %v521 = vadd.f32 0.0, %v520
      %v522 = vpop.f32.mrf.mxu0
      %523 = vmatprep.mubr.bf16.mxu0 0
      %524 = vmatmul.mubr.bf16.gmra.mxu0 %v306
      %v525 = vpop.f32.mrf.mxu0
      %v526 = vadd.f32 0.0, %v525
      %v527 = vpop.f32.mrf.mxu0
      %v528 = vpop.f32.mrf.mxu0
      %v529 = vadd.f32 0.0, %v528
      %v530 = vpop.f32.mrf.mxu0
      %531 = vdwg.mxu0
      %v532 = vld [vmem:[%s3] sm:$0x1]
      %vm533 = vcmask 130048
      %v534 = vsel %vm533, %v406, 0.0
      %v535 = vsel %vm533, %v409, 0.0
      %v536 = vadd.f32 %v534, %v535
      %v537 = vsel %vm533, %v414, 0.0
      %v538 = vadd.f32 %v536, %v537
      %v539 = vsel %vm533, %v417, 0.0
      %v540 = vadd.f32 %v538, %v539
      %v541 = vsel %vm533, %v422, 0.0
      %v542 = vadd.f32 %v540, %v541
      %v543 = vsel %vm533, %v425, 0.0
      %v544 = vadd.f32 %v542, %v543
      %v545 = vsel %vm533, %v430, 0.0
      %v546 = vadd.f32 %v544, %v545
      %v547 = vsel %vm533, %v433, 0.0
      %v548 = vadd.f32 %v546, %v547
      %v549 = vsel %vm533, %v438, 0.0
      %v550 = vadd.f32 %v548, %v549
      %v551 = vsel %vm533, %v441, 0.0
      %v552 = vadd.f32 %v550, %v551
      %v553 = vsel %vm533, %v446, 0.0
      %v554 = vadd.f32 %v552, %v553
      %v555 = vsel %vm533, %v449, 0.0
      %v556 = vadd.f32 %v554, %v555
      %v557 = vsel %vm533, %v454, 0.0
      %v558 = vadd.f32 %v556, %v557
      %v559 = vsel %vm533, %v457, 0.0
      %v560 = vadd.f32 %v558, %v559
      %v561 = vsel %vm533, %v462, 0.0
      %v562 = vadd.f32 %v560, %v561
      %v563 = vsel %vm533, %v465, 0.0
      %v564 = vadd.f32 %v562, %v563
      %v565 = vsel %vm533, %v470, 0.0
      %v566 = vadd.f32 %v564, %v565
      %v567 = vsel %vm533, %v473, 0.0
      %v568 = vadd.f32 %v566, %v567
      %v569 = vsel %vm533, %v478, 0.0
      %v570 = vadd.f32 %v568, %v569
      %v571 = vsel %vm533, %v481, 0.0
      %v572 = vadd.f32 %v570, %v571
      %v573 = vsel %vm533, %v486, 0.0
      %v574 = vadd.f32 %v572, %v573
      %v575 = vsel %vm533, %v489, 0.0
      %v576 = vadd.f32 %v574, %v575
      %v577 = vsel %vm533, %v494, 0.0
      %v578 = vadd.f32 %v576, %v577
      %v579 = vsel %vm533, %v497, 0.0
      %v580 = vadd.f32 %v578, %v579
      %v581 = vsel %vm533, %v502, 0.0
      %v582 = vadd.f32 %v580, %v581
      %v583 = vsel %vm533, %v505, 0.0
      %v584 = vadd.f32 %v582, %v583
      %v585 = vsel %vm533, %v510, 0.0
      %v586 = vadd.f32 %v584, %v585
      %v587 = vsel %vm533, %v513, 0.0
      %v588 = vadd.f32 %v586, %v587
      %v589 = vsel %vm533, %v518, 0.0
      %v590 = vadd.f32 %v588, %v589
      %v591 = vsel %vm533, %v521, 0.0
      %v592 = vadd.f32 %v590, %v591
      %v593 = vsel %vm533, %v526, 0.0
      %v594 = vadd.f32 %v592, %v593
      %v595 = vsel %vm533, %v529, 0.0
      %v596 = vadd.f32 %v594, %v595
      %v597 = vrot.slane %v596, 4
      %v598 = vadd.f32 %v596, %v597
      %v599 = vrot.slane %v598, 2
      %v600 = vadd.f32 %v598, %v599
      %v601 = vrot.slane %v600, 1
      %v602 = vadd.f32 %v600, %v601
      %v603 = vadd.f32 %v532, %v602
      %vm604 = vcmask 122880
      %605 = vst.msk [vmem:[%s3] sm:$0x1] %vm604, %v603
      %v606 = vld [vmem:[%s3 + $0x1] sm:$0x1]
      %v607 = vmul.f32 %v406, %v406
      %v608 = vmul.f32 %v409, %v409
      %v609 = vmul.f32 %v414, %v414
      %v610 = vmul.f32 %v417, %v417
      %v611 = vmul.f32 %v422, %v422
      %v612 = vmul.f32 %v425, %v425
      %v613 = vmul.f32 %v430, %v430
      %v614 = vmul.f32 %v433, %v433
      %v615 = vmul.f32 %v438, %v438
      %v616 = vmul.f32 %v441, %v441
      %v617 = vmul.f32 %v446, %v446
      %v618 = vmul.f32 %v449, %v449
      %v619 = vmul.f32 %v454, %v454
      %v620 = vmul.f32 %v457, %v457
      %v621 = vmul.f32 %v462, %v462
      %v622 = vmul.f32 %v465, %v465
      %v623 = vmul.f32 %v470, %v470
      %v624 = vmul.f32 %v473, %v473
      %v625 = vmul.f32 %v478, %v478
      %v626 = vmul.f32 %v481, %v481
      %v627 = vmul.f32 %v486, %v486
      %v628 = vmul.f32 %v489, %v489
      %v629 = vmul.f32 %v494, %v494
      %v630 = vmul.f32 %v497, %v497
      %v631 = vmul.f32 %v502, %v502
      %v632 = vmul.f32 %v505, %v505
      %v633 = vmul.f32 %v510, %v510
      %v634 = vmul.f32 %v513, %v513
      %v635 = vmul.f32 %v518, %v518
      %v636 = vmul.f32 %v521, %v521
      %v637 = vmul.f32 %v526, %v526
      %v638 = vmul.f32 %v529, %v529
      %v639 = vsel %vm533, %v607, 0.0
      %v640 = vsel %vm533, %v608, 0.0
      %v641 = vadd.f32 %v639, %v640
      %v642 = vsel %vm533, %v609, 0.0
      %v643 = vadd.f32 %v641, %v642
      %v644 = vsel %vm533, %v610, 0.0
      %v645 = vadd.f32 %v643, %v644
      %v646 = vsel %vm533, %v611, 0.0
      %v647 = vadd.f32 %v645, %v646
      %v648 = vsel %vm533, %v612, 0.0
      %v649 = vadd.f32 %v647, %v648
      %v650 = vsel %vm533, %v613, 0.0
      %v651 = vadd.f32 %v649, %v650
      %v652 = vsel %vm533, %v614, 0.0
      %v653 = vadd.f32 %v651, %v652
      %v654 = vsel %vm533, %v615, 0.0
      %v655 = vadd.f32 %v653, %v654
      %v656 = vsel %vm533, %v616, 0.0
      %v657 = vadd.f32 %v655, %v656
      %v658 = vsel %vm533, %v617, 0.0
      %v659 = vadd.f32 %v657, %v658
      %v660 = vsel %vm533, %v618, 0.0
      %v661 = vadd.f32 %v659, %v660
      %v662 = vsel %vm533, %v619, 0.0
      %v663 = vadd.f32 %v661, %v662
      %v664 = vsel %vm533, %v620, 0.0
      %v665 = vadd.f32 %v663, %v664
      %v666 = vsel %vm533, %v621, 0.0
      %v667 = vadd.f32 %v665, %v666
      %v668 = vsel %vm533, %v622, 0.0
      %v669 = vadd.f32 %v667, %v668
      %v670 = vsel %vm533, %v623, 0.0
      %v671 = vadd.f32 %v669, %v670
      %v672 = vsel %vm533, %v624, 0.0
      %v673 = vadd.f32 %v671, %v672
      %v674 = vsel %vm533, %v625, 0.0
      %v675 = vadd.f32 %v673, %v674
      %v676 = vsel %vm533, %v626, 0.0
      %v677 = vadd.f32 %v675, %v676
      %v678 = vsel %vm533, %v627, 0.0
      %v679 = vadd.f32 %v677, %v678
      %v680 = vsel %vm533, %v628, 0.0
      %v681 = vadd.f32 %v679, %v680
      %v682 = vsel %vm533, %v629, 0.0
      %v683 = vadd.f32 %v681, %v682
      %v684 = vsel %vm533, %v630, 0.0
      %v685 = vadd.f32 %v683, %v684
      %v686 = vsel %vm533, %v631, 0.0
      %v687 = vadd.f32 %v685, %v686
      %v688 = vsel %vm533, %v632, 0.0
      %v689 = vadd.f32 %v687, %v688
      %v690 = vsel %vm533, %v633, 0.0
      %v691 = vadd.f32 %v689, %v690
      %v692 = vsel %vm533, %v634, 0.0
      %v693 = vadd.f32 %v691, %v692
      %v694 = vsel %vm533, %v635, 0.0
      %v695 = vadd.f32 %v693, %v694
      %v696 = vsel %vm533, %v636, 0.0
      %v697 = vadd.f32 %v695, %v696
      %v698 = vsel %vm533, %v637, 0.0
      %v699 = vadd.f32 %v697, %v698
      %v700 = vsel %vm533, %v638, 0.0
      %v701 = vadd.f32 %v699, %v700
      %v702 = vrot.slane %v701, 4
      %v703 = vadd.f32 %v701, %v702
      %v704 = vrot.slane %v703, 2
      %v705 = vadd.f32 %v703, %v704
      %v706 = vrot.slane %v705, 1
      %v707 = vadd.f32 %v705, %v706
      %v708 = vadd.f32 %v606, %v707
      %709 = vst.msk [vmem:[%s3 + $0x1] sm:$0x1] %vm604, %v708
      %v710 = vpack.c.bf16 %v409, %v406
      %v711 = vpack.c.bf16 %v417, %v414
      %v712 = vpack.c.bf16 %v425, %v422
      %v713 = vpack.c.bf16 %v433, %v430
      %v714 = vpack.c.bf16 %v441, %v438
      %v715 = vpack.c.bf16 %v449, %v446
      %v716 = vpack.c.bf16 %v457, %v454
      %v717 = vpack.c.bf16 %v465, %v462
      %v718 = vpack.c.bf16 %v473, %v470
      %v719 = vpack.c.bf16 %v481, %v478
      %v720 = vpack.c.bf16 %v489, %v486
      %v721 = vpack.c.bf16 %v497, %v494
      %v722 = vpack.c.bf16 %v505, %v502
      %v723 = vpack.c.bf16 %v513, %v510
      %v724 = vpack.c.bf16 %v521, %v518
      %v725 = vpack.c.bf16 %v529, %v526
      %v742 = vunpack.c.l.b16 %v710
      %v743 = vunpack.c.h.b16 %v710
      %v744 = vunpack.c.l.b16 %v711
      %v745 = vunpack.c.h.b16 %v711
      %v746 = vunpack.c.l.b16 %v712
      %v747 = vunpack.c.h.b16 %v712
      %v748 = vunpack.c.l.b16 %v713
      %v749 = vunpack.c.h.b16 %v713
      %v750 = vunpack.c.l.b16 %v714
      %v751 = vunpack.c.h.b16 %v714
      %v752 = vunpack.c.l.b16 %v715
      %v753 = vunpack.c.h.b16 %v715
      %v754 = vunpack.c.l.b16 %v716
      %v755 = vunpack.c.h.b16 %v716
      %v756 = vunpack.c.l.b16 %v717
      %v757 = vunpack.c.h.b16 %v717
      %v758 = vunpack.c.l.b16 %v718
      %v759 = vunpack.c.h.b16 %v718
      %v760 = vunpack.c.l.b16 %v719
      %v761 = vunpack.c.h.b16 %v719
      %v762 = vunpack.c.l.b16 %v720
      %v763 = vunpack.c.h.b16 %v720
      %v764 = vunpack.c.l.b16 %v721
      %v765 = vunpack.c.h.b16 %v721
      %v766 = vunpack.c.l.b16 %v722
      %v767 = vunpack.c.h.b16 %v722
      %v768 = vunpack.c.l.b16 %v723
      %v769 = vunpack.c.h.b16 %v723
      %v770 = vunpack.c.l.b16 %v724
      %v771 = vunpack.c.h.b16 %v724
      %v772 = vunpack.c.l.b16 %v725
      %v773 = vunpack.c.h.b16 %v725
      %v774 = vpack.c.b16 %v742, %v742
      %v775 = vpack.c.b16 %v743, %v743
      %v776 = vpack.c.b16 %v744, %v744
      %v777 = vpack.c.b16 %v745, %v745
      %v778 = vpack.c.b16 %v746, %v746
      %v779 = vpack.c.b16 %v747, %v747
      %v780 = vpack.c.b16 %v748, %v748
      %v781 = vpack.c.b16 %v749, %v749
      %v782 = vpack.c.b16 %v750, %v750
      %v783 = vpack.c.b16 %v751, %v751
      %v784 = vpack.c.b16 %v752, %v752
      %v785 = vpack.c.b16 %v753, %v753
      %v786 = vpack.c.b16 %v754, %v754
      %v787 = vpack.c.b16 %v755, %v755
      %v788 = vpack.c.b16 %v756, %v756
      %v789 = vpack.c.b16 %v757, %v757
      %v790 = vpack.c.b16 %v758, %v758
      %v791 = vpack.c.b16 %v759, %v759
      %v792 = vpack.c.b16 %v760, %v760
      %v793 = vpack.c.b16 %v761, %v761
      %v794 = vpack.c.b16 %v762, %v762
      %v795 = vpack.c.b16 %v763, %v763
      %v796 = vpack.c.b16 %v764, %v764
      %v797 = vpack.c.b16 %v765, %v765
      %v798 = vpack.c.b16 %v766, %v766
      %v799 = vpack.c.b16 %v767, %v767
      %v800 = vpack.c.b16 %v768, %v768
      %v801 = vpack.c.b16 %v769, %v769
      %v802 = vpack.c.b16 %v770, %v770
      %v803 = vpack.c.b16 %v771, %v771
      %v804 = vpack.c.b16 %v772, %v772
      %v805 = vpack.c.b16 %v773, %v773
      %vm838 = vcmask 125952
      %839 = vst.msk [vmem:[%s170] sm:$0xf] %vm838, %v774
      %840 = vst.msk [vmem:[%s170 + $0x4] sm:$0xf] %vm838, %v775
      %841 = vst.msk [vmem:[%s170 + $0x8] sm:$0xf] %vm838, %v776
      %842 = vst.msk [vmem:[%s170 + $0xc] sm:$0xf] %vm838, %v777
      %843 = vst.msk [vmem:[%s170 + $0x10] sm:$0xf] %vm838, %v778
      %844 = vst.msk [vmem:[%s170 + $0x14] sm:$0xf] %vm838, %v779
      %845 = vst.msk [vmem:[%s170 + $0x18] sm:$0xf] %vm838, %v780
      %846 = vst.msk [vmem:[%s170 + $0x1c] sm:$0xf] %vm838, %v781
      %847 = vst.msk [vmem:[%s170 + $0x20] sm:$0xf] %vm838, %v782
      %848 = vst.msk [vmem:[%s170 + $0x24] sm:$0xf] %vm838, %v783
      %849 = vst.msk [vmem:[%s170 + $0x28] sm:$0xf] %vm838, %v784
      %850 = vst.msk [vmem:[%s170 + $0x2c] sm:$0xf] %vm838, %v785
      %851 = vst.msk [vmem:[%s170 + $0x30] sm:$0xf] %vm838, %v786
      %852 = vst.msk [vmem:[%s170 + $0x34] sm:$0xf] %vm838, %v787
      %853 = vst.msk [vmem:[%s170 + $0x38] sm:$0xf] %vm838, %v788
      %854 = vst.msk [vmem:[%s170 + $0x3c] sm:$0xf] %vm838, %v789
      %855 = vst.msk [vmem:[%s170 + $0x40] sm:$0xf] %vm838, %v790
      %856 = vst.msk [vmem:[%s170 + $0x44] sm:$0xf] %vm838, %v791
      %857 = vst.msk [vmem:[%s170 + $0x48] sm:$0xf] %vm838, %v792
      %858 = vst.msk [vmem:[%s170 + $0x4c] sm:$0xf] %vm838, %v793
      %859 = vst.msk [vmem:[%s170 + $0x50] sm:$0xf] %vm838, %v794
      %860 = vst.msk [vmem:[%s170 + $0x54] sm:$0xf] %vm838, %v795
      %861 = vst.msk [vmem:[%s170 + $0x58] sm:$0xf] %vm838, %v796
      %862 = vst.msk [vmem:[%s170 + $0x5c] sm:$0xf] %vm838, %v797
      %863 = vst.msk [vmem:[%s170 + $0x60] sm:$0xf] %vm838, %v798
      %864 = vst.msk [vmem:[%s170 + $0x64] sm:$0xf] %vm838, %v799
      %865 = vst.msk [vmem:[%s170 + $0x68] sm:$0xf] %vm838, %v800
      %866 = vst.msk [vmem:[%s170 + $0x6c] sm:$0xf] %vm838, %v801
      %867 = vst.msk [vmem:[%s170 + $0x70] sm:$0xf] %vm838, %v802
      %868 = vst.msk [vmem:[%s170 + $0x74] sm:$0xf] %vm838, %v803
      %869 = vst.msk [vmem:[%s170 + $0x78] sm:$0xf] %vm838, %v804
      %870 = vst.msk [vmem:[%s170 + $0x7c] sm:$0xf] %vm838, %v805
      %s871 = smul.u32 32, %s15
      %p872 = scmp.lt.s32.totalorder %s871, 63
      %s873 = scalar_select %p872, %s871, 63
      %s874 = smul.addr %s873, 4
      %s875 = scalar_lea.vmem %s2, %s874
      // Predicated region
      $region33: #{discriminator_forward.7} parent=27 // pred_check
        %p876 = pneg %p80
      $region34: #{discriminator_forward.7} parent=27 // pred_check_branch
        %878 = sbr.rel (%p876) target = $region36
      $region35: #{discriminator_forward.7} parent=27 // pred_region
        %s879 = smul.u32 32, %s15
      $region36: #{discriminator_forward.7} parent=27 // pred_fallthru
        _
      // Predicated region
      $region37: #{discriminator_forward.7} parent=27 // pred_check
        %p880 = pneg %p101
      $region38: #{discriminator_forward.7} parent=27 // pred_check_branch
        %882 = sbr.rel (%p880) target = $region40
      $region39: #{discriminator_forward.7} parent=27 // pred_region
        _
      $region40: #{discriminator_forward.7} parent=27 // pred_fallthru
        _
      // Predicated region
      $region41: #{discriminator_forward.7} parent=27 // pred_check
        %p883 = pneg %p101
      $region42: #{discriminator_forward.7} parent=27 // pred_check_branch
        %885 = sbr.rel (%p883) target = $region44
      $region43: #{discriminator_forward.7} parent=27 // pred_region
        _
      $region44: #{discriminator_forward.7} parent=27 // pred_fallthru
        _
    $region28: #{discriminator_forward.7} parent=5 // pred_fallthru
      _
    %p886 = scmp.le.s32.totalorder 2, %s10
    // Predicated region
    $region45: #{discriminator_forward.7} parent=5 // pred_check
      %p887 = pneg %p886
    $region46: #{discriminator_forward.7} parent=5 // pred_check_branch
      %889 = sbr.rel (%p887) target = $region48
    $region47: #{discriminator_forward.7} parent=5 // pred_region
      %s890 = ssub.s32 %s10, 2
      // Predicated region
      $region49: #{discriminator_forward.7} parent=47 // pred_check
        %p891 = pneg %p86
      $region50: #{discriminator_forward.7} parent=47 // pred_check_branch
        %893 = sbr.rel (%p891) target = $region52
      $region51: #{discriminator_forward.7} parent=47 // pred_region
        %s894 = smul.u32 32, %s16
        %p895 = scmp.lt.s32.totalorder %s894, 63
        %s896 = scalar_select %p895, %s894, 63
        %s897 = smul.addr %s896, 4
        %s898 = scalar_lea.vmem %s2, %s897
      $region52: #{discriminator_forward.7} parent=47 // pred_fallthru
        _
    $region48: #{discriminator_forward.7} parent=5 // pred_fallthru
      _
  $region6: #{discriminator_forward.7} parent=0 // loop_footer
    %s14 = sadd.s32 1, %s10
  $region7: #{discriminator_forward.7} parent=0 // loop_footer_branch
    %9 = sbr.rel target = $region3
  $region8: #{discriminator_forward.7} parent=0 // loop_exit
    _

// kernel: discriminator_forward.8
$region0: #{discriminator_forward.8}
  #allocation0 [shape = 'u32[]', space=smem, size = 0x4, offset = 0x4, fixed_abs, tag = 'smem constant byte address 0x4 - core index']
  #allocation1 [shape = 'u32[144,128]{1,0:T(1,128)}', space=vmem, size = 0x12000, scoped, tag = 'internal scratch']
  %s0 = inlined_call_operand.vmem [shape: bf16[512,16], index: 0, kind: input, shape index: {}]
  %s1 = inlined_call_operand.vmem [shape: f32[2,16], index: 1, kind: input, shape index: {}]
  %s2 = inlined_call_operand.vmem [shape: f32[1,16], index: 2, kind: input, shape index: {}]
  %s3 = inlined_call_operand.vmem [shape: f32[1,16], index: 3, kind: input, shape index: {}]
  %s4 = inlined_call_operand.vmem [shape: bf16[512,16], index: 4, kind: output, shape index: {}]
  %s5 = sld [smem:[#allocation0]]
  $region49: #{discriminator_forward.8} parent=0
    _
  %s7 = ssub.s32 1, %s5
  %s8 = scalar_select 0, %s7, %s5
  loop: start=0, step=1, limit=4
  $region2: #{discriminator_forward.8} parent=0 // loop_pre_header
    _
  $region3: #{discriminator_forward.8} parent=0 // loop_header
    %s10 = sphi 0, %s14
    %p11 = scmp.ge.s32.totalorder %s10, 4
    %s20 = sphi 0, %s22
    %s23 = sphi 0, %s20
    %s24 = sphi 0, %s23
    %s40 = sphi 0, %s24
    %s44 = sphi 0, %s44
    %s46 = sphi 0, %s44
    %s47 = sphi 0, %s46
    %s61 = sphi 0, %s47
    %s65 = sphi 0, %s65
    %s67 = sphi 0, %s65
    %s68 = sphi 0, %s67
    %s82 = sphi 0, %s68
    %s86 = sphi 0, %s86
    %s88 = sphi 0, %s86
    %s89 = sphi 0, %s88
    %s103 = sphi 0, %s89
    %s109 = sphi 0, %s111
    %s112 = sphi 0, %s109
    %s113 = sphi 0, %s112
    %s129 = sphi 0, %s113
  $region4: #{discriminator_forward.8} parent=0 // loop_header_branch
    %13 = sbr.rel (%p11) target = $region8
  $region5: #{discriminator_forward.8} parent=0 // loop_body
    %s15 = ssub.s32 %s10, 1
    %s16 = ssub.s32 %s10, 2
    %s17 = sadd.s32 %s10, 1
    %s18 = ssub.s32 %s10, %s17
    %p19 = scmp.eq.s32.totalorder %s18, 0
    %s21 = sadd.s32 %s20, 1
    %s22 = scalar_select %p19, %s20, %s21
    %p25 = pneg %p19
    %p26 = scmp.eq.s32.totalorder %s10, 1
    %p27 = por %p25, %p26
    %p28 = scmp.ne.s32.totalorder %s20, %s23
    %p29 = scmp.eq.s32.totalorder %s10, 0
    %p30 = por %p28, %p29
    %p31 = scmp.ne.s32.totalorder %s20, %s23
    %p32 = scmp.eq.s32.totalorder %s15, 1
    %p33 = por %p31, %p32
    %p34 = scmp.ne.s32.totalorder %s23, %s24
    %p35 = scmp.eq.s32.totalorder %s15, 0
    %p36 = por %p34, %p35
    %p37 = scmp.ne.s32.totalorder %s23, %s24
    %p38 = scmp.eq.s32.totalorder %s16, 1
    %p39 = por %p37, %p38
    %p41 = scmp.ne.s32.totalorder %s24, %s40
    %p42 = scmp.eq.s32.totalorder %s16, 0
    %p43 = por %p41, %p42
    %s45 = sadd.s32 %s44, 1
    %p48 = scmp.eq.s32.totalorder %s10, 1
    %p49 = scmp.ne.s32.totalorder %s44, %s46
    %p50 = scmp.eq.s32.totalorder %s10, 0
    %p51 = por %p49, %p50
    %p52 = scmp.ne.s32.totalorder %s44, %s46
    %p53 = scmp.eq.s32.totalorder %s15, 1
    %p54 = por %p52, %p53
    %p55 = scmp.ne.s32.totalorder %s46, %s47
    %p56 = scmp.eq.s32.totalorder %s15, 0
    %p57 = por %p55, %p56
    %p58 = scmp.ne.s32.totalorder %s46, %s47
    %p59 = scmp.eq.s32.totalorder %s16, 1
    %p60 = por %p58, %p59
    %p62 = scmp.ne.s32.totalorder %s47, %s61
    %p63 = scmp.eq.s32.totalorder %s16, 0
    %p64 = por %p62, %p63
    %s66 = sadd.s32 %s65, 1
    %p69 = scmp.eq.s32.totalorder %s10, 1
    %p70 = scmp.ne.s32.totalorder %s65, %s67
    %p71 = scmp.eq.s32.totalorder %s10, 0
    %p72 = por %p70, %p71
    %p73 = scmp.ne.s32.totalorder %s65, %s67
    %p74 = scmp.eq.s32.totalorder %s15, 1
    %p75 = por %p73, %p74
    %p76 = scmp.ne.s32.totalorder %s67, %s68
    %p77 = scmp.eq.s32.totalorder %s15, 0
    %p78 = por %p76, %p77
    %p79 = scmp.ne.s32.totalorder %s67, %s68
    %p80 = scmp.eq.s32.totalorder %s16, 1
    %p81 = por %p79, %p80
    %p83 = scmp.ne.s32.totalorder %s68, %s82
    %p84 = scmp.eq.s32.totalorder %s16, 0
    %p85 = por %p83, %p84
    %s87 = sadd.s32 %s86, 1
    %p90 = scmp.eq.s32.totalorder %s10, 1
    %p91 = scmp.ne.s32.totalorder %s86, %s88
    %p92 = scmp.eq.s32.totalorder %s10, 0
    %p93 = por %p91, %p92
    %p94 = scmp.ne.s32.totalorder %s86, %s88
    %p95 = scmp.eq.s32.totalorder %s15, 1
    %p96 = por %p94, %p95
    %p97 = scmp.ne.s32.totalorder %s88, %s89
    %p98 = scmp.eq.s32.totalorder %s15, 0
    %p99 = por %p97, %p98
    %p100 = scmp.ne.s32.totalorder %s88, %s89
    %p101 = scmp.eq.s32.totalorder %s16, 1
    %p102 = por %p100, %p101
    %p104 = scmp.ne.s32.totalorder %s89, %s103
    %p105 = scmp.eq.s32.totalorder %s16, 0
    %p106 = por %p104, %p105
    %s107 = ssub.s32 %s10, %s17
    %p108 = scmp.eq.s32.totalorder %s107, 0
    %s110 = sadd.s32 %s109, 1
    %s111 = scalar_select %p108, %s109, %s110
    %p114 = pneg %p108
    %p115 = scmp.eq.s32.totalorder %s10, 1
    %p116 = por %p114, %p115
    %p117 = scmp.ne.s32.totalorder %s109, %s112
    %p118 = scmp.eq.s32.totalorder %s10, 0
    %p119 = por %p117, %p118
    %p120 = scmp.ne.s32.totalorder %s109, %s112
    %p121 = scmp.eq.s32.totalorder %s15, 1
    %p122 = por %p120, %p121
    %p123 = scmp.ne.s32.totalorder %s112, %s113
    %p124 = scmp.eq.s32.totalorder %s15, 0
    %p125 = por %p123, %p124
    %p126 = scmp.ne.s32.totalorder %s112, %s113
    %p127 = scmp.eq.s32.totalorder %s16, 1
    %p128 = por %p126, %p127
    %p130 = scmp.ne.s32.totalorder %s113, %s129
    %p131 = scmp.eq.s32.totalorder %s16, 0
    %p132 = por %p130, %p131
    %p133 = scmp.le.s32.totalorder 1, %s10
    %p134 = scmp.lt.s32.totalorder %s10, 3
    %p135 = pnand %p133, %p134
    %p136 = pneg %p135
    // Predicated region
    $region9: #{discriminator_forward.8} parent=5 // pred_check
      _
    $region10: #{discriminator_forward.8} parent=5 // pred_check_branch
      %138 = sbr.rel (%p135) target = $region12
    $region11: #{discriminator_forward.8} parent=5 // pred_region
      %s139 = ssub.s32 %s10, 1
      // Predicated region
      $region13: #{discriminator_forward.8} parent=11 // pred_check
        %p140 = pneg %p57
      $region14: #{discriminator_forward.8} parent=11 // pred_check_branch
        %142 = sbr.rel (%p140) target = $region16
      $region15: #{discriminator_forward.8} parent=11 // pred_region
        _
      $region16: #{discriminator_forward.8} parent=11 // pred_fallthru
        _
      // Predicated region
      $region17: #{discriminator_forward.8} parent=11 // pred_check
        %p143 = pneg %p78
      $region18: #{discriminator_forward.8} parent=11 // pred_check_branch
        %145 = sbr.rel (%p143) target = $region20
      $region19: #{discriminator_forward.8} parent=11 // pred_region
        _
      $region20: #{discriminator_forward.8} parent=11 // pred_fallthru
        _
      // Predicated region
      $region21: #{discriminator_forward.8} parent=11 // pred_check
        %p146 = pneg %p99
      $region22: #{discriminator_forward.8} parent=11 // pred_check_branch
        %148 = sbr.rel (%p146) target = $region24
      $region23: #{discriminator_forward.8} parent=11 // pred_region
        _
      $region24: #{discriminator_forward.8} parent=11 // pred_fallthru
        _
    $region12: #{discriminator_forward.8} parent=5 // pred_fallthru
      _
    %p149 = scmp.lt.s32.totalorder %s10, 2
    // Predicated region
    $region25: #{discriminator_forward.8} parent=5 // pred_check
      %p150 = pneg %p149
    $region26: #{discriminator_forward.8} parent=5 // pred_check_branch
      %152 = sbr.rel (%p150) target = $region28
    $region27: #{discriminator_forward.8} parent=5 // pred_region
      // Predicated region
      $region29: #{discriminator_forward.8} parent=27 // pred_check
        %p153 = pneg %p30
      $region30: #{discriminator_forward.8} parent=27 // pred_check_branch
        %155 = sbr.rel (%p153) target = $region32
      $region31: #{discriminator_forward.8} parent=27 // pred_region
        %s156 = smul.u32 32, %s10
        %p157 = scmp.lt.s32.totalorder %s156, 63
        %s158 = scalar_select %p157, %s156, 63
        %s159 = smul.addr %s158, 4
        %s160 = scalar_lea.vmem %s0, %s159
        %s161 = smul.u32 32, %s10
      $region32: #{discriminator_forward.8} parent=27 // pred_fallthru
        _
    $region28: #{discriminator_forward.8} parent=5 // pred_fallthru
      _
    %p162 = scmp.le.s32.totalorder 1, %s10
    %p163 = scmp.lt.s32.totalorder %s10, 3
    %p164 = pnand %p162, %p163
    %p165 = pneg %p164
    // Predicated region
    $region33: #{discriminator_forward.8} parent=5 // pred_check
      _
    $region34: #{discriminator_forward.8} parent=5 // pred_check_branch
      %167 = sbr.rel (%p164) target = $region36
    $region35: #{discriminator_forward.8} parent=5 // pred_region
      %s168 = ssub.s32 %s10, 1
      %s169 = smul.u32 32, %s15
      %p170 = scmp.lt.s32.totalorder %s169, 63
      %s171 = scalar_select %p170, %s169, 63
      %s172 = smul.addr %s171, 4
      %s173 = scalar_lea.vmem %s0, %s172
      %p174 = pneg %p36
      %p175 = pneg %p33
      %p176 = pneg %p57
      %p177 = pneg %p54
      %p178 = pneg %p78
      %p179 = pneg %p75
      %p180 = pneg %p99
      %p181 = pneg %p96
      %p182 = pneg %p125
      %p183 = pneg %p122
      %s184 = smul.u32 32, %s15
      %p185 = scmp.lt.s32.totalorder %s184, 63
      %s186 = scalar_select %p185, %s184, 63
      %s187 = smul.addr %s186, 4
      %s188 = scalar_lea.vmem %s4, %s187
      %s189 = smul.u32 32, %s15
      %p190 = scmp.lt.s32.totalorder %s189, 63
      %s191 = scalar_select %p190, %s189, 63
      %s192 = smul.addr %s191, 4
      %s193 = scalar_lea.vmem %s0, %s192
      %s194 = smul.u32 32, %s15
      %s195 = smul.u32 32, %s15
      %p196 = scmp.lt.s32.totalorder %s195, 63
      %s197 = scalar_select %p196, %s195, 63
      %s198 = smul.addr %s197, 4
      %s199 = scalar_lea.vmem %s4, %s198
      %s200 = smul.u32 32, %s15
      %v201 = vld [vmem:[%s1] sm:$0x1]
      %v202 = vmul.f32 %v201, 0.001953125
      %v203 = vld [vmem:[%s1 + $0x1] sm:$0x1]
      %v204 = vmul.f32 %v203, 0.001953125
      %v205 = vmul.f32 %v202, %v202
      %v206 = vsub.f32 %v204, %v205
      %v207 = vmax.f32 %v206, 0.0
      %v208 = vld [vmem:[%s2] sm:$0x1]
      %v209 = vadd.f32 %v207, 1e-05
      %v210 = vrsqrt.pop %v209
      %v211 = vmul.f32 %v208, %v210
      %v212 = vld [vmem:[%s3] sm:$0x1]
      %v213 = vmul.f32 %v202, %v211
      %v214 = vsub.f32 %v212, %v213
      %v215 = vld [vmem:[%s193] sm:$0xf]
      %v216 = vld [vmem:[%s193 + $0x4] sm:$0xf]
      %v217 = vld [vmem:[%s193 + $0x8] sm:$0xf]
      %v218 = vld [vmem:[%s193 + $0xc] sm:$0xf]
      %v219 = vld [vmem:[%s193 + $0x10] sm:$0xf]
      %v220 = vld [vmem:[%s193 + $0x14] sm:$0xf]
      %v221 = vld [vmem:[%s193 + $0x18] sm:$0xf]
      %v222 = vld [vmem:[%s193 + $0x1c] sm:$0xf]
      %v223 = vld [vmem:[%s193 + $0x20] sm:$0xf]
      %v224 = vld [vmem:[%s193 + $0x24] sm:$0xf]
      %v225 = vld [vmem:[%s193 + $0x28] sm:$0xf]
      %v226 = vld [vmem:[%s193 + $0x2c] sm:$0xf]
      %v227 = vld [vmem:[%s193 + $0x30] sm:$0xf]
      %v228 = vld [vmem:[%s193 + $0x34] sm:$0xf]
      %v229 = vld [vmem:[%s193 + $0x38] sm:$0xf]
      %v230 = vld [vmem:[%s193 + $0x3c] sm:$0xf]
      %v231 = vld [vmem:[%s193 + $0x40] sm:$0xf]
      %v232 = vld [vmem:[%s193 + $0x44] sm:$0xf]
      %v233 = vld [vmem:[%s193 + $0x48] sm:$0xf]
      %v234 = vld [vmem:[%s193 + $0x4c] sm:$0xf]
      %v235 = vld [vmem:[%s193 + $0x50] sm:$0xf]
      %v236 = vld [vmem:[%s193 + $0x54] sm:$0xf]
      %v237 = vld [vmem:[%s193 + $0x58] sm:$0xf]
      %v238 = vld [vmem:[%s193 + $0x5c] sm:$0xf]
      %v239 = vld [vmem:[%s193 + $0x60] sm:$0xf]
      %v240 = vld [vmem:[%s193 + $0x64] sm:$0xf]
      %v241 = vld [vmem:[%s193 + $0x68] sm:$0xf]
      %v242 = vld [vmem:[%s193 + $0x6c] sm:$0xf]
      %v243 = vld [vmem:[%s193 + $0x70] sm:$0xf]
      %v244 = vld [vmem:[%s193 + $0x74] sm:$0xf]
      %v245 = vld [vmem:[%s193 + $0x78] sm:$0xf]
      %v246 = vld [vmem:[%s193 + $0x7c] sm:$0xf]
      %v247 = vunpack.c.l.bf16 %v215
      %v248 = vunpack.c.l.bf16 %v216
      %v249 = vunpack.c.l.bf16 %v217
      %v250 = vunpack.c.l.bf16 %v218
      %v251 = vunpack.c.l.bf16 %v219
      %v252 = vunpack.c.l.bf16 %v220
      %v253 = vunpack.c.l.bf16 %v221
      %v254 = vunpack.c.l.bf16 %v222
      %v255 = vunpack.c.l.bf16 %v223
      %v256 = vunpack.c.l.bf16 %v224
      %v257 = vunpack.c.l.bf16 %v225
      %v258 = vunpack.c.l.bf16 %v226
      %v259 = vunpack.c.l.bf16 %v227
      %v260 = vunpack.c.l.bf16 %v228
      %v261 = vunpack.c.l.bf16 %v229
      %v262 = vunpack.c.l.bf16 %v230
      %v263 = vunpack.c.l.bf16 %v231
      %v264 = vunpack.c.l.bf16 %v232
      %v265 = vunpack.c.l.bf16 %v233
      %v266 = vunpack.c.l.bf16 %v234
      %v267 = vunpack.c.l.bf16 %v235
      %v268 = vunpack.c.l.bf16 %v236
      %v269 = vunpack.c.l.bf16 %v237
      %v270 = vunpack.c.l.bf16 %v238
      %v271 = vunpack.c.l.bf16 %v239
      %v272 = vunpack.c.l.bf16 %v240
      %v273 = vunpack.c.l.bf16 %v241
      %v274 = vunpack.c.l.bf16 %v242
      %v275 = vunpack.c.l.bf16 %v243
      %v276 = vunpack.c.l.bf16 %v244
      %v277 = vunpack.c.l.bf16 %v245
      %v278 = vunpack.c.l.bf16 %v246
      %v280 = vlaneseq
      %v281 = vshrl.u32 %v280, 7
      %v282 = vsub.s32 0, %v281
      %v283 = vrot.slane %v211, %v282
      %v285 = vmul.f32 %v247, %v283
      %v286 = vmul.f32 %v248, %v283
      %v287 = vmul.f32 %v249, %v283
      %v288 = vmul.f32 %v250, %v283
      %v289 = vmul.f32 %v251, %v283
      %v290 = vmul.f32 %v252, %v283
      %v291 = vmul.f32 %v253, %v283
      %v292 = vmul.f32 %v254, %v283
      %v293 = vmul.f32 %v255, %v283
      %v294 = vmul.f32 %v256, %v283
      %v295 = vmul.f32 %v257, %v283
      %v296 = vmul.f32 %v258, %v283
      %v297 = vmul.f32 %v259, %v283
      %v298 = vmul.f32 %v260, %v283
      %v299 = vmul.f32 %v261, %v283
      %v300 = vmul.f32 %v262, %v283
      %v301 = vmul.f32 %v263, %v283
      %v302 = vmul.f32 %v264, %v283
      %v303 = vmul.f32 %v265, %v283
      %v304 = vmul.f32 %v266, %v283
      %v305 = vmul.f32 %v267, %v283
      %v306 = vmul.f32 %v268, %v283
      %v307 = vmul.f32 %v269, %v283
      %v308 = vmul.f32 %v270, %v283
      %v309 = vmul.f32 %v271, %v283
      %v310 = vmul.f32 %v272, %v283
      %v311 = vmul.f32 %v273, %v283
      %v312 = vmul.f32 %v274, %v283
      %v313 = vmul.f32 %v275, %v283
      %v314 = vmul.f32 %v276, %v283
      %v315 = vmul.f32 %v277, %v283
      %v316 = vmul.f32 %v278, %v283
      %v318 = vlaneseq
      %v319 = vshrl.u32 %v318, 7
      %v320 = vsub.s32 0, %v319
      %v321 = vrot.slane %v214, %v320
      %v323 = vadd.f32 %v285, %v321
      %v324 = vadd.f32 %v286, %v321
      %v325 = vadd.f32 %v287, %v321
      %v326 = vadd.f32 %v288, %v321
      %v327 = vadd.f32 %v289, %v321
      %v328 = vadd.f32 %v290, %v321
      %v329 = vadd.f32 %v291, %v321
      %v330 = vadd.f32 %v292, %v321
      %v331 = vadd.f32 %v293, %v321
      %v332 = vadd.f32 %v294, %v321
      %v333 = vadd.f32 %v295, %v321
      %v334 = vadd.f32 %v296, %v321
      %v335 = vadd.f32 %v297, %v321
      %v336 = vadd.f32 %v298, %v321
      %v337 = vadd.f32 %v299, %v321
      %v338 = vadd.f32 %v300, %v321
      %v339 = vadd.f32 %v301, %v321
      %v340 = vadd.f32 %v302, %v321
      %v341 = vadd.f32 %v303, %v321
      %v342 = vadd.f32 %v304, %v321
      %v343 = vadd.f32 %v305, %v321
      %v344 = vadd.f32 %v306, %v321
      %v345 = vadd.f32 %v307, %v321
      %v346 = vadd.f32 %v308, %v321
      %v347 = vadd.f32 %v309, %v321
      %v348 = vadd.f32 %v310, %v321
      %v349 = vadd.f32 %v311, %v321
      %v350 = vadd.f32 %v312, %v321
      %v351 = vadd.f32 %v313, %v321
      %v352 = vadd.f32 %v314, %v321
      %v353 = vadd.f32 %v315, %v321
      %v354 = vadd.f32 %v316, %v321
      %vm355 = vcmp.ge.f32.partialorder %v323, 0.0
      %vm356 = vcmp.ge.f32.partialorder %v324, 0.0
      %vm357 = vcmp.ge.f32.partialorder %v325, 0.0
      %vm358 = vcmp.ge.f32.partialorder %v326, 0.0
      %vm359 = vcmp.ge.f32.partialorder %v327, 0.0
      %vm360 = vcmp.ge.f32.partialorder %v328, 0.0
      %vm361 = vcmp.ge.f32.partialorder %v329, 0.0
      %vm362 = vcmp.ge.f32.partialorder %v330, 0.0
      %vm363 = vcmp.ge.f32.partialorder %v331, 0.0
      %vm364 = vcmp.ge.f32.partialorder %v332, 0.0
      %vm365 = vcmp.ge.f32.partialorder %v333, 0.0
      %vm366 = vcmp.ge.f32.partialorder %v334, 0.0
      %vm367 = vcmp.ge.f32.partialorder %v335, 0.0
      %vm368 = vcmp.ge.f32.partialorder %v336, 0.0
      %vm369 = vcmp.ge.f32.partialorder %v337, 0.0
      %vm370 = vcmp.ge.f32.partialorder %v338, 0.0
      %vm371 = vcmp.ge.f32.partialorder %v339, 0.0
      %vm372 = vcmp.ge.f32.partialorder %v340, 0.0
      %vm373 = vcmp.ge.f32.partialorder %v341, 0.0
      %vm374 = vcmp.ge.f32.partialorder %v342, 0.0
      %vm375 = vcmp.ge.f32.partialorder %v343, 0.0
      %vm376 = vcmp.ge.f32.partialorder %v344, 0.0
      %vm377 = vcmp.ge.f32.partialorder %v345, 0.0
      %vm378 = vcmp.ge.f32.partialorder %v346, 0.0
      %vm379 = vcmp.ge.f32.partialorder %v347, 0.0
      %vm380 = vcmp.ge.f32.partialorder %v348, 0.0
      %vm381 = vcmp.ge.f32.partialorder %v349, 0.0
      %vm382 = vcmp.ge.f32.partialorder %v350, 0.0
      %vm383 = vcmp.ge.f32.partialorder %v351, 0.0
      %vm384 = vcmp.ge.f32.partialorder %v352, 0.0
      %vm385 = vcmp.ge.f32.partialorder %v353, 0.0
      %vm386 = vcmp.ge.f32.partialorder %v354, 0.0
      %v387 = vmul.f32 %v323, 0.2
      %v388 = vmul.f32 %v324, 0.2
      %v389 = vmul.f32 %v325, 0.2
      %v390 = vmul.f32 %v326, 0.2
      %v391 = vmul.f32 %v327, 0.2
      %v392 = vmul.f32 %v328, 0.2
      %v393 = vmul.f32 %v329, 0.2
      %v394 = vmul.f32 %v330, 0.2
      %v395 = vmul.f32 %v331, 0.2
      %v396 = vmul.f32 %v332, 0.2
      %v397 = vmul.f32 %v333, 0.2
      %v398 = vmul.f32 %v334, 0.2
      %v399 = vmul.f32 %v335, 0.2
      %v400 = vmul.f32 %v336, 0.2
      %v401 = vmul.f32 %v337, 0.2
      %v402 = vmul.f32 %v338, 0.2
      %v403 = vmul.f32 %v339, 0.2
      %v404 = vmul.f32 %v340, 0.2
      %v405 = vmul.f32 %v341, 0.2
      %v406 = vmul.f32 %v342, 0.2
      %v407 = vmul.f32 %v343, 0.2
      %v408 = vmul.f32 %v344, 0.2
      %v409 = vmul.f32 %v345, 0.2
      %v410 = vmul.f32 %v346, 0.2
      %v411 = vmul.f32 %v347, 0.2
      %v412 = vmul.f32 %v348, 0.2
      %v413 = vmul.f32 %v349, 0.2
      %v414 = vmul.f32 %v350, 0.2
      %v415 = vmul.f32 %v351, 0.2
      %v416 = vmul.f32 %v352, 0.2
      %v417 = vmul.f32 %v353, 0.2
      %v418 = vmul.f32 %v354, 0.2
      %v419 = vsel %vm355, %v323, %v387
      %v420 = vsel %vm356, %v324, %v388
      %v421 = vsel %vm357, %v325, %v389
      %v422 = vsel %vm358, %v326, %v390
      %v423 = vsel %vm359, %v327, %v391
      %v424 = vsel %vm360, %v328, %v392
      %v425 = vsel %vm361, %v329, %v393
      %v426 = vsel %vm362, %v330, %v394
      %v427 = vsel %vm363, %v331, %v395
      %v428 = vsel %vm364, %v332, %v396
      %v429 = vsel %vm365, %v333, %v397
      %v430 = vsel %vm366, %v334, %v398
      %v431 = vsel %vm367, %v335, %v399
      %v432 = vsel %vm368, %v336, %v400
      %v433 = vsel %vm369, %v337, %v401
      %v434 = vsel %vm370, %v338, %v402
      %v435 = vsel %vm371, %v339, %v403
      %v436 = vsel %vm372, %v340, %v404
      %v437 = vsel %vm373, %v341, %v405
      %v438 = vsel %vm374, %v342, %v406
      %v439 = vsel %vm375, %v343, %v407
      %v440 = vsel %vm376, %v344, %v408
      %v441 = vsel %vm377, %v345, %v409
      %v442 = vsel %vm378, %v346, %v410
      %v443 = vsel %vm379, %v347, %v411
      %v444 = vsel %vm380, %v348, %v412
      %v445 = vsel %vm381, %v349, %v413
      %v446 = vsel %vm382, %v350, %v414
      %v447 = vsel %vm383, %v351, %v415
      %v448 = vsel %vm384, %v352, %v416
      %v449 = vsel %vm385, %v353, %v417
      %v450 = vsel %vm386, %v354, %v418
      %v451 = vpack.c.bf16 %v420, %v419
      %v452 = vpack.c.bf16 %v422, %v421
      %v453 = vpack.c.bf16 %v424, %v423
      %v454 = vpack.c.bf16 %v426, %v425
      %v455 = vpack.c.bf16 %v428, %v427
      %v456 = vpack.c.bf16 %v430, %v429
      %v457 = vpack.c.bf16 %v432, %v431
      %v458 = vpack.c.bf16 %v434, %v433
      %v459 = vpack.c.bf16 %v436, %v435
      %v460 = vpack.c.bf16 %v438, %v437
      %v461 = vpack.c.bf16 %v440, %v439
      %v462 = vpack.c.bf16 %v442, %v441
      %v463 = vpack.c.bf16 %v444, %v443
      %v464 = vpack.c.bf16 %v446, %v445
      %v465 = vpack.c.bf16 %v448, %v447
      %v466 = vpack.c.bf16 %v450, %v449
      %v483 = vunpack.c.l.b16 %v451
      %v484 = vunpack.c.h.b16 %v451
      %v485 = vunpack.c.l.b16 %v452
      %v486 = vunpack.c.h.b16 %v452
      %v487 = vunpack.c.l.b16 %v453
      %v488 = vunpack.c.h.b16 %v453
      %v489 = vunpack.c.l.b16 %v454
      %v490 = vunpack.c.h.b16 %v454
      %v491 = vunpack.c.l.b16 %v455
      %v492 = vunpack.c.h.b16 %v455
      %v493 = vunpack.c.l.b16 %v456
      %v494 = vunpack.c.h.b16 %v456
      %v495 = vunpack.c.l.b16 %v457
      %v496 = vunpack.c.h.b16 %v457
      %v497 = vunpack.c.l.b16 %v458
      %v498 = vunpack.c.h.b16 %v458
      %v499 = vunpack.c.l.b16 %v459
      %v500 = vunpack.c.h.b16 %v459
      %v501 = vunpack.c.l.b16 %v460
      %v502 = vunpack.c.h.b16 %v460
      %v503 = vunpack.c.l.b16 %v461
      %v504 = vunpack.c.h.b16 %v461
      %v505 = vunpack.c.l.b16 %v462
      %v506 = vunpack.c.h.b16 %v462
      %v507 = vunpack.c.l.b16 %v463
      %v508 = vunpack.c.h.b16 %v463
      %v509 = vunpack.c.l.b16 %v464
      %v510 = vunpack.c.h.b16 %v464
      %v511 = vunpack.c.l.b16 %v465
      %v512 = vunpack.c.h.b16 %v465
      %v513 = vunpack.c.l.b16 %v466
      %v514 = vunpack.c.h.b16 %v466
      %v515 = vpack.c.b16 %v483, %v483
      %v516 = vpack.c.b16 %v484, %v484
      %v517 = vpack.c.b16 %v485, %v485
      %v518 = vpack.c.b16 %v486, %v486
      %v519 = vpack.c.b16 %v487, %v487
      %v520 = vpack.c.b16 %v488, %v488
      %v521 = vpack.c.b16 %v489, %v489
      %v522 = vpack.c.b16 %v490, %v490
      %v523 = vpack.c.b16 %v491, %v491
      %v524 = vpack.c.b16 %v492, %v492
      %v525 = vpack.c.b16 %v493, %v493
      %v526 = vpack.c.b16 %v494, %v494
      %v527 = vpack.c.b16 %v495, %v495
      %v528 = vpack.c.b16 %v496, %v496
      %v529 = vpack.c.b16 %v497, %v497
      %v530 = vpack.c.b16 %v498, %v498
      %v531 = vpack.c.b16 %v499, %v499
      %v532 = vpack.c.b16 %v500, %v500
      %v533 = vpack.c.b16 %v501, %v501
      %v534 = vpack.c.b16 %v502, %v502
      %v535 = vpack.c.b16 %v503, %v503
      %v536 = vpack.c.b16 %v504, %v504
      %v537 = vpack.c.b16 %v505, %v505
      %v538 = vpack.c.b16 %v506, %v506
      %v539 = vpack.c.b16 %v507, %v507
      %v540 = vpack.c.b16 %v508, %v508
      %v541 = vpack.c.b16 %v509, %v509
      %v542 = vpack.c.b16 %v510, %v510
      %v543 = vpack.c.b16 %v511, %v511
      %v544 = vpack.c.b16 %v512, %v512
      %v545 = vpack.c.b16 %v513, %v513
      %v546 = vpack.c.b16 %v514, %v514
      %vm579 = vcmask 125952
      %580 = vst.msk [vmem:[%s199] sm:$0xf] %vm579, %v515
      %581 = vst.msk [vmem:[%s199 + $0x4] sm:$0xf] %vm579, %v516
      %582 = vst.msk [vmem:[%s199 + $0x8] sm:$0xf] %vm579, %v517
      %583 = vst.msk [vmem:[%s199 + $0xc] sm:$0xf] %vm579, %v518
      %584 = vst.msk [vmem:[%s199 + $0x10] sm:$0xf] %vm579, %v519
      %585 = vst.msk [vmem:[%s199 + $0x14] sm:$0xf] %vm579, %v520
      %586 = vst.msk [vmem:[%s199 + $0x18] sm:$0xf] %vm579, %v521
      %587 = vst.msk [vmem:[%s199 + $0x1c] sm:$0xf] %vm579, %v522
      %588 = vst.msk [vmem:[%s199 + $0x20] sm:$0xf] %vm579, %v523
      %589 = vst.msk [vmem:[%s199 + $0x24] sm:$0xf] %vm579, %v524
      %590 = vst.msk [vmem:[%s199 + $0x28] sm:$0xf] %vm579, %v525
      %591 = vst.msk [vmem:[%s199 + $0x2c] sm:$0xf] %vm579, %v526
      %592 = vst.msk [vmem:[%s199 + $0x30] sm:$0xf] %vm579, %v527
      %593 = vst.msk [vmem:[%s199 + $0x34] sm:$0xf] %vm579, %v528
      %594 = vst.msk [vmem:[%s199 + $0x38] sm:$0xf] %vm579, %v529
      %595 = vst.msk [vmem:[%s199 + $0x3c] sm:$0xf] %vm579, %v530
      %596 = vst.msk [vmem:[%s199 + $0x40] sm:$0xf] %vm579, %v531
      %597 = vst.msk [vmem:[%s199 + $0x44] sm:$0xf] %vm579, %v532
      %598 = vst.msk [vmem:[%s199 + $0x48] sm:$0xf] %vm579, %v533
      %599 = vst.msk [vmem:[%s199 + $0x4c] sm:$0xf] %vm579, %v534
      %600 = vst.msk [vmem:[%s199 + $0x50] sm:$0xf] %vm579, %v535
      %601 = vst.msk [vmem:[%s199 + $0x54] sm:$0xf] %vm579, %v536
      %602 = vst.msk [vmem:[%s199 + $0x58] sm:$0xf] %vm579, %v537
      %603 = vst.msk [vmem:[%s199 + $0x5c] sm:$0xf] %vm579, %v538
      %604 = vst.msk [vmem:[%s199 + $0x60] sm:$0xf] %vm579, %v539
      %605 = vst.msk [vmem:[%s199 + $0x64] sm:$0xf] %vm579, %v540
      %606 = vst.msk [vmem:[%s199 + $0x68] sm:$0xf] %vm579, %v541
      %607 = vst.msk [vmem:[%s199 + $0x6c] sm:$0xf] %vm579, %v542
      %608 = vst.msk [vmem:[%s199 + $0x70] sm:$0xf] %vm579, %v543
      %609 = vst.msk [vmem:[%s199 + $0x74] sm:$0xf] %vm579, %v544
      %610 = vst.msk [vmem:[%s199 + $0x78] sm:$0xf] %vm579, %v545
      %611 = vst.msk [vmem:[%s199 + $0x7c] sm:$0xf] %vm579, %v546
      %s612 = smul.u32 32, %s15
      %p613 = scmp.lt.s32.totalorder %s612, 63
      %s614 = scalar_select %p613, %s612, 63
      %s615 = smul.addr %s614, 4
      %s616 = scalar_lea.vmem %s4, %s615
      // Predicated region
      $region37: #{discriminator_forward.8} parent=35 // pred_check
        %p617 = pneg %p122
      $region38: #{discriminator_forward.8} parent=35 // pred_check_branch
        %619 = sbr.rel (%p617) target = $region40
      $region39: #{discriminator_forward.8} parent=35 // pred_region
        %s620 = smul.u32 32, %s15
      $region40: #{discriminator_forward.8} parent=35 // pred_fallthru
        _
    $region36: #{discriminator_forward.8} parent=5 // pred_fallthru
      _
    %p621 = scmp.le.s32.totalorder 2, %s10
    // Predicated region
    $region41: #{discriminator_forward.8} parent=5 // pred_check
      %p622 = pneg %p621
    $region42: #{discriminator_forward.8} parent=5 // pred_check_branch
      %624 = sbr.rel (%p622) target = $region44
    $region43: #{discriminator_forward.8} parent=5 // pred_region
      %s625 = ssub.s32 %s10, 2
      // Predicated region
      $region45: #{discriminator_forward.8} parent=43 // pred_check
        %p626 = pneg %p128
      $region46: #{discriminator_forward.8} parent=43 // pred_check_branch
        %628 = sbr.rel (%p626) target = $region48
      $region47: #{discriminator_forward.8} parent=43 // pred_region
        %s629 = smul.u32 32, %s16
        %p630 = scmp.lt.s32.totalorder %s629, 63
        %s631 = scalar_select %p630, %s629, 63
        %s632 = smul.addr %s631, 4
        %s633 = scalar_lea.vmem %s4, %s632
      $region48: #{discriminator_forward.8} parent=43 // pred_fallthru
        _
    $region44: #{discriminator_forward.8} parent=5 // pred_fallthru
      _
  $region6: #{discriminator_forward.8} parent=0 // loop_footer
    %s14 = sadd.s32 1, %s10
  $region7: #{discriminator_forward.8} parent=0 // loop_footer_branch
    %9 = sbr.rel target = $region3
  $region8: #{discriminator_forward.8} parent=0 // loop_exit
    _

// kernel: discriminator_forward.9
$region0: #{discriminator_forward.9}
  #allocation0 [shape = 'u32[]', space=smem, size = 0x4, offset = 0x4, fixed_abs, tag = 'smem constant byte address 0x4 - core index']
  #allocation1 [shape = 'u32[144,128]{1,0:T(1,128)}', space=vmem, size = 0x12000, scoped, tag = 'internal scratch']
  %s0 = inlined_call_operand.vmem [shape: bf16[128,256], index: 0, kind: input, shape index: {}]
  %s1 = inlined_call_operand.vmem [shape: bf16[256,32], index: 1, kind: input, shape index: {}]
  %s2 = inlined_call_operand.vmem [shape: f32[1,32], index: 2, kind: input, shape index: {}]
  %s3 = inlined_call_operand.vmem [shape: f32[1,32], index: 3, kind: input, shape index: {}]
  %s4 = inlined_call_operand.vmem [shape: bf16[128,32], index: 4, kind: output, shape index: {}]
  %s5 = sld [smem:[#allocation0]]
  $region26: #{discriminator_forward.9} parent=0
    _
  %s7 = ssub.s32 1, %s5
  %s8 = scalar_select 0, %s7, %s5
  // Predicated region
  $region2: #{discriminator_forward.9} parent=0 // pred_check
    _
  $region3: #{discriminator_forward.9} parent=0 // pred_check_branch
    %10 = sbr.rel (0) target = $region5
  $region4: #{discriminator_forward.9} parent=0 // pred_region
    _
  $region5: #{discriminator_forward.9} parent=0 // pred_fallthru
    _
  // Predicated region
  $region6: #{discriminator_forward.9} parent=0 // pred_check
    _
  $region7: #{discriminator_forward.9} parent=0 // pred_check_branch
    %12 = sbr.rel (0) target = $region9
  $region8: #{discriminator_forward.9} parent=0 // pred_region
    _
  $region9: #{discriminator_forward.9} parent=0 // pred_fallthru
    _
  // Predicated region
  $region10: #{discriminator_forward.9} parent=0 // pred_check
    _
  $region11: #{discriminator_forward.9} parent=0 // pred_check_branch
    %14 = sbr.rel (0) target = $region13
  $region12: #{discriminator_forward.9} parent=0 // pred_region
    _
  $region13: #{discriminator_forward.9} parent=0 // pred_fallthru
    _
  // Predicated region
  $region14: #{discriminator_forward.9} parent=0 // pred_check
    _
  $region15: #{discriminator_forward.9} parent=0 // pred_check_branch
    %16 = sbr.rel (0) target = $region17
  $region16: #{discriminator_forward.9} parent=0 // pred_region
    _
  $region17: #{discriminator_forward.9} parent=0 // pred_fallthru
    _
  %v18 = vld [vmem:[%s0] sm:$0xff]
  %v19 = vld [vmem:[%s0 + $0x8] sm:$0xff]
  %v20 = vld [vmem:[%s0 + $0x10] sm:$0xff]
  %v21 = vld [vmem:[%s0 + $0x18] sm:$0xff]
  %v22 = vld [vmem:[%s0 + $0x20] sm:$0xff]
  %v23 = vld [vmem:[%s0 + $0x28] sm:$0xff]
  %v24 = vld [vmem:[%s0 + $0x30] sm:$0xff]
  %v25 = vld [vmem:[%s0 + $0x38] sm:$0xff]
  %v26 = vld [vmem:[%s0 + $0x40] sm:$0xff]
  %v27 = vld [vmem:[%s0 + $0x48] sm:$0xff]
  %v28 = vld [vmem:[%s0 + $0x50] sm:$0xff]
  %v29 = vld [vmem:[%s0 + $0x58] sm:$0xff]
  %v30 = vld [vmem:[%s0 + $0x60] sm:$0xff]
  %v31 = vld [vmem:[%s0 + $0x68] sm:$0xff]
  %v32 = vld [vmem:[%s0 + $0x70] sm:$0xff]
  %v33 = vld [vmem:[%s0 + $0x78] sm:$0xff]
  %v34 = vld [vmem:[%s1] sm:$0xf]
  %v35 = vld [vmem:[%s1 + $0x4] sm:$0xf]
  %v36 = vld [vmem:[%s1 + $0x8] sm:$0xf]
  %v37 = vld [vmem:[%s1 + $0xc] sm:$0xf]
  %v38 = vld [vmem:[%s1 + $0x10] sm:$0xf]
  %v39 = vld [vmem:[%s1 + $0x14] sm:$0xf]
  %v40 = vld [vmem:[%s1 + $0x18] sm:$0xf]
  %v41 = vld [vmem:[%s1 + $0x1c] sm:$0xf]
  %v42 = vld [vmem:[%s1 + $0x20] sm:$0xf]
  %v43 = vld [vmem:[%s1 + $0x24] sm:$0xf]
  %v44 = vld [vmem:[%s1 + $0x28] sm:$0xf]
  %v45 = vld [vmem:[%s1 + $0x2c] sm:$0xf]
  %v46 = vld [vmem:[%s1 + $0x30] sm:$0xf]
  %v47 = vld [vmem:[%s1 + $0x34] sm:$0xf]
  %v48 = vld [vmem:[%s1 + $0x38] sm:$0xf]
  %v49 = vld [vmem:[%s1 + $0x3c] sm:$0xf]
  %v50 = vld [vmem:[%s1 + $0x40] sm:$0xf]
  %v51 = vld [vmem:[%s1 + $0x44] sm:$0xf]
  %v52 = vld [vmem:[%s1 + $0x48] sm:$0xf]
  %v53 = vld [vmem:[%s1 + $0x4c] sm:$0xf]
  %v54 = vld [vmem:[%s1 + $0x50] sm:$0xf]
  %v55 = vld [vmem:[%s1 + $0x54] sm:$0xf]
  %v56 = vld [vmem:[%s1 + $0x58] sm:$0xf]
  %v57 = vld [vmem:[%s1 + $0x5c] sm:$0xf]
  %v58 = vld [vmem:[%s1 + $0x60] sm:$0xf]
  %v59 = vld [vmem:[%s1 + $0x64] sm:$0xf]
  %v60 = vld [vmem:[%s1 + $0x68] sm:$0xf]
  %v61 = vld [vmem:[%s1 + $0x6c] sm:$0xf]
  %v62 = vld [vmem:[%s1 + $0x70] sm:$0xf]
  %v63 = vld [vmem:[%s1 + $0x74] sm:$0xf]
  %v64 = vld [vmem:[%s1 + $0x78] sm:$0xf]
  %v65 = vld [vmem:[%s1 + $0x7c] sm:$0xf]
  %v82 = vunpack.c.l.b16 %v18
  %v83 = vunpack.c.h.b16 %v18
  %v84 = vunpack.c.l.b16 %v19
  %v85 = vunpack.c.h.b16 %v19
  %v86 = vunpack.c.l.b16 %v20
  %v87 = vunpack.c.h.b16 %v20
  %v88 = vunpack.c.l.b16 %v21
  %v89 = vunpack.c.h.b16 %v21
  %v90 = vunpack.c.l.b16 %v22
  %v91 = vunpack.c.h.b16 %v22
  %v92 = vunpack.c.l.b16 %v23
  %v93 = vunpack.c.h.b16 %v23
  %v94 = vunpack.c.l.b16 %v24
  %v95 = vunpack.c.h.b16 %v24
  %v96 = vunpack.c.l.b16 %v25
  %v97 = vunpack.c.h.b16 %v25
  %v98 = vunpack.c.l.b16 %v26
  %v99 = vunpack.c.h.b16 %v26
  %v100 = vunpack.c.l.b16 %v27
  %v101 = vunpack.c.h.b16 %v27
  %v102 = vunpack.c.l.b16 %v28
  %v103 = vunpack.c.h.b16 %v28
  %v104 = vunpack.c.l.b16 %v29
  %v105 = vunpack.c.h.b16 %v29
  %v106 = vunpack.c.l.b16 %v30
  %v107 = vunpack.c.h.b16 %v30
  %v108 = vunpack.c.l.b16 %v31
  %v109 = vunpack.c.h.b16 %v31
  %v110 = vunpack.c.l.b16 %v32
  %v111 = vunpack.c.h.b16 %v32
  %v112 = vunpack.c.l.b16 %v33
  %v113 = vunpack.c.h.b16 %v33
  %v114 = vpack.c.b16 %v84, %v82
  %v115 = vpack.c.b16 %v85, %v83
  %v116 = vpack.c.b16 %v88, %v86
  %v117 = vpack.c.b16 %v89, %v87
  %v118 = vpack.c.b16 %v92, %v90
  %v119 = vpack.c.b16 %v93, %v91
  %v120 = vpack.c.b16 %v96, %v94
  %v121 = vpack.c.b16 %v97, %v95
  %v122 = vpack.c.b16 %v100, %v98
  %v123 = vpack.c.b16 %v101, %v99
  %v124 = vpack.c.b16 %v104, %v102
  %v125 = vpack.c.b16 %v105, %v103
  %v126 = vpack.c.b16 %v108, %v106
  %v127 = vpack.c.b16 %v109, %v107
  %v128 = vpack.c.b16 %v112, %v110
  %v129 = vpack.c.b16 %v113, %v111
  %v178 = vunpack.c.l.b16 %v34
  %v179 = vunpack.c.l.b16 %v35
  %v180 = vunpack.c.l.b16 %v36
  %v181 = vunpack.c.l.b16 %v37
  %v182 = vunpack.c.l.b16 %v38
  %v183 = vunpack.c.l.b16 %v39
  %v184 = vunpack.c.l.b16 %v40
  %v185 = vunpack.c.l.b16 %v41
  %v186 = vunpack.c.l.b16 %v42
  %v187 = vunpack.c.l.b16 %v43
  %v188 = vunpack.c.l.b16 %v44
  %v189 = vunpack.c.l.b16 %v45
  %v190 = vunpack.c.l.b16 %v46
  %v191 = vunpack.c.l.b16 %v47
  %v192 = vunpack.c.l.b16 %v48
  %v193 = vunpack.c.l.b16 %v49
  %v194 = vunpack.c.l.b16 %v50
  %v195 = vunpack.c.l.b16 %v51
  %v196 = vunpack.c.l.b16 %v52
  %v197 = vunpack.c.l.b16 %v53
  %v198 = vunpack.c.l.b16 %v54
  %v199 = vunpack.c.l.b16 %v55
  %v200 = vunpack.c.l.b16 %v56
  %v201 = vunpack.c.l.b16 %v57
  %v202 = vunpack.c.l.b16 %v58
  %v203 = vunpack.c.l.b16 %v59
  %v204 = vunpack.c.l.b16 %v60
  %v205 = vunpack.c.l.b16 %v61
  %v206 = vunpack.c.l.b16 %v62
  %v207 = vunpack.c.l.b16 %v63
  %v208 = vunpack.c.l.b16 %v64
  %v209 = vunpack.c.l.b16 %v65
  %v210 = vpack.c.b16 %v179, %v178
  %v211 = vpack.c.b16 %v181, %v180
  %v212 = vpack.c.b16 %v183, %v182
  %v213 = vpack.c.b16 %v185, %v184
  %v214 = vpack.c.b16 %v187, %v186
  %v215 = vpack.c.b16 %v189, %v188
  %v216 = vpack.c.b16 %v191, %v190
  %v217 = vpack.c.b16 %v193, %v192
  %v218 = vpack.c.b16 %v195, %v194
  %v219 = vpack.c.b16 %v197, %v196
  %v220 = vpack.c.b16 %v199, %v198
  %v221 = vpack.c.b16 %v201, %v200
  %v222 = vpack.c.b16 %v203, %v202
  %v223 = vpack.c.b16 %v205, %v204
  %v224 = vpack.c.b16 %v207, %v206
  %v225 = vpack.c.b16 %v209, %v208
  %242 = vmatprep.subr.bf16.mxu0 0
  %243 = vmatpush1.bf16.msra.mxu0 %v217
  %244 = vmatprep.subr.bf16.mxu0 0
  %245 = vmatpush1.bf16.msra.mxu0 %v216
  %246 = vmatprep.subr.bf16.mxu0 0
  %247 = vmatpush1.bf16.msra.mxu0 %v215
  %248 = vmatprep.subr.bf16.mxu0 0
  %249 = vmatpush1.bf16.msra.mxu0 %v214
  %250 = vmatprep.subr.bf16.mxu0 0
  %251 = vmatpush1.bf16.msra.mxu0 %v213
  %252 = vmatprep.subr.bf16.mxu0 0
  %253 = vmatpush1.bf16.msra.mxu0 %v212
  %254 = vmatprep.subr.bf16.mxu0 0
  %255 = vmatpush1.bf16.msra.mxu0 %v211
  %256 = vmatprep.subr.bf16.mxu0 0
  %257 = vmatpush1.bf16.msra.mxu0 %v210
  %258 = vmatprep.subr.bf16.mxu0 0
  %259 = vmatpush2.bf16.msra.mxu0 %v225
  %260 = vmatprep.subr.bf16.mxu0 0
  %261 = vmatpush2.bf16.msra.mxu0 %v224
  %262 = vmatprep.subr.bf16.mxu0 0
  %263 = vmatpush2.bf16.msra.mxu0 %v223
  %264 = vmatprep.subr.bf16.mxu0 0
  %265 = vmatpush2.bf16.msra.mxu0 %v222
  %266 = vmatprep.subr.bf16.mxu0 0
  %267 = vmatpush2.bf16.msra.mxu0 %v221
  %268 = vmatprep.subr.bf16.mxu0 0
  %269 = vmatpush2.bf16.msra.mxu0 %v220
  %270 = vmatprep.subr.bf16.mxu0 0
  %271 = vmatpush2.bf16.msra.mxu0 %v219
  %272 = vmatprep.subr.bf16.mxu0 0
  %273 = vmatpush2.bf16.msra.mxu0 %v218
  %274 = vmatprep.mubr.bf16.mxu0 %v115
  %275 = vmatmul.mubr.bf16.gmra.mxu0 %v114
  %v276 = vpop.f32.mrf.mxu0
  %v277 = vadd.f32 0.0, %v276
  %v278 = vpop.f32.mrf.mxu0
  %v279 = vpop.f32.mrf.mxu0
  %v280 = vadd.f32 0.0, %v279
  %v281 = vpop.f32.mrf.mxu0
  %282 = vmatprep.mubr.bf16.mxu0 %v117
  %283 = vmatmul.mubr.bf16.gmra.mxu0 %v116
  %v284 = vpop.f32.mrf.mxu0
  %v285 = vadd.f32 0.0, %v284
  %v286 = vpop.f32.mrf.mxu0
  %v287 = vpop.f32.mrf.mxu0
  %v288 = vadd.f32 0.0, %v287
  %v289 = vpop.f32.mrf.mxu0
  %290 = vmatprep.mubr.bf16.mxu0 %v119
  %291 = vmatmul.mubr.bf16.gmra.mxu0 %v118
  %v292 = vpop.f32.mrf.mxu0
  %v293 = vadd.f32 0.0, %v292
  %v294 = vpop.f32.mrf.mxu0
  %v295 = vpop.f32.mrf.mxu0
  %v296 = vadd.f32 0.0, %v295
  %v297 = vpop.f32.mrf.mxu0
  %298 = vmatprep.mubr.bf16.mxu0 %v121
  %299 = vmatmul.mubr.bf16.gmra.mxu0 %v120
  %v300 = vpop.f32.mrf.mxu0
  %v301 = vadd.f32 0.0, %v300
  %v302 = vpop.f32.mrf.mxu0
  %v303 = vpop.f32.mrf.mxu0
  %v304 = vadd.f32 0.0, %v303
  %v305 = vpop.f32.mrf.mxu0
  %306 = vmatprep.mubr.bf16.mxu0 %v123
  %307 = vmatmul.mubr.bf16.gmra.mxu0 %v122
  %v308 = vpop.f32.mrf.mxu0
  %v309 = vadd.f32 0.0, %v308
  %v310 = vpop.f32.mrf.mxu0
  %v311 = vpop.f32.mrf.mxu0
  %v312 = vadd.f32 0.0, %v311
  %v313 = vpop.f32.mrf.mxu0
  %314 = vmatprep.mubr.bf16.mxu0 %v125
  %315 = vmatmul.mubr.bf16.gmra.mxu0 %v124
  %v316 = vpop.f32.mrf.mxu0
  %v317 = vadd.f32 0.0, %v316
  %v318 = vpop.f32.mrf.mxu0
  %v319 = vpop.f32.mrf.mxu0
  %v320 = vadd.f32 0.0, %v319
  %v321 = vpop.f32.mrf.mxu0
  %322 = vmatprep.mubr.bf16.mxu0 %v127
  %323 = vmatmul.mubr.bf16.gmra.mxu0 %v126
  %v324 = vpop.f32.mrf.mxu0
  %v325 = vadd.f32 0.0, %v324
  %v326 = vpop.f32.mrf.mxu0
  %v327 = vpop.f32.mrf.mxu0
  %v328 = vadd.f32 0.0, %v327
  %v329 = vpop.f32.mrf.mxu0
  %330 = vmatprep.mubr.bf16.mxu0 %v129
  %331 = vmatmul.mubr.bf16.gmra.mxu0 %v128
  %v332 = vpop.f32.mrf.mxu0
  %v333 = vadd.f32 0.0, %v332
  %v334 = vpop.f32.mrf.mxu0
  %v335 = vpop.f32.mrf.mxu0
  %v336 = vadd.f32 0.0, %v335
  %v337 = vpop.f32.mrf.mxu0
  %338 = vdwg.mxu0
  %vm339 = vcmask 261120
  %v340 = vsel %vm339, %v277, 0.0
  %v341 = vsel %vm339, %v280, 0.0
  %v342 = vadd.f32 %v340, %v341
  %v343 = vsel %vm339, %v285, 0.0
  %v344 = vadd.f32 %v342, %v343
  %v345 = vsel %vm339, %v288, 0.0
  %v346 = vadd.f32 %v344, %v345
  %v347 = vsel %vm339, %v293, 0.0
  %v348 = vadd.f32 %v346, %v347
  %v349 = vsel %vm339, %v296, 0.0
  %v350 = vadd.f32 %v348, %v349
  %v351 = vsel %vm339, %v301, 0.0
  %v352 = vadd.f32 %v350, %v351
  %v353 = vsel %vm339, %v304, 0.0
  %v354 = vadd.f32 %v352, %v353
  %v355 = vsel %vm339, %v309, 0.0
  %v356 = vadd.f32 %v354, %v355
  %v357 = vsel %vm339, %v312, 0.0
  %v358 = vadd.f32 %v356, %v357
  %v359 = vsel %vm339, %v317, 0.0
  %v360 = vadd.f32 %v358, %v359
  %v361 = vsel %vm339, %v320, 0.0
  %v362 = vadd.f32 %v360, %v361
  %v363 = vsel %vm339, %v325, 0.0
  %v364 = vadd.f32 %v362, %v363
  %v365 = vsel %vm339, %v328, 0.0
  %v366 = vadd.f32 %v364, %v365
  %v367 = vsel %vm339, %v333, 0.0
  %v368 = vadd.f32 %v366, %v367
  %v369 = vsel %vm339, %v336, 0.0
  %v370 = vadd.f32 %v368, %v369
  %v371 = vrot.slane %v370, 4
  %v372 = vadd.f32 %v370, %v371
  %v373 = vrot.slane %v372, 2
  %v374 = vadd.f32 %v372, %v373
  %v375 = vrot.slane %v374, 1
  %v376 = vadd.f32 %v374, %v375
  %v377 = vmul.f32 %v277, %v277
  %v378 = vmul.f32 %v280, %v280
  %v379 = vmul.f32 %v285, %v285
  %v380 = vmul.f32 %v288, %v288
  %v381 = vmul.f32 %v293, %v293
  %v382 = vmul.f32 %v296, %v296
  %v383 = vmul.f32 %v301, %v301
  %v384 = vmul.f32 %v304, %v304
  %v385 = vmul.f32 %v309, %v309
  %v386 = vmul.f32 %v312, %v312
  %v387 = vmul.f32 %v317, %v317
  %v388 = vmul.f32 %v320, %v320
  %v389 = vmul.f32 %v325, %v325
  %v390 = vmul.f32 %v328, %v328
  %v391 = vmul.f32 %v333, %v333
  %v392 = vmul.f32 %v336, %v336
  %v393 = vsel %vm339, %v377, 0.0
  %v394 = vsel %vm339, %v378, 0.0
  %v395 = vadd.f32 %v393, %v394
  %v396 = vsel %vm339, %v379, 0.0
  %v397 = vadd.f32 %v395, %v396
  %v398 = vsel %vm339, %v380, 0.0
  %v399 = vadd.f32 %v397, %v398
  %v400 = vsel %vm339, %v381, 0.0
  %v401 = vadd.f32 %v399, %v400
  %v402 = vsel %vm339, %v382, 0.0
  %v403 = vadd.f32 %v401, %v402
  %v404 = vsel %vm339, %v383, 0.0
  %v405 = vadd.f32 %v403, %v404
  %v406 = vsel %vm339, %v384, 0.0
  %v407 = vadd.f32 %v405, %v406
  %v408 = vsel %vm339, %v385, 0.0
  %v409 = vadd.f32 %v407, %v408
  %v410 = vsel %vm339, %v386, 0.0
  %v411 = vadd.f32 %v409, %v410
  %v412 = vsel %vm339, %v387, 0.0
  %v413 = vadd.f32 %v411, %v412
  %v414 = vsel %vm339, %v388, 0.0
  %v415 = vadd.f32 %v413, %v414
  %v416 = vsel %vm339, %v389, 0.0
  %v417 = vadd.f32 %v415, %v416
  %v418 = vsel %vm339, %v390, 0.0
  %v419 = vadd.f32 %v417, %v418
  %v420 = vsel %vm339, %v391, 0.0
  %v421 = vadd.f32 %v419, %v420
  %v422 = vsel %vm339, %v392, 0.0
  %v423 = vadd.f32 %v421, %v422
  %v424 = vrot.slane %v423, 4
  %v425 = vadd.f32 %v423, %v424
  %v426 = vrot.slane %v425, 2
  %v427 = vadd.f32 %v425, %v426
  %v428 = vrot.slane %v427, 1
  %v429 = vadd.f32 %v427, %v428
  %v430 = vmul.f32 %v376, 0.0078125
  %v431 = vmul.f32 %v429, 0.0078125
  %v432 = vmul.f32 %v430, %v430
  %v433 = vsub.f32 %v431, %v432
  %v434 = vmax.f32 %v433, 0.0
  %v435 = vld [vmem:[%s2] sm:$0x1]
  %v436 = vadd.f32 %v434, 1e-05
  %v437 = vrsqrt.pop %v436
  %v438 = vmul.f32 %v435, %v437
  %v439 = vld [vmem:[%s3] sm:$0x1]
  %v440 = vmul.f32 %v430, %v438
  %v441 = vsub.f32 %v439, %v440
  %v443 = vlaneseq
  %v444 = vshrl.u32 %v443, 7
  %v445 = vsub.s32 0, %v444
  %v446 = vrot.slane %v438, %v445
  %v448 = vmul.f32 %v277, %v446
  %v449 = vmul.f32 %v280, %v446
  %v450 = vmul.f32 %v285, %v446
  %v451 = vmul.f32 %v288, %v446
  %v452 = vmul.f32 %v293, %v446
  %v453 = vmul.f32 %v296, %v446
  %v454 = vmul.f32 %v301, %v446
  %v455 = vmul.f32 %v304, %v446
  %v456 = vmul.f32 %v309, %v446
  %v457 = vmul.f32 %v312, %v446
  %v458 = vmul.f32 %v317, %v446
  %v459 = vmul.f32 %v320, %v446
  %v460 = vmul.f32 %v325, %v446
  %v461 = vmul.f32 %v328, %v446
  %v462 = vmul.f32 %v333, %v446
  %v463 = vmul.f32 %v336, %v446
  %v465 = vlaneseq
  %v466 = vshrl.u32 %v465, 7
  %v467 = vsub.s32 0, %v466
  %v468 = vrot.slane %v441, %v467
  %v470 = vadd.f32 %v448, %v468
  %v471 = vadd.f32 %v449, %v468
  %v472 = vadd.f32 %v450, %v468
  %v473 = vadd.f32 %v451, %v468
  %v474 = vadd.f32 %v452, %v468
  %v475 = vadd.f32 %v453, %v468
  %v476 = vadd.f32 %v454, %v468
  %v477 = vadd.f32 %v455, %v468
  %v478 = vadd.f32 %v456, %v468
  %v479 = vadd.f32 %v457, %v468
  %v480 = vadd.f32 %v458, %v468
  %v481 = vadd.f32 %v459, %v468
  %v482 = vadd.f32 %v460, %v468
  %v483 = vadd.f32 %v461, %v468
  %v484 = vadd.f32 %v462, %v468
  %v485 = vadd.f32 %v463, %v468
  %vm486 = vcmp.ge.f32.partialorder %v470, 0.0
  %vm487 = vcmp.ge.f32.partialorder %v471, 0.0
  %vm488 = vcmp.ge.f32.partialorder %v472, 0.0
  %vm489 = vcmp.ge.f32.partialorder %v473, 0.0
  %vm490 = vcmp.ge.f32.partialorder %v474, 0.0
  %vm491 = vcmp.ge.f32.partialorder %v475, 0.0
  %vm492 = vcmp.ge.f32.partialorder %v476, 0.0
  %vm493 = vcmp.ge.f32.partialorder %v477, 0.0
  %vm494 = vcmp.ge.f32.partialorder %v478, 0.0
  %vm495 = vcmp.ge.f32.partialorder %v479, 0.0
  %vm496 = vcmp.ge.f32.partialorder %v480, 0.0
  %vm497 = vcmp.ge.f32.partialorder %v481, 0.0
  %vm498 = vcmp.ge.f32.partialorder %v482, 0.0
  %vm499 = vcmp.ge.f32.partialorder %v483, 0.0
  %vm500 = vcmp.ge.f32.partialorder %v484, 0.0
  %vm501 = vcmp.ge.f32.partialorder %v485, 0.0
  %v502 = vmul.f32 %v470, 0.2
  %v503 = vmul.f32 %v471, 0.2
  %v504 = vmul.f32 %v472, 0.2
  %v505 = vmul.f32 %v473, 0.2
  %v506 = vmul.f32 %v474, 0.2
  %v507 = vmul.f32 %v475, 0.2
  %v508 = vmul.f32 %v476, 0.2
  %v509 = vmul.f32 %v477, 0.2
  %v510 = vmul.f32 %v478, 0.2
  %v511 = vmul.f32 %v479, 0.2
  %v512 = vmul.f32 %v480, 0.2
  %v513 = vmul.f32 %v481, 0.2
  %v514 = vmul.f32 %v482, 0.2
  %v515 = vmul.f32 %v483, 0.2
  %v516 = vmul.f32 %v484, 0.2
  %v517 = vmul.f32 %v485, 0.2
  %v518 = vsel %vm486, %v470, %v502
  %v519 = vsel %vm487, %v471, %v503
  %v520 = vsel %vm488, %v472, %v504
  %v521 = vsel %vm489, %v473, %v505
  %v522 = vsel %vm490, %v474, %v506
  %v523 = vsel %vm491, %v475, %v507
  %v524 = vsel %vm492, %v476, %v508
  %v525 = vsel %vm493, %v477, %v509
  %v526 = vsel %vm494, %v478, %v510
  %v527 = vsel %vm495, %v479, %v511
  %v528 = vsel %vm496, %v480, %v512
  %v529 = vsel %vm497, %v481, %v513
  %v530 = vsel %vm498, %v482, %v514
  %v531 = vsel %vm499, %v483, %v515
  %v532 = vsel %vm500, %v484, %v516
  %v533 = vsel %vm501, %v485, %v517
  %v534 = vpack.c.bf16 %v519, %v518
  %v535 = vpack.c.bf16 %v521, %v520
  %v536 = vpack.c.bf16 %v523, %v522
  %v537 = vpack.c.bf16 %v525, %v524
  %v538 = vpack.c.bf16 %v527, %v526
  %v539 = vpack.c.bf16 %v529, %v528
  %v540 = vpack.c.bf16 %v531, %v530
  %v541 = vpack.c.bf16 %v533, %v532
  %v550 = vunpack.c.l.b16 %v534
  %v551 = vunpack.c.h.b16 %v534
  %v552 = vunpack.c.l.b16 %v535
  %v553 = vunpack.c.h.b16 %v535
  %v554 = vunpack.c.l.b16 %v536
  %v555 = vunpack.c.h.b16 %v536
  %v556 = vunpack.c.l.b16 %v537
  %v557 = vunpack.c.h.b16 %v537
  %v558 = vunpack.c.l.b16 %v538
  %v559 = vunpack.c.h.b16 %v538
  %v560 = vunpack.c.l.b16 %v539
  %v561 = vunpack.c.h.b16 %v539
  %v562 = vunpack.c.l.b16 %v540
  %v563 = vunpack.c.h.b16 %v540
  %v564 = vunpack.c.l.b16 %v541
  %v565 = vunpack.c.h.b16 %v541
  %v566 = vpack.c.b16 %v550, %v550
  %v567 = vpack.c.b16 %v551, %v551
  %v568 = vpack.c.b16 %v552, %v552
  %v569 = vpack.c.b16 %v553, %v553
  %v570 = vpack.c.b16 %v554, %v554
  %v571 = vpack.c.b16 %v555, %v555
  %v572 = vpack.c.b16 %v556, %v556
  %v573 = vpack.c.b16 %v557, %v557
  %v574 = vpack.c.b16 %v558, %v558
  %v575 = vpack.c.b16 %v559, %v559
  %v576 = vpack.c.b16 %v560, %v560
  %v577 = vpack.c.b16 %v561, %v561
  %v578 = vpack.c.b16 %v562, %v562
  %v579 = vpack.c.b16 %v563, %v563
  %v580 = vpack.c.b16 %v564, %v564
  %v581 = vpack.c.b16 %v565, %v565
  %vm598 = vcmask 257024
  %599 = vst.msk [vmem:[%s4] sm:$0xf] %vm598, %v566
  %600 = vst.msk [vmem:[%s4 + $0x4] sm:$0xf] %vm598, %v567
  %601 = vst.msk [vmem:[%s4 + $0x8] sm:$0xf] %vm598, %v568
  %602 = vst.msk [vmem:[%s4 + $0xc] sm:$0xf] %vm598, %v569
  %603 = vst.msk [vmem:[%s4 + $0x10] sm:$0xf] %vm598, %v570
  %604 = vst.msk [vmem:[%s4 + $0x14] sm:$0xf] %vm598, %v571
  %605 = vst.msk [vmem:[%s4 + $0x18] sm:$0xf] %vm598, %v572
  %606 = vst.msk [vmem:[%s4 + $0x1c] sm:$0xf] %vm598, %v573
  %607 = vst.msk [vmem:[%s4 + $0x20] sm:$0xf] %vm598, %v574
  %608 = vst.msk [vmem:[%s4 + $0x24] sm:$0xf] %vm598, %v575
  %609 = vst.msk [vmem:[%s4 + $0x28] sm:$0xf] %vm598, %v576
  %610 = vst.msk [vmem:[%s4 + $0x2c] sm:$0xf] %vm598, %v577
  %611 = vst.msk [vmem:[%s4 + $0x30] sm:$0xf] %vm598, %v578
  %612 = vst.msk [vmem:[%s4 + $0x34] sm:$0xf] %vm598, %v579
  %613 = vst.msk [vmem:[%s4 + $0x38] sm:$0xf] %vm598, %v580
  %614 = vst.msk [vmem:[%s4 + $0x3c] sm:$0xf] %vm598, %v581
  // Predicated region
  $region18: #{discriminator_forward.9} parent=0 // pred_check
    _
  $region19: #{discriminator_forward.9} parent=0 // pred_check_branch
    %616 = sbr.rel (0) target = $region21
  $region20: #{discriminator_forward.9} parent=0 // pred_region
    _
  $region21: #{discriminator_forward.9} parent=0 // pred_fallthru
    _
  // Predicated region
  $region22: #{discriminator_forward.9} parent=0 // pred_check
    _
  $region23: #{discriminator_forward.9} parent=0 // pred_check_branch
    %618 = sbr.rel (0) target = $region25
  $region24: #{discriminator_forward.9} parent=0 // pred_region
    _
  $region25: #{discriminator_forward.9} parent=0 // pred_fallthru
    _

// kernel: discriminator_forward.10
$region0: #{discriminator_forward.10}
  #allocation0 [shape = 'u32[]', space=smem, size = 0x4, offset = 0x4, fixed_abs, tag = 'smem constant byte address 0x4 - core index']
  #allocation1 [shape = 'u32[144,128]{1,0:T(1,128)}', space=vmem, size = 0x12000, scoped, tag = 'internal scratch']
  %s0 = inlined_call_operand.vmem [shape: bf16[32,512], index: 0, kind: input, shape index: {}]
  %s1 = inlined_call_operand.vmem [shape: bf16[512,64], index: 1, kind: input, shape index: {}]
  %s2 = inlined_call_operand.vmem [shape: f32[1,64], index: 2, kind: input, shape index: {}]
  %s3 = inlined_call_operand.vmem [shape: f32[1,64], index: 3, kind: input, shape index: {}]
  %s4 = inlined_call_operand.vmem [shape: bf16[32,64], index: 4, kind: output, shape index: {}]
  %s5 = sld [smem:[#allocation0]]
  $region26: #{discriminator_forward.10} parent=0
    _
  %s7 = ssub.s32 1, %s5
  %s8 = scalar_select 0, %s7, %s5
  // Predicated region
  $region2: #{discriminator_forward.10} parent=0 // pred_check
    _
  $region3: #{discriminator_forward.10} parent=0 // pred_check_branch
    %10 = sbr.rel (0) target = $region5
  $region4: #{discriminator_forward.10} parent=0 // pred_region
    _
  $region5: #{discriminator_forward.10} parent=0 // pred_fallthru
    _
  // Predicated region
  $region6: #{discriminator_forward.10} parent=0 // pred_check
    _
  $region7: #{discriminator_forward.10} parent=0 // pred_check_branch
    %12 = sbr.rel (0) target = $region9
  $region8: #{discriminator_forward.10} parent=0 // pred_region
    _
  $region9: #{discriminator_forward.10} parent=0 // pred_fallthru
    _
  // Predicated region
  $region10: #{discriminator_forward.10} parent=0 // pred_check
    _
  $region11: #{discriminator_forward.10} parent=0 // pred_check_branch
    %14 = sbr.rel (0) target = $region13
  $region12: #{discriminator_forward.10} parent=0 // pred_region
    _
  $region13: #{discriminator_forward.10} parent=0 // pred_fallthru
    _
  // Predicated region
  $region14: #{discriminator_forward.10} parent=0 // pred_check
    _
  $region15: #{discriminator_forward.10} parent=0 // pred_check_branch
    %16 = sbr.rel (0) target = $region17
  $region16: #{discriminator_forward.10} parent=0 // pred_region
    _
  $region17: #{discriminator_forward.10} parent=0 // pred_fallthru
    _
  %v18 = vld [vmem:[%s0] sm:$0xff]
  %v19 = vld [vmem:[%s0 + $0x8] sm:$0xff]
  %v20 = vld [vmem:[%s0 + $0x10] sm:$0xff]
  %v21 = vld [vmem:[%s0 + $0x18] sm:$0xff]
  %v22 = vld [vmem:[%s0 + $0x20] sm:$0xff]
  %v23 = vld [vmem:[%s0 + $0x28] sm:$0xff]
  %v24 = vld [vmem:[%s0 + $0x30] sm:$0xff]
  %v25 = vld [vmem:[%s0 + $0x38] sm:$0xff]
  %v26 = vld [vmem:[%s1] sm:$0xf]
  %v27 = vld [vmem:[%s1 + $0x4] sm:$0xf]
  %v28 = vld [vmem:[%s1 + $0x8] sm:$0xf]
  %v29 = vld [vmem:[%s1 + $0xc] sm:$0xf]
  %v30 = vld [vmem:[%s1 + $0x10] sm:$0xf]
  %v31 = vld [vmem:[%s1 + $0x14] sm:$0xf]
  %v32 = vld [vmem:[%s1 + $0x18] sm:$0xf]
  %v33 = vld [vmem:[%s1 + $0x1c] sm:$0xf]
  %v34 = vld [vmem:[%s1 + $0x20] sm:$0xf]
  %v35 = vld [vmem:[%s1 + $0x24] sm:$0xf]
  %v36 = vld [vmem:[%s1 + $0x28] sm:$0xf]
  %v37 = vld [vmem:[%s1 + $0x2c] sm:$0xf]
  %v38 = vld [vmem:[%s1 + $0x30] sm:$0xf]
  %v39 = vld [vmem:[%s1 + $0x34] sm:$0xf]
  %v40 = vld [vmem:[%s1 + $0x38] sm:$0xf]
  %v41 = vld [vmem:[%s1 + $0x3c] sm:$0xf]
  %v42 = vld [vmem:[%s1 + $0x40] sm:$0xf]
  %v43 = vld [vmem:[%s1 + $0x44] sm:$0xf]
  %v44 = vld [vmem:[%s1 + $0x48] sm:$0xf]
  %v45 = vld [vmem:[%s1 + $0x4c] sm:$0xf]
  %v46 = vld [vmem:[%s1 + $0x50] sm:$0xf]
  %v47 = vld [vmem:[%s1 + $0x54] sm:$0xf]
  %v48 = vld [vmem:[%s1 + $0x58] sm:$0xf]
  %v49 = vld [vmem:[%s1 + $0x5c] sm:$0xf]
  %v50 = vld [vmem:[%s1 + $0x60] sm:$0xf]
  %v51 = vld [vmem:[%s1 + $0x64] sm:$0xf]
  %v52 = vld [vmem:[%s1 + $0x68] sm:$0xf]
  %v53 = vld [vmem:[%s1 + $0x6c] sm:$0xf]
  %v54 = vld [vmem:[%s1 + $0x70] sm:$0xf]
  %v55 = vld [vmem:[%s1 + $0x74] sm:$0xf]
  %v56 = vld [vmem:[%s1 + $0x78] sm:$0xf]
  %v57 = vld [vmem:[%s1 + $0x7c] sm:$0xf]
  %v58 = vld [vmem:[%s1 + $0x80] sm:$0xf]
  %v59 = vld [vmem:[%s1 + $0x84] sm:$0xf]
  %v60 = vld [vmem:[%s1 + $0x88] sm:$0xf]
  %v61 = vld [vmem:[%s1 + $0x8c] sm:$0xf]
  %v62 = vld [vmem:[%s1 + $0x90] sm:$0xf]
  %v63 = vld [vmem:[%s1 + $0x94] sm:$0xf]
  %v64 = vld [vmem:[%s1 + $0x98] sm:$0xf]
  %v65 = vld [vmem:[%s1 + $0x9c] sm:$0xf]
  %v66 = vld [vmem:[%s1 + $0xa0] sm:$0xf]
  %v67 = vld [vmem:[%s1 + $0xa4] sm:$0xf]
  %v68 = vld [vmem:[%s1 + $0xa8] sm:$0xf]
  %v69 = vld [vmem:[%s1 + $0xac] sm:$0xf]
  %v70 = vld [vmem:[%s1 + $0xb0] sm:$0xf]
  %v71 = vld [vmem:[%s1 + $0xb4] sm:$0xf]
  %v72 = vld [vmem:[%s1 + $0xb8] sm:$0xf]
  %v73 = vld [vmem:[%s1 + $0xbc] sm:$0xf]
  %v74 = vld [vmem:[%s1 + $0xc0] sm:$0xf]
  %v75 = vld [vmem:[%s1 + $0xc4] sm:$0xf]
  %v76 = vld [vmem:[%s1 + $0xc8] sm:$0xf]
  %v77 = vld [vmem:[%s1 + $0xcc] sm:$0xf]
  %v78 = vld [vmem:[%s1 + $0xd0] sm:$0xf]
  %v79 = vld [vmem:[%s1 + $0xd4] sm:$0xf]
  %v80 = vld [vmem:[%s1 + $0xd8] sm:$0xf]
  %v81 = vld [vmem:[%s1 + $0xdc] sm:$0xf]
  %v82 = vld [vmem:[%s1 + $0xe0] sm:$0xf]
  %v83 = vld [vmem:[%s1 + $0xe4] sm:$0xf]
  %v84 = vld [vmem:[%s1 + $0xe8] sm:$0xf]
  %v85 = vld [vmem:[%s1 + $0xec] sm:$0xf]
  %v86 = vld [vmem:[%s1 + $0xf0] sm:$0xf]
  %v87 = vld [vmem:[%s1 + $0xf4] sm:$0xf]
  %v88 = vld [vmem:[%s1 + $0xf8] sm:$0xf]
  %v89 = vld [vmem:[%s1 + $0xfc] sm:$0xf]
  %v98 = vunpack.c.l.b16 %v18
  %v99 = vunpack.c.h.b16 %v18
  %v100 = vunpack.c.l.b16 %v19
  %v101 = vunpack.c.h.b16 %v19
  %v102 = vunpack.c.l.b16 %v20
  %v103 = vunpack.c.h.b16 %v20
  %v104 = vunpack.c.l.b16 %v21
  %v105 = vunpack.c.h.b16 %v21
  %v106 = vunpack.c.l.b16 %v22
  %v107 = vunpack.c.h.b16 %v22
  %v108 = vunpack.c.l.b16 %v23
  %v109 = vunpack.c.h.b16 %v23
  %v110 = vunpack.c.l.b16 %v24
  %v111 = vunpack.c.h.b16 %v24
  %v112 = vunpack.c.l.b16 %v25
  %v113 = vunpack.c.h.b16 %v25
  %v114 = vpack.c.b16 %v102, %v98
  %v115 = vpack.c.b16 %v103, %v99
  %v116 = vpack.c.b16 %v104, %v100
  %v117 = vpack.c.b16 %v105, %v101
  %v118 = vpack.c.b16 %v110, %v106
  %v119 = vpack.c.b16 %v111, %v107
  %v120 = vpack.c.b16 %v112, %v108
  %v121 = vpack.c.b16 %v113, %v109
  %v194 = vunpack.c.l.b16 %v26
  %v195 = vunpack.c.l.b16 %v27
  %v196 = vunpack.c.l.b16 %v28
  %v197 = vunpack.c.l.b16 %v29
  %v198 = vunpack.c.l.b16 %v30
  %v199 = vunpack.c.l.b16 %v31
  %v200 = vunpack.c.l.b16 %v32
  %v201 = vunpack.c.l.b16 %v33
  %v202 = vunpack.c.l.b16 %v34
  %v203 = vunpack.c.l.b16 %v35
  %v204 = vunpack.c.l.b16 %v36
  %v205 = vunpack.c.l.b16 %v37
  %v206 = vunpack.c.l.b16 %v38
  %v207 = vunpack.c.l.b16 %v39
  %v208 = vunpack.c.l.b16 %v40
  %v209 = vunpack.c.l.b16 %v41
  %v210 = vunpack.c.l.b16 %v42
  %v211 = vunpack.c.l.b16 %v43
  %v212 = vunpack.c.l.b16 %v44
  %v213 = vunpack.c.l.b16 %v45
  %v214 = vunpack.c.l.b16 %v46
  %v215 = vunpack.c.l.b16 %v47
  %v216 = vunpack.c.l.b16 %v48
  %v217 = vunpack.c.l.b16 %v49
  %v218 = vunpack.c.l.b16 %v50
  %v219 = vunpack.c.l.b16 %v51
  %v220 = vunpack.c.l.b16 %v52
  %v221 = vunpack.c.l.b16 %v53
  %v222 = vunpack.c.l.b16 %v54
  %v223 = vunpack.c.l.b16 %v55
  %v224 = vunpack.c.l.b16 %v56
  %v225 = vunpack.c.l.b16 %v57
  %v226 = vunpack.c.l.b16 %v58
  %v227 = vunpack.c.l.b16 %v59
  %v228 = vunpack.c.l.b16 %v60
  %v229 = vunpack.c.l.b16 %v61
  %v230 = vunpack.c.l.b16 %v62
  %v231 = vunpack.c.l.b16 %v63
  %v232 = vunpack.c.l.b16 %v64
  %v233 = vunpack.c.l.b16 %v65
  %v234 = vunpack.c.l.b16 %v66
  %v235 = vunpack.c.l.b16 %v67
  %v236 = vunpack.c.l.b16 %v68
  %v237 = vunpack.c.l.b16 %v69
  %v238 = vunpack.c.l.b16 %v70
  %v239 = vunpack.c.l.b16 %v71
  %v240 = vunpack.c.l.b16 %v72
  %v241 = vunpack.c.l.b16 %v73
  %v242 = vunpack.c.l.b16 %v74
  %v243 = vunpack.c.l.b16 %v75
  %v244 = vunpack.c.l.b16 %v76
  %v245 = vunpack.c.l.b16 %v77
  %v246 = vunpack.c.l.b16 %v78
  %v247 = vunpack.c.l.b16 %v79
  %v248 = vunpack.c.l.b16 %v80
  %v249 = vunpack.c.l.b16 %v81
  %v250 = vunpack.c.l.b16 %v82
  %v251 = vunpack.c.l.b16 %v83
  %v252 = vunpack.c.l.b16 %v84
  %v253 = vunpack.c.l.b16 %v85
  %v254 = vunpack.c.l.b16 %v86
  %v255 = vunpack.c.l.b16 %v87
  %v256 = vunpack.c.l.b16 %v88
  %v257 = vunpack.c.l.b16 %v89
  %v258 = vpack.c.b16 %v195, %v194
  %v259 = vpack.c.b16 %v197, %v196
  %v260 = vpack.c.b16 %v199, %v198
  %v261 = vpack.c.b16 %v201, %v200
  %v262 = vpack.c.b16 %v203, %v202
  %v263 = vpack.c.b16 %v205, %v204
  %v264 = vpack.c.b16 %v207, %v206
  %v265 = vpack.c.b16 %v209, %v208
  %v266 = vpack.c.b16 %v211, %v210
  %v267 = vpack.c.b16 %v213, %v212
  %v268 = vpack.c.b16 %v215, %v214
  %v269 = vpack.c.b16 %v217, %v216
  %v270 = vpack.c.b16 %v219, %v218
  %v271 = vpack.c.b16 %v221, %v220
  %v272 = vpack.c.b16 %v223, %v222
  %v273 = vpack.c.b16 %v225, %v224
  %v274 = vpack.c.b16 %v227, %v226
  %v275 = vpack.c.b16 %v229, %v228
  %v276 = vpack.c.b16 %v231, %v230
  %v277 = vpack.c.b16 %v233, %v232
  %v278 = vpack.c.b16 %v235, %v234
  %v279 = vpack.c.b16 %v237, %v236
  %v280 = vpack.c.b16 %v239, %v238
  %v281 = vpack.c.b16 %v241, %v240
  %v282 = vpack.c.b16 %v243, %v242
  %v283 = vpack.c.b16 %v245, %v244
  %v284 = vpack.c.b16 %v247, %v246
  %v285 = vpack.c.b16 %v249, %v248
  %v286 = vpack.c.b16 %v251, %v250
  %v287 = vpack.c.b16 %v253, %v252
  %v288 = vpack.c.b16 %v255, %v254
  %v289 = vpack.c.b16 %v257, %v256
  %322 = vmatprep.subr.bf16.mxu0 0
  %323 = vmatpush1.bf16.msra.mxu0 %v265
  %324 = vmatprep.subr.bf16.mxu0 0
  %325 = vmatpush1.bf16.msra.mxu0 %v264
  %326 = vmatprep.subr.bf16.mxu0 0
  %327 = vmatpush1.bf16.msra.mxu0 %v263
  %328 = vmatprep.subr.bf16.mxu0 0
  %329 = vmatpush1.bf16.msra.mxu0 %v262
  %330 = vmatprep.subr.bf16.mxu0 0
  %331 = vmatpush1.bf16.msra.mxu0 %v261
  %332 = vmatprep.subr.bf16.mxu0 0
  %333 = vmatpush1.bf16.msra.mxu0 %v260
  %334 = vmatprep.subr.bf16.mxu0 0
  %335 = vmatpush1.bf16.msra.mxu0 %v259
  %336 = vmatprep.subr.bf16.mxu0 0
  %337 = vmatpush1.bf16.msra.mxu0 %v258
  %338 = vmatprep.subr.bf16.mxu0 0
  %339 = vmatpush2.bf16.msra.mxu0 %v273
  %340 = vmatprep.subr.bf16.mxu0 0
  %341 = vmatpush2.bf16.msra.mxu0 %v272
  %342 = vmatprep.subr.bf16.mxu0 0
  %343 = vmatpush2.bf16.msra.mxu0 %v271
  %344 = vmatprep.subr.bf16.mxu0 0
  %345 = vmatpush2.bf16.msra.mxu0 %v270
  %346 = vmatprep.subr.bf16.mxu0 0
  %347 = vmatpush2.bf16.msra.mxu0 %v269
  %348 = vmatprep.subr.bf16.mxu0 0
  %349 = vmatpush2.bf16.msra.mxu0 %v268
  %350 = vmatprep.subr.bf16.mxu0 0
  %351 = vmatpush2.bf16.msra.mxu0 %v267
  %352 = vmatprep.subr.bf16.mxu0 0
  %353 = vmatpush2.bf16.msra.mxu0 %v266
  %354 = vmatprep.mubr.bf16.mxu0 %v115
  %355 = vmatmul.mubr.bf16.gmra.mxu0 %v114
  %v356 = vpop.f32.mrf.mxu0
  %v357 = vadd.f32 0.0, %v356
  %v358 = vpop.f32.mrf.mxu0
  %v359 = vpop.f32.mrf.mxu0
  %v360 = vadd.f32 0.0, %v359
  %v361 = vpop.f32.mrf.mxu0
  %362 = vmatprep.mubr.bf16.mxu0 %v119
  %363 = vmatmul.mubr.bf16.gmra.mxu0 %v118
  %v364 = vpop.f32.mrf.mxu0
  %v365 = vadd.f32 0.0, %v364
  %v366 = vpop.f32.mrf.mxu0
  %v367 = vpop.f32.mrf.mxu0
  %v368 = vadd.f32 0.0, %v367
  %v369 = vpop.f32.mrf.mxu0
  %370 = vdwg.mxu0
  %371 = vmatprep.subr.bf16.mxu0 0
  %372 = vmatpush1.bf16.msra.mxu0 %v281
  %373 = vmatprep.subr.bf16.mxu0 0
  %374 = vmatpush1.bf16.msra.mxu0 %v280
  %375 = vmatprep.subr.bf16.mxu0 0
  %376 = vmatpush1.bf16.msra.mxu0 %v279
  %377 = vmatprep.subr.bf16.mxu0 0
  %378 = vmatpush1.bf16.msra.mxu0 %v278
  %379 = vmatprep.subr.bf16.mxu0 0
  %380 = vmatpush1.bf16.msra.mxu0 %v277
  %381 = vmatprep.subr.bf16.mxu0 0
  %382 = vmatpush1.bf16.msra.mxu0 %v276
  %383 = vmatprep.subr.bf16.mxu0 0
  %384 = vmatpush1.bf16.msra.mxu0 %v275
  %385 = vmatprep.subr.bf16.mxu0 0
  %386 = vmatpush1.bf16.msra.mxu0 %v274
  %387 = vmatprep.subr.bf16.mxu0 0
  %388 = vmatpush2.bf16.msra.mxu0 %v289
  %389 = vmatprep.subr.bf16.mxu0 0
  %390 = vmatpush2.bf16.msra.mxu0 %v288
  %391 = vmatprep.subr.bf16.mxu0 0
  %392 = vmatpush2.bf16.msra.mxu0 %v287
  %393 = vmatprep.subr.bf16.mxu0 0
  %394 = vmatpush2.bf16.msra.mxu0 %v286
  %395 = vmatprep.subr.bf16.mxu0 0
  %396 = vmatpush2.bf16.msra.mxu0 %v285
  %397 = vmatprep.subr.bf16.mxu0 0
  %398 = vmatpush2.bf16.msra.mxu0 %v284
  %399 = vmatprep.subr.bf16.mxu0 0
  %400 = vmatpush2.bf16.msra.mxu0 %v283
  %401 = vmatprep.subr.bf16.mxu0 0
  %402 = vmatpush2.bf16.msra.mxu0 %v282
  %403 = vmatprep.mubr.bf16.mxu0 %v117
  %404 = vmatmul.mubr.bf16.gmra.mxu0 %v116
  %v405 = vpop.f32.mrf.mxu0
  %v406 = vadd.f32 %v357, %v405
  %v407 = vpop.f32.mrf.mxu0
  %v408 = vpop.f32.mrf.mxu0
  %v409 = vadd.f32 %v360, %v408
  %v410 = vpop.f32.mrf.mxu0
  %411 = vmatprep.mubr.bf16.mxu0 %v121
  %412 = vmatmul.mubr.bf16.gmra.mxu0 %v120
  %v413 = vpop.f32.mrf.mxu0
  %v414 = vadd.f32 %v365, %v413
  %v415 = vpop.f32.mrf.mxu0
  %v416 = vpop.f32.mrf.mxu0
  %v417 = vadd.f32 %v368, %v416
  %v418 = vpop.f32.mrf.mxu0
  %419 = vdwg.mxu0
  %vm420 = vcmask 523264
  %v421 = vsel %vm420, %v406, 0.0
  %v422 = vsel %vm420, %v409, 0.0
  %v423 = vadd.f32 %v421, %v422
  %v424 = vsel %vm420, %v414, 0.0
  %v425 = vadd.f32 %v423, %v424
  %v426 = vsel %vm420, %v417, 0.0
  %v427 = vadd.f32 %v425, %v426
  %v428 = vrot.slane %v427, 4
  %v429 = vadd.f32 %v427, %v428
  %v430 = vrot.slane %v429, 2
  %v431 = vadd.f32 %v429, %v430
  %v432 = vrot.slane %v431, 1
  %v433 = vadd.f32 %v431, %v432
  %v434 = vmul.f32 %v406, %v406
  %v435 = vmul.f32 %v409, %v409
  %v436 = vmul.f32 %v414, %v414
  %v437 = vmul.f32 %v417, %v417
  %v438 = vsel %vm420, %v434, 0.0
  %v439 = vsel %vm420, %v435, 0.0
  %v440 = vadd.f32 %v438, %v439
  %v441 = vsel %vm420, %v436, 0.0
  %v442 = vadd.f32 %v440, %v441
  %v443 = vsel %vm420, %v437, 0.0
  %v444 = vadd.f32 %v442, %v443
  %v445 = vrot.slane %v444, 4
  %v446 = vadd.f32 %v444, %v445
  %v447 = vrot.slane %v446, 2
  %v448 = vadd.f32 %v446, %v447
  %v449 = vrot.slane %v448, 1
  %v450 = vadd.f32 %v448, %v449
  %v451 = vmul.f32 %v433, 0.03125
  %v452 = vmul.f32 %v450, 0.03125
  %v453 = vmul.f32 %v451, %v451
  %v454 = vsub.f32 %v452, %v453
  %v455 = vmax.f32 %v454, 0.0
  %v456 = vld [vmem:[%s2] sm:$0x1]
  %v457 = vadd.f32 %v455, 1e-05
  %v458 = vrsqrt.pop %v457
  %v459 = vmul.f32 %v456, %v458
  %v460 = vld [vmem:[%s3] sm:$0x1]
  %v461 = vmul.f32 %v451, %v459
  %v462 = vsub.f32 %v460, %v461
  %v464 = vlaneseq
  %v465 = vshrl.u32 %v464, 7
  %v466 = vsub.s32 0, %v465
  %v467 = vrot.slane %v459, %v466
  %v469 = vmul.f32 %v406, %v467
  %v470 = vmul.f32 %v409, %v467
  %v471 = vmul.f32 %v414, %v467
  %v472 = vmul.f32 %v417, %v467
  %v474 = vlaneseq
  %v475 = vshrl.u32 %v474, 7
  %v476 = vsub.s32 0, %v475
  %v477 = vrot.slane %v462, %v476
  %v479 = vadd.f32 %v469, %v477
  %v480 = vadd.f32 %v470, %v477
  %v481 = vadd.f32 %v471, %v477
  %v482 = vadd.f32 %v472, %v477
  %vm483 = vcmp.ge.f32.partialorder %v479, 0.0
  %vm484 = vcmp.ge.f32.partialorder %v480, 0.0
  %vm485 = vcmp.ge.f32.partialorder %v481, 0.0
  %vm486 = vcmp.ge.f32.partialorder %v482, 0.0
  %v487 = vmul.f32 %v479, 0.2
  %v488 = vmul.f32 %v480, 0.2
  %v489 = vmul.f32 %v481, 0.2
  %v490 = vmul.f32 %v482, 0.2
  %v491 = vsel %vm483, %v479, %v487
  %v492 = vsel %vm484, %v480, %v488
  %v493 = vsel %vm485, %v481, %v489
  %v494 = vsel %vm486, %v482, %v490
  %v495 = vpack.c.bf16 %v492, %v491
  %v496 = vpack.c.bf16 %v494, %v493
  %v499 = vunpack.c.l.b16 %v495
  %v500 = vunpack.c.h.b16 %v495
  %v501 = vunpack.c.l.b16 %v496
  %v502 = vunpack.c.h.b16 %v496
  %v503 = vpack.c.b16 %v499, %v499
  %v504 = vpack.c.b16 %v500, %v500
  %v505 = vpack.c.b16 %v501, %v501
  %v506 = vpack.c.b16 %v502, %v502
  %vm511 = vcmask 519168
  %512 = vst.msk [vmem:[%s4] sm:$0xf] %vm511, %v503
  %513 = vst.msk [vmem:[%s4 + $0x4] sm:$0xf] %vm511, %v504
  %514 = vst.msk [vmem:[%s4 + $0x8] sm:$0xf] %vm511, %v505
  %515 = vst.msk [vmem:[%s4 + $0xc] sm:$0xf] %vm511, %v506
  // Predicated region
  $region18: #{discriminator_forward.10} parent=0 // pred_check
    _
  $region19: #{discriminator_forward.10} parent=0 // pred_check_branch
    %517 = sbr.rel (0) target = $region21
  $region20: #{discriminator_forward.10} parent=0 // pred_region
    _
  $region21: #{discriminator_forward.10} parent=0 // pred_fallthru
    _
  // Predicated region
  $region22: #{discriminator_forward.10} parent=0 // pred_check
    _
  $region23: #{discriminator_forward.10} parent=0 // pred_check_branch
    %519 = sbr.rel (0) target = $region25
  $region24: #{discriminator_forward.10} parent=0 // pred_region
    _
  $region25: #{discriminator_forward.10} parent=0 // pred_fallthru
    _

// kernel: discriminator_forward.11
$region0: #{discriminator_forward.11}
  #allocation0 [shape = 'u32[]', space=smem, size = 0x4, offset = 0x4, fixed_abs, tag = 'smem constant byte address 0x4 - core index']
  #allocation1 [shape = 'u32[144,128]{1,0:T(1,128)}', space=vmem, size = 0x12000, scoped, tag = 'internal scratch']
  %s0 = inlined_call_operand.vmem [shape: bf16[2,1024], index: 0, kind: input, shape index: {}]
  %s1 = inlined_call_operand.vmem [shape: bf16[1024,1], index: 1, kind: input, shape index: {}]
  %s2 = inlined_call_operand.vmem [shape: f32[2,1], index: 2, kind: output, shape index: {}]
  %s3 = sld [smem:[#allocation0]]
  $region18: #{discriminator_forward.11} parent=0
    _
  %s5 = ssub.s32 1, %s3
  %s6 = scalar_select 0, %s5, %s3
  // Predicated region
  $region2: #{discriminator_forward.11} parent=0 // pred_check
    _
  $region3: #{discriminator_forward.11} parent=0 // pred_check_branch
    %8 = sbr.rel (0) target = $region5
  $region4: #{discriminator_forward.11} parent=0 // pred_region
    _
  $region5: #{discriminator_forward.11} parent=0 // pred_fallthru
    _
  // Predicated region
  $region6: #{discriminator_forward.11} parent=0 // pred_check
    _
  $region7: #{discriminator_forward.11} parent=0 // pred_check_branch
    %10 = sbr.rel (0) target = $region9
  $region8: #{discriminator_forward.11} parent=0 // pred_region
    _
  $region9: #{discriminator_forward.11} parent=0 // pred_fallthru
    _
  %v12 = vld [vmem:[%s0] sm:$0xff]
  %v13 = vld [vmem:[%s1] sm:$0xf]
  %v14 = vld [vmem:[%s1 + $0x4] sm:$0xf]
  %v15 = vld [vmem:[%s1 + $0x8] sm:$0xf]
  %v16 = vld [vmem:[%s1 + $0xc] sm:$0xf]
  %v17 = vld [vmem:[%s1 + $0x10] sm:$0xf]
  %v18 = vld [vmem:[%s1 + $0x14] sm:$0xf]
  %v19 = vld [vmem:[%s1 + $0x18] sm:$0xf]
  %v20 = vld [vmem:[%s1 + $0x1c] sm:$0xf]
  %v21 = vld [vmem:[%s1 + $0x20] sm:$0xf]
  %v22 = vld [vmem:[%s1 + $0x24] sm:$0xf]
  %v23 = vld [vmem:[%s1 + $0x28] sm:$0xf]
  %v24 = vld [vmem:[%s1 + $0x2c] sm:$0xf]
  %v25 = vld [vmem:[%s1 + $0x30] sm:$0xf]
  %v26 = vld [vmem:[%s1 + $0x34] sm:$0xf]
  %v27 = vld [vmem:[%s1 + $0x38] sm:$0xf]
  %v28 = vld [vmem:[%s1 + $0x3c] sm:$0xf]
  %v29 = vld [vmem:[%s1 + $0x40] sm:$0xf]
  %v30 = vld [vmem:[%s1 + $0x44] sm:$0xf]
  %v31 = vld [vmem:[%s1 + $0x48] sm:$0xf]
  %v32 = vld [vmem:[%s1 + $0x4c] sm:$0xf]
  %v33 = vld [vmem:[%s1 + $0x50] sm:$0xf]
  %v34 = vld [vmem:[%s1 + $0x54] sm:$0xf]
  %v35 = vld [vmem:[%s1 + $0x58] sm:$0xf]
  %v36 = vld [vmem:[%s1 + $0x5c] sm:$0xf]
  %v37 = vld [vmem:[%s1 + $0x60] sm:$0xf]
  %v38 = vld [vmem:[%s1 + $0x64] sm:$0xf]
  %v39 = vld [vmem:[%s1 + $0x68] sm:$0xf]
  %v40 = vld [vmem:[%s1 + $0x6c] sm:$0xf]
  %v41 = vld [vmem:[%s1 + $0x70] sm:$0xf]
  %v42 = vld [vmem:[%s1 + $0x74] sm:$0xf]
  %v43 = vld [vmem:[%s1 + $0x78] sm:$0xf]
  %v44 = vld [vmem:[%s1 + $0x7c] sm:$0xf]
  %v45 = vld [vmem:[%s1 + $0x80] sm:$0xf]
  %v46 = vld [vmem:[%s1 + $0x84] sm:$0xf]
  %v47 = vld [vmem:[%s1 + $0x88] sm:$0xf]
  %v48 = vld [vmem:[%s1 + $0x8c] sm:$0xf]
  %v49 = vld [vmem:[%s1 + $0x90] sm:$0xf]
  %v50 = vld [vmem:[%s1 + $0x94] sm:$0xf]
  %v51 = vld [vmem:[%s1 + $0x98] sm:$0xf]
  %v52 = vld [vmem:[%s1 + $0x9c] sm:$0xf]
  %v53 = vld [vmem:[%s1 + $0xa0] sm:$0xf]
  %v54 = vld [vmem:[%s1 + $0xa4] sm:$0xf]
  %v55 = vld [vmem:[%s1 + $0xa8] sm:$0xf]
  %v56 = vld [vmem:[%s1 + $0xac] sm:$0xf]
  %v57 = vld [vmem:[%s1 + $0xb0] sm:$0xf]
  %v58 = vld [vmem:[%s1 + $0xb4] sm:$0xf]
  %v59 = vld [vmem:[%s1 + $0xb8] sm:$0xf]
  %v60 = vld [vmem:[%s1 + $0xbc] sm:$0xf]
  %v61 = vld [vmem:[%s1 + $0xc0] sm:$0xf]
  %v62 = vld [vmem:[%s1 + $0xc4] sm:$0xf]
  %v63 = vld [vmem:[%s1 + $0xc8] sm:$0xf]
  %v64 = vld [vmem:[%s1 + $0xcc] sm:$0xf]
  %v65 = vld [vmem:[%s1 + $0xd0] sm:$0xf]
  %v66 = vld [vmem:[%s1 + $0xd4] sm:$0xf]
  %v67 = vld [vmem:[%s1 + $0xd8] sm:$0xf]
  %v68 = vld [vmem:[%s1 + $0xdc] sm:$0xf]
  %v69 = vld [vmem:[%s1 + $0xe0] sm:$0xf]
  %v70 = vld [vmem:[%s1 + $0xe4] sm:$0xf]
  %v71 = vld [vmem:[%s1 + $0xe8] sm:$0xf]
  %v72 = vld [vmem:[%s1 + $0xec] sm:$0xf]
  %v73 = vld [vmem:[%s1 + $0xf0] sm:$0xf]
  %v74 = vld [vmem:[%s1 + $0xf4] sm:$0xf]
  %v75 = vld [vmem:[%s1 + $0xf8] sm:$0xf]
  %v76 = vld [vmem:[%s1 + $0xfc] sm:$0xf]
  %v77 = vld [vmem:[%s1 + $0x100] sm:$0xf]
  %v78 = vld [vmem:[%s1 + $0x104] sm:$0xf]
  %v79 = vld [vmem:[%s1 + $0x108] sm:$0xf]
  %v80 = vld [vmem:[%s1 + $0x10c] sm:$0xf]
  %v81 = vld [vmem:[%s1 + $0x110] sm:$0xf]
  %v82 = vld [vmem:[%s1 + $0x114] sm:$0xf]
  %v83 = vld [vmem:[%s1 + $0x118] sm:$0xf]
  %v84 = vld [vmem:[%s1 + $0x11c] sm:$0xf]
  %v85 = vld [vmem:[%s1 + $0x120] sm:$0xf]
  %v86 = vld [vmem:[%s1 + $0x124] sm:$0xf]
  %v87 = vld [vmem:[%s1 + $0x128] sm:$0xf]
  %v88 = vld [vmem:[%s1 + $0x12c] sm:$0xf]
  %v89 = vld [vmem:[%s1 + $0x130] sm:$0xf]
  %v90 = vld [vmem:[%s1 + $0x134] sm:$0xf]
  %v91 = vld [vmem:[%s1 + $0x138] sm:$0xf]
  %v92 = vld [vmem:[%s1 + $0x13c] sm:$0xf]
  %v93 = vld [vmem:[%s1 + $0x140] sm:$0xf]
  %v94 = vld [vmem:[%s1 + $0x144] sm:$0xf]
  %v95 = vld [vmem:[%s1 + $0x148] sm:$0xf]
  %v96 = vld [vmem:[%s1 + $0x14c] sm:$0xf]
  %v97 = vld [vmem:[%s1 + $0x150] sm:$0xf]
  %v98 = vld [vmem:[%s1 + $0x154] sm:$0xf]
  %v99 = vld [vmem:[%s1 + $0x158] sm:$0xf]
  %v100 = vld [vmem:[%s1 + $0x15c] sm:$0xf]
  %v101 = vld [vmem:[%s1 + $0x160] sm:$0xf]
  %v102 = vld [vmem:[%s1 + $0x164] sm:$0xf]
  %v103 = vld [vmem:[%s1 + $0x168] sm:$0xf]
  %v104 = vld [vmem:[%s1 + $0x16c] sm:$0xf]
  %v105 = vld [vmem:[%s1 + $0x170] sm:$0xf]
  %v106 = vld [vmem:[%s1 + $0x174] sm:$0xf]
  %v107 = vld [vmem:[%s1 + $0x178] sm:$0xf]
  %v108 = vld [vmem:[%s1 + $0x17c] sm:$0xf]
  %v109 = vld [vmem:[%s1 + $0x180] sm:$0xf]
  %v110 = vld [vmem:[%s1 + $0x184] sm:$0xf]
  %v111 = vld [vmem:[%s1 + $0x188] sm:$0xf]
  %v112 = vld [vmem:[%s1 + $0x18c] sm:$0xf]
  %v113 = vld [vmem:[%s1 + $0x190] sm:$0xf]
  %v114 = vld [vmem:[%s1 + $0x194] sm:$0xf]
  %v115 = vld [vmem:[%s1 + $0x198] sm:$0xf]
  %v116 = vld [vmem:[%s1 + $0x19c] sm:$0xf]
  %v117 = vld [vmem:[%s1 + $0x1a0] sm:$0xf]
  %v118 = vld [vmem:[%s1 + $0x1a4] sm:$0xf]
  %v119 = vld [vmem:[%s1 + $0x1a8] sm:$0xf]
  %v120 = vld [vmem:[%s1 + $0x1ac] sm:$0xf]
  %v121 = vld [vmem:[%s1 + $0x1b0] sm:$0xf]
  %v122 = vld [vmem:[%s1 + $0x1b4] sm:$0xf]
  %v123 = vld [vmem:[%s1 + $0x1b8] sm:$0xf]
  %v124 = vld [vmem:[%s1 + $0x1bc] sm:$0xf]
  %v125 = vld [vmem:[%s1 + $0x1c0] sm:$0xf]
  %v126 = vld [vmem:[%s1 + $0x1c4] sm:$0xf]
  %v127 = vld [vmem:[%s1 + $0x1c8] sm:$0xf]
  %v128 = vld [vmem:[%s1 + $0x1cc] sm:$0xf]
  %v129 = vld [vmem:[%s1 + $0x1d0] sm:$0xf]
  %v130 = vld [vmem:[%s1 + $0x1d4] sm:$0xf]
  %v131 = vld [vmem:[%s1 + $0x1d8] sm:$0xf]
  %v132 = vld [vmem:[%s1 + $0x1dc] sm:$0xf]
  %v133 = vld [vmem:[%s1 + $0x1e0] sm:$0xf]
  %v134 = vld [vmem:[%s1 + $0x1e4] sm:$0xf]
  %v135 = vld [vmem:[%s1 + $0x1e8] sm:$0xf]
  %v136 = vld [vmem:[%s1 + $0x1ec] sm:$0xf]
  %v137 = vld [vmem:[%s1 + $0x1f0] sm:$0xf]
  %v138 = vld [vmem:[%s1 + $0x1f4] sm:$0xf]
  %v139 = vld [vmem:[%s1 + $0x1f8] sm:$0xf]
  %v140 = vld [vmem:[%s1 + $0x1fc] sm:$0xf]
  %v142 = vcombine.high %v12, %v12
  %v144 = vunpack.c.l.s4 1966171168
  %v145 = vunpack.c.0.s8 %v144
  %v146 = vlaneseq
  %v147 = vshrl.u32 %v146, 7
  %v148 = vsub.s32 %v145, %v147
  %v149 = vrot.slane %v12, %v148
  %v151 = vunpack.c.l.s4 1966171168
  %v152 = vunpack.c.0.s8 %v151
  %v153 = vlaneseq
  %v154 = vshrl.u32 %v153, 7
  %v155 = vsub.s32 %v152, %v154
  %v156 = vrot.slane %v142, %v155
  %v157 = vcombine.high %v149, %v149
  %v158 = vcombine.high %v156, %v156
  %v160 = vunpack.c.l.s4 1966171168
  %v161 = vunpack.c.0.s8 %v160
  %v162 = vlaneseq
  %v163 = vshrl.u32 %v162, 7
  %v164 = vsub.s32 %v161, %v163
  %v165 = vrot.slane %v149, %v164
  %v167 = vunpack.c.l.s4 1966171168
  %v168 = vunpack.c.0.s8 %v167
  %v169 = vlaneseq
  %v170 = vshrl.u32 %v169, 7
  %v171 = vsub.s32 %v168, %v170
  %v172 = vrot.slane %v156, %v171
  %v174 = vunpack.c.l.s4 1966171168
  %v175 = vunpack.c.0.s8 %v174
  %v176 = vlaneseq
  %v177 = vshrl.u32 %v176, 7
  %v178 = vsub.s32 %v175, %v177
  %v179 = vrot.slane %v157, %v178
  %v181 = vunpack.c.l.s4 1966171168
  %v182 = vunpack.c.0.s8 %v181
  %v183 = vlaneseq
  %v184 = vshrl.u32 %v183, 7
  %v185 = vsub.s32 %v182, %v184
  %v186 = vrot.slane %v158, %v185
  %v187 = vcombine.high %v165, %v165
  %v188 = vcombine.high %v172, %v172
  %v189 = vcombine.high %v179, %v179
  %v190 = vcombine.high %v186, %v186
  %v327 = vunpack.c.l.b16 %v13
  %v328 = vunpack.c.l.b16 %v14
  %v329 = vunpack.c.l.b16 %v15
  %v330 = vunpack.c.l.b16 %v16
  %v331 = vunpack.c.l.b16 %v17
  %v332 = vunpack.c.l.b16 %v18
  %v333 = vunpack.c.l.b16 %v19
  %v334 = vunpack.c.l.b16 %v20
  %v335 = vunpack.c.l.b16 %v21
  %v336 = vunpack.c.l.b16 %v22
  %v337 = vunpack.c.l.b16 %v23
  %v338 = vunpack.c.l.b16 %v24
  %v339 = vunpack.c.l.b16 %v25
  %v340 = vunpack.c.l.b16 %v26
  %v341 = vunpack.c.l.b16 %v27
  %v342 = vunpack.c.l.b16 %v28
  %v343 = vunpack.c.l.b16 %v29
  %v344 = vunpack.c.l.b16 %v30
  %v345 = vunpack.c.l.b16 %v31
  %v346 = vunpack.c.l.b16 %v32
  %v347 = vunpack.c.l.b16 %v33
  %v348 = vunpack.c.l.b16 %v34
  %v349 = vunpack.c.l.b16 %v35
  %v350 = vunpack.c.l.b16 %v36
  %v351 = vunpack.c.l.b16 %v37
  %v352 = vunpack.c.l.b16 %v38
  %v353 = vunpack.c.l.b16 %v39
  %v354 = vunpack.c.l.b16 %v40
  %v355 = vunpack.c.l.b16 %v41
  %v356 = vunpack.c.l.b16 %v42
  %v357 = vunpack.c.l.b16 %v43
  %v358 = vunpack.c.l.b16 %v44
  %v359 = vunpack.c.l.b16 %v45
  %v360 = vunpack.c.l.b16 %v46
  %v361 = vunpack.c.l.b16 %v47
  %v362 = vunpack.c.l.b16 %v48
  %v363 = vunpack.c.l.b16 %v49
  %v364 = vunpack.c.l.b16 %v50
  %v365 = vunpack.c.l.b16 %v51
  %v366 = vunpack.c.l.b16 %v52
  %v367 = vunpack.c.l.b16 %v53
  %v368 = vunpack.c.l.b16 %v54
  %v369 = vunpack.c.l.b16 %v55
  %v370 = vunpack.c.l.b16 %v56
  %v371 = vunpack.c.l.b16 %v57
  %v372 = vunpack.c.l.b16 %v58
  %v373 = vunpack.c.l.b16 %v59
  %v374 = vunpack.c.l.b16 %v60
  %v375 = vunpack.c.l.b16 %v61
  %v376 = vunpack.c.l.b16 %v62
  %v377 = vunpack.c.l.b16 %v63
  %v378 = vunpack.c.l.b16 %v64
  %v379 = vunpack.c.l.b16 %v65
  %v380 = vunpack.c.l.b16 %v66
  %v381 = vunpack.c.l.b16 %v67
  %v382 = vunpack.c.l.b16 %v68
  %v383 = vunpack.c.l.b16 %v69
  %v384 = vunpack.c.l.b16 %v70
  %v385 = vunpack.c.l.b16 %v71
  %v386 = vunpack.c.l.b16 %v72
  %v387 = vunpack.c.l.b16 %v73
  %v388 = vunpack.c.l.b16 %v74
  %v389 = vunpack.c.l.b16 %v75
  %v390 = vunpack.c.l.b16 %v76
  %v391 = vunpack.c.l.b16 %v77
  %v392 = vunpack.c.l.b16 %v78
  %v393 = vunpack.c.l.b16 %v79
  %v394 = vunpack.c.l.b16 %v80
  %v395 = vunpack.c.l.b16 %v81
  %v396 = vunpack.c.l.b16 %v82
  %v397 = vunpack.c.l.b16 %v83
  %v398 = vunpack.c.l.b16 %v84
  %v399 = vunpack.c.l.b16 %v85
  %v400 = vunpack.c.l.b16 %v86
  %v401 = vunpack.c.l.b16 %v87
  %v402 = vunpack.c.l.b16 %v88
  %v403 = vunpack.c.l.b16 %v89
  %v404 = vunpack.c.l.b16 %v90
  %v405 = vunpack.c.l.b16 %v91
  %v406 = vunpack.c.l.b16 %v92
  %v407 = vunpack.c.l.b16 %v93
  %v408 = vunpack.c.l.b16 %v94
  %v409 = vunpack.c.l.b16 %v95
  %v410 = vunpack.c.l.b16 %v96
  %v411 = vunpack.c.l.b16 %v97
  %v412 = vunpack.c.l.b16 %v98
  %v413 = vunpack.c.l.b16 %v99
  %v414 = vunpack.c.l.b16 %v100
  %v415 = vunpack.c.l.b16 %v101
  %v416 = vunpack.c.l.b16 %v102
  %v417 = vunpack.c.l.b16 %v103
  %v418 = vunpack.c.l.b16 %v104
  %v419 = vunpack.c.l.b16 %v105
  %v420 = vunpack.c.l.b16 %v106
  %v421 = vunpack.c.l.b16 %v107
  %v422 = vunpack.c.l.b16 %v108
  %v423 = vunpack.c.l.b16 %v109
  %v424 = vunpack.c.l.b16 %v110
  %v425 = vunpack.c.l.b16 %v111
  %v426 = vunpack.c.l.b16 %v112
  %v427 = vunpack.c.l.b16 %v113
  %v428 = vunpack.c.l.b16 %v114
  %v429 = vunpack.c.l.b16 %v115
  %v430 = vunpack.c.l.b16 %v116
  %v431 = vunpack.c.l.b16 %v117
  %v432 = vunpack.c.l.b16 %v118
  %v433 = vunpack.c.l.b16 %v119
  %v434 = vunpack.c.l.b16 %v120
  %v435 = vunpack.c.l.b16 %v121
  %v436 = vunpack.c.l.b16 %v122
  %v437 = vunpack.c.l.b16 %v123
  %v438 = vunpack.c.l.b16 %v124
  %v439 = vunpack.c.l.b16 %v125
  %v440 = vunpack.c.l.b16 %v126
  %v441 = vunpack.c.l.b16 %v127
  %v442 = vunpack.c.l.b16 %v128
  %v443 = vunpack.c.l.b16 %v129
  %v444 = vunpack.c.l.b16 %v130
  %v445 = vunpack.c.l.b16 %v131
  %v446 = vunpack.c.l.b16 %v132
  %v447 = vunpack.c.l.b16 %v133
  %v448 = vunpack.c.l.b16 %v134
  %v449 = vunpack.c.l.b16 %v135
  %v450 = vunpack.c.l.b16 %v136
  %v451 = vunpack.c.l.b16 %v137
  %v452 = vunpack.c.l.b16 %v138
  %v453 = vunpack.c.l.b16 %v139
  %v454 = vunpack.c.l.b16 %v140
  %v455 = vpack.c.b16 %v328, %v327
  %v456 = vpack.c.b16 %v330, %v329
  %v457 = vpack.c.b16 %v332, %v331
  %v458 = vpack.c.b16 %v334, %v333
  %v459 = vpack.c.b16 %v336, %v335
  %v460 = vpack.c.b16 %v338, %v337
  %v461 = vpack.c.b16 %v340, %v339
  %v462 = vpack.c.b16 %v342, %v341
  %v463 = vpack.c.b16 %v344, %v343
  %v464 = vpack.c.b16 %v346, %v345
  %v465 = vpack.c.b16 %v348, %v347
  %v466 = vpack.c.b16 %v350, %v349
  %v467 = vpack.c.b16 %v352, %v351
  %v468 = vpack.c.b16 %v354, %v353
  %v469 = vpack.c.b16 %v356, %v355
  %v470 = vpack.c.b16 %v358, %v357
  %v471 = vpack.c.b16 %v360, %v359
  %v472 = vpack.c.b16 %v362, %v361
  %v473 = vpack.c.b16 %v364, %v363
  %v474 = vpack.c.b16 %v366, %v365
  %v475 = vpack.c.b16 %v368, %v367
  %v476 = vpack.c.b16 %v370, %v369
  %v477 = vpack.c.b16 %v372, %v371
  %v478 = vpack.c.b16 %v374, %v373
  %v479 = vpack.c.b16 %v376, %v375
  %v480 = vpack.c.b16 %v378, %v377
  %v481 = vpack.c.b16 %v380, %v379
  %v482 = vpack.c.b16 %v382, %v381
  %v483 = vpack.c.b16 %v384, %v383
  %v484 = vpack.c.b16 %v386, %v385
  %v485 = vpack.c.b16 %v388, %v387
  %v486 = vpack.c.b16 %v390, %v389
  %v487 = vpack.c.b16 %v392, %v391
  %v488 = vpack.c.b16 %v394, %v393
  %v489 = vpack.c.b16 %v396, %v395
  %v490 = vpack.c.b16 %v398, %v397
  %v491 = vpack.c.b16 %v400, %v399
  %v492 = vpack.c.b16 %v402, %v401
  %v493 = vpack.c.b16 %v404, %v403
  %v494 = vpack.c.b16 %v406, %v405
  %v495 = vpack.c.b16 %v408, %v407
  %v496 = vpack.c.b16 %v410, %v409
  %v497 = vpack.c.b16 %v412, %v411
  %v498 = vpack.c.b16 %v414, %v413
  %v499 = vpack.c.b16 %v416, %v415
  %v500 = vpack.c.b16 %v418, %v417
  %v501 = vpack.c.b16 %v420, %v419
  %v502 = vpack.c.b16 %v422, %v421
  %v503 = vpack.c.b16 %v424, %v423
  %v504 = vpack.c.b16 %v426, %v425
  %v505 = vpack.c.b16 %v428, %v427
  %v506 = vpack.c.b16 %v430, %v429
  %v507 = vpack.c.b16 %v432, %v431
  %v508 = vpack.c.b16 %v434, %v433
  %v509 = vpack.c.b16 %v436, %v435
  %v510 = vpack.c.b16 %v438, %v437
  %v511 = vpack.c.b16 %v440, %v439
  %v512 = vpack.c.b16 %v442, %v441
  %v513 = vpack.c.b16 %v444, %v443
  %v514 = vpack.c.b16 %v446, %v445
  %v515 = vpack.c.b16 %v448, %v447
  %v516 = vpack.c.b16 %v450, %v449
  %v517 = vpack.c.b16 %v452, %v451
  %v518 = vpack.c.b16 %v454, %v453
  %583 = vmatprep.subr.bf16.mxu0 0
  %584 = vmatpush1.bf16.msra.mxu0 %v462
  %585 = vmatprep.subr.bf16.mxu0 0
  %586 = vmatpush1.bf16.msra.mxu0 %v461
  %587 = vmatprep.subr.bf16.mxu0 0
  %588 = vmatpush1.bf16.msra.mxu0 %v460
  %589 = vmatprep.subr.bf16.mxu0 0
  %590 = vmatpush1.bf16.msra.mxu0 %v459
  %591 = vmatprep.subr.bf16.mxu0 0
  %592 = vmatpush1.bf16.msra.mxu0 %v458
  %593 = vmatprep.subr.bf16.mxu0 0
  %594 = vmatpush1.bf16.msra.mxu0 %v457
  %595 = vmatprep.subr.bf16.mxu0 0
  %596 = vmatpush1.bf16.msra.mxu0 %v456
  %597 = vmatprep.subr.bf16.mxu0 0
  %598 = vmatpush1.bf16.msra.mxu0 %v455
  %599 = vmatprep.subr.bf16.mxu0 0
  %600 = vmatpush2.bf16.msra.mxu0 %v470
  %601 = vmatprep.subr.bf16.mxu0 0
  %602 = vmatpush2.bf16.msra.mxu0 %v469
  %603 = vmatprep.subr.bf16.mxu0 0
  %604 = vmatpush2.bf16.msra.mxu0 %v468
  %605 = vmatprep.subr.bf16.mxu0 0
  %606 = vmatpush2.bf16.msra.mxu0 %v467
  %607 = vmatprep.subr.bf16.mxu0 0
  %608 = vmatpush2.bf16.msra.mxu0 %v466
  %609 = vmatprep.subr.bf16.mxu0 0
  %610 = vmatpush2.bf16.msra.mxu0 %v465
  %611 = vmatprep.subr.bf16.mxu0 0
  %612 = vmatpush2.bf16.msra.mxu0 %v464
  %613 = vmatprep.subr.bf16.mxu0 0
  %614 = vmatpush2.bf16.msra.mxu0 %v463
  %615 = vmatprep.mubr.bf16.mxu0 %v179
  %616 = vmatmul.mubr.bf16.gmra.mxu0 %v165
  %v617 = vpop.f32.mrf.mxu0
  %v618 = vadd.f32 0.0, %v617
  %v619 = vpop.f32.mrf.mxu0
  %v620 = vpop.f32.mrf.mxu0
  %v621 = vpop.f32.mrf.mxu0
  %622 = vdwg.mxu0
  %623 = vmatprep.subr.bf16.mxu0 0
  %624 = vmatpush1.bf16.msra.mxu0 %v478
  %625 = vmatprep.subr.bf16.mxu0 0
  %626 = vmatpush1.bf16.msra.mxu0 %v477
  %627 = vmatprep.subr.bf16.mxu0 0
  %628 = vmatpush1.bf16.msra.mxu0 %v476
  %629 = vmatprep.subr.bf16.mxu0 0
  %630 = vmatpush1.bf16.msra.mxu0 %v475
  %631 = vmatprep.subr.bf16.mxu0 0
  %632 = vmatpush1.bf16.msra.mxu0 %v474
  %633 = vmatprep.subr.bf16.mxu0 0
  %634 = vmatpush1.bf16.msra.mxu0 %v473
  %635 = vmatprep.subr.bf16.mxu0 0
  %636 = vmatpush1.bf16.msra.mxu0 %v472
  %637 = vmatprep.subr.bf16.mxu0 0
  %638 = vmatpush1.bf16.msra.mxu0 %v471
  %639 = vmatprep.subr.bf16.mxu0 0
  %640 = vmatpush2.bf16.msra.mxu0 %v486
  %641 = vmatprep.subr.bf16.mxu0 0
  %642 = vmatpush2.bf16.msra.mxu0 %v485
  %643 = vmatprep.subr.bf16.mxu0 0
  %644 = vmatpush2.bf16.msra.mxu0 %v484
  %645 = vmatprep.subr.bf16.mxu0 0
  %646 = vmatpush2.bf16.msra.mxu0 %v483
  %647 = vmatprep.subr.bf16.mxu0 0
  %648 = vmatpush2.bf16.msra.mxu0 %v482
  %649 = vmatprep.subr.bf16.mxu0 0
  %650 = vmatpush2.bf16.msra.mxu0 %v481
  %651 = vmatprep.subr.bf16.mxu0 0
  %652 = vmatpush2.bf16.msra.mxu0 %v480
  %653 = vmatprep.subr.bf16.mxu0 0
  %654 = vmatpush2.bf16.msra.mxu0 %v479
  %655 = vmatprep.mubr.bf16.mxu0 %v189
  %656 = vmatmul.mubr.bf16.gmra.mxu0 %v187
  %v657 = vpop.f32.mrf.mxu0
  %v658 = vadd.f32 %v618, %v657
  %v659 = vpop.f32.mrf.mxu0
  %v660 = vpop.f32.mrf.mxu0
  %v661 = vpop.f32.mrf.mxu0
  %662 = vdwg.mxu0
  %663 = vmatprep.subr.bf16.mxu0 0
  %664 = vmatpush1.bf16.msra.mxu0 %v494
  %665 = vmatprep.subr.bf16.mxu0 0
  %666 = vmatpush1.bf16.msra.mxu0 %v493
  %667 = vmatprep.subr.bf16.mxu0 0
  %668 = vmatpush1.bf16.msra.mxu0 %v492
  %669 = vmatprep.subr.bf16.mxu0 0
  %670 = vmatpush1.bf16.msra.mxu0 %v491
  %671 = vmatprep.subr.bf16.mxu0 0
  %672 = vmatpush1.bf16.msra.mxu0 %v490
  %673 = vmatprep.subr.bf16.mxu0 0
  %674 = vmatpush1.bf16.msra.mxu0 %v489
  %675 = vmatprep.subr.bf16.mxu0 0
  %676 = vmatpush1.bf16.msra.mxu0 %v488
  %677 = vmatprep.subr.bf16.mxu0 0
  %678 = vmatpush1.bf16.msra.mxu0 %v487
  %679 = vmatprep.subr.bf16.mxu0 0
  %680 = vmatpush2.bf16.msra.mxu0 %v502
  %681 = vmatprep.subr.bf16.mxu0 0
  %682 = vmatpush2.bf16.msra.mxu0 %v501
  %683 = vmatprep.subr.bf16.mxu0 0
  %684 = vmatpush2.bf16.msra.mxu0 %v500
  %685 = vmatprep.subr.bf16.mxu0 0
  %686 = vmatpush2.bf16.msra.mxu0 %v499
  %687 = vmatprep.subr.bf16.mxu0 0
  %688 = vmatpush2.bf16.msra.mxu0 %v498
  %689 = vmatprep.subr.bf16.mxu0 0
  %690 = vmatpush2.bf16.msra.mxu0 %v497
  %691 = vmatprep.subr.bf16.mxu0 0
  %692 = vmatpush2.bf16.msra.mxu0 %v496
  %693 = vmatprep.subr.bf16.mxu0 0
  %694 = vmatpush2.bf16.msra.mxu0 %v495
  %695 = vmatprep.mubr.bf16.mxu0 %v186
  %696 = vmatmul.mubr.bf16.gmra.mxu0 %v172
  %v697 = vpop.f32.mrf.mxu0
  %v698 = vadd.f32 %v658, %v697
  %v699 = vpop.f32.mrf.mxu0
  %v700 = vpop.f32.mrf.mxu0
  %v701 = vpop.f32.mrf.mxu0
  %702 = vdwg.mxu0
  %703 = vmatprep.subr.bf16.mxu0 0
  %704 = vmatpush1.bf16.msra.mxu0 %v510
  %705 = vmatprep.subr.bf16.mxu0 0
  %706 = vmatpush1.bf16.msra.mxu0 %v509
  %707 = vmatprep.subr.bf16.mxu0 0
  %708 = vmatpush1.bf16.msra.mxu0 %v508
  %709 = vmatprep.subr.bf16.mxu0 0
  %710 = vmatpush1.bf16.msra.mxu0 %v507
  %711 = vmatprep.subr.bf16.mxu0 0
  %712 = vmatpush1.bf16.msra.mxu0 %v506
  %713 = vmatprep.subr.bf16.mxu0 0
  %714 = vmatpush1.bf16.msra.mxu0 %v505
  %715 = vmatprep.subr.bf16.mxu0 0
  %716 = vmatpush1.bf16.msra.mxu0 %v504
  %717 = vmatprep.subr.bf16.mxu0 0
  %718 = vmatpush1.bf16.msra.mxu0 %v503
  %719 = vmatprep.subr.bf16.mxu0 0
  %720 = vmatpush2.bf16.msra.mxu0 %v518
  %721 = vmatprep.subr.bf16.mxu0 0
  %722 = vmatpush2.bf16.msra.mxu0 %v517
  %723 = vmatprep.subr.bf16.mxu0 0
  %724 = vmatpush2.bf16.msra.mxu0 %v516
  %725 = vmatprep.subr.bf16.mxu0 0
  %726 = vmatpush2.bf16.msra.mxu0 %v515
  %727 = vmatprep.subr.bf16.mxu0 0
  %728 = vmatpush2.bf16.msra.mxu0 %v514
  %729 = vmatprep.subr.bf16.mxu0 0
  %730 = vmatpush2.bf16.msra.mxu0 %v513
  %731 = vmatprep.subr.bf16.mxu0 0
  %732 = vmatpush2.bf16.msra.mxu0 %v512
  %733 = vmatprep.subr.bf16.mxu0 0
  %734 = vmatpush2.bf16.msra.mxu0 %v511
  %735 = vmatprep.mubr.bf16.mxu0 %v190
  %736 = vmatmul.mubr.bf16.gmra.mxu0 %v188
  %v737 = vpop.f32.mrf.mxu0
  %v738 = vadd.f32 %v698, %v737
  %v739 = vpop.f32.mrf.mxu0
  %v740 = vpop.f32.mrf.mxu0
  %v741 = vpop.f32.mrf.mxu0
  %742 = vdwg.mxu0
  %v743 = vmul.f32 %v738, 0.5
  %v744 = vtanh.pop %v743
  %v745 = vadd.f32 %v744, 1.0
  %v746 = vmul.f32 %v745, 0.5
  %vm747 = vcmask 1024
  %748 = vst.msk [vmem:[%s2] sm:$0x3] %vm747, %v746
  // Predicated region
  $region10: #{discriminator_forward.11} parent=0 // pred_check
    _
  $region11: #{discriminator_forward.11} parent=0 // pred_check_branch
    %750 = sbr.rel (0) target = $region13
  $region12: #{discriminator_forward.11} parent=0 // pred_region
    _
  $region13: #{discriminator_forward.11} parent=0 // pred_fallthru
    _
  // Predicated region
  $region14: #{discriminator_forward.11} parent=0 // pred_check
    _
  $region15: #{discriminator_forward.11} parent=0 // pred_check_branch
    %752 = sbr.rel (0) target = $region17
  $region16: #{discriminator_forward.11} parent=0 // pred_region
    _
  $region17: #{discriminator_forward.11} parent=0 // pred_fallthru
    _

</llo_original>
